<compile_context>
chip_gen: v7x
topology: tpu7x:2x2x1
jax: 0.10.0
libtpu: 0.0.40
codegen_flags: <defaults>
</compile_context>

<pallas_src>
import functools

import jax
import jax.numpy as jnp
import numpy as np
from jax.experimental import pallas as pl
from jax.experimental.pallas import tpu as pltpu

LANE = 128  # TPU lane width: channel padding granularity.


def _round_up(x, m):
    return (x + m - 1) // m * m


def _pick_th(ho, wo, target_rows=1024):
    """Largest divisor of Ho such that TH*Wo <= target_rows (at least 1)."""
    best = 1
    for th in range(1, ho + 1):
        if ho % th == 0 and th * wo <= target_rows:
            best = th
    return best


# ----------------------------------------------------------------------------
# Pallas kernel: tap-stacked conv + folded-BN shift + optional residual + ReLU
# ----------------------------------------------------------------------------
def _conv_bn_act_kernel(x_ref, w_ref, shift_ref, *rest, kh, kw, stride, th, wo,
                        cinp, relu, has_residual):
    if has_residual:
        res_ref, o_ref, lhs_ref = rest
    else:
        o_ref, lhs_ref = rest
    rows = th * wo
    num_taps = kh * kw
    h0 = pl.program_id(2) * th  # first output row of this spatial tile

    if num_taps == 1:
        # 1x1 conv (shortcut path, input already stride-selected): no stacking.
        lhs = x_ref[0, pl.ds(h0, th), 0:wo, :].reshape(rows, cinp)
    else:
        # Stack the kh*kw shifted windows along the lane axis into VMEM scratch:
        # lhs[:, t*Cinp:(t+1)*Cinp] = window(dy, dx), t = dy*kw + dx.
        for dy in range(kh):
            for dx in range(kw):
                t = dy * kw + dx
                if stride == 1:
                    # x_ref: (1, Hp, Wp, Cinp), spatially pre-padded.
                    tap = x_ref[0, pl.ds(h0 + dy, th), dx:dx + wo, :]
                else:
                    # stride == 2: x_ref is parity-split (4, Hp//2, Wp//2, Cinp)
                    # with x_ref[2*py+px, a, b, :] == x_pad[2a+py, 2b+px, :].
                    p = (dy % 2) * 2 + (dx % 2)
                    tap = x_ref[p, pl.ds(h0 + dy // 2, th),
                                dx // 2:dx // 2 + wo, :]
                lhs_ref[:, t * cinp:(t + 1) * cinp] = tap.reshape(rows, cinp)
        lhs = lhs_ref[...]

    # Single MXU matmul: (rows, kh*kw*Cinp) x (kh*kw*Cinp, TCO) -> f32.
    acc = jnp.dot(lhs, w_ref[...], preferred_element_type=jnp.float32)
    acc = acc + shift_ref[...]                    # folded BN shift (+bias)
    if has_residual:
        acc = acc + res_ref[0].reshape(rows, -1).astype(jnp.float32)
    if relu:
        acc = jnp.maximum(acc, 0.0)
    o_ref[0] = acc.reshape(th, wo, -1).astype(o_ref.dtype)


def conv_bn_act(x_prep, w_oihw, shift, *, n, out_hw, stride, relu,
                residual=None, plane_select=None):
    """Fused conv + per-channel shift (+ residual) + optional ReLU.

    x_prep: prepared bf16 input, channel-padded to a multiple of 128:
      - stride==1, plane_select None: (N, Hp, Wp, Cinp), spatially padded.
      - stride==2:                    (N*4, Hp//2, Wp//2, Cinp) parity split.
      - stride==1, plane_select=p:    parity-split tensor; only plane p is read
                                      (used for the 1x1 stride-2 shortcut).
    w_oihw:   (Cout, Cin, kh, kw) f32 weights, BN scale already folded in.
    shift:    (Cout,) f32 folded BN shift (incl. any conv bias).
    residual: optional (N, Ho, Wo, Cp) bf16 (channel-padded), added pre-ReLU.
    Returns   (N, Ho, Wo, Cp) bf16 with Cp = round_up(Cout, 128).
    """
    Ho, Wo = out_hw
    Cout, Cin, kh, kw = w_oihw.shape
    Cinp = x_prep.shape[-1]
    assert Cinp % LANE == 0 and Cin <= Cinp
    assert stride in (1, 2)
    Cp = _round_up(Cout, LANE)
    # Fill the 256-wide MXU of v6e/v7x when possible.
    # TODO(synk): make this generation-conditional (keep 128 on v5e).
    TCO = 256 if Cp % 256 == 0 else LANE
    TH = _pick_th(Ho, Wo)
    HT = Ho // TH
    rows = TH * Wo
    num_taps = kh * kw

    # Weights -> (kh*kw*Cinp, Cp), tap-major rows (dy, dx, cin); zero-padded
    # over both Cin and Cout so padded lanes contribute / produce zeros.
    w = jnp.transpose(w_oihw, (2, 3, 1, 0))                    # (kh, kw, Cin, Cout)
    w = jnp.pad(w, ((0, 0), (0, 0), (0, Cinp - Cin), (0, Cp - Cout)))
    w = w.reshape(num_taps * Cinp, Cp).astype(jnp.bfloat16)
    shift_p = jnp.pad(shift.astype(jnp.float32), (0, Cp - Cout)).reshape(1, Cp)

    # Input BlockSpec (whole-image block, reused across the co / h grid axes).
    if plane_select is not None:
        assert stride == 1 and num_taps == 1
        plane = int(plane_select)
        xb_shape = (1,) + x_prep.shape[1:]
        x_spec = pl.BlockSpec(xb_shape, lambda nn, co, h: (4 * nn + plane, 0, 0, 0))
    elif stride == 1:
        xb_shape = (1,) + x_prep.shape[1:]
        x_spec = pl.BlockSpec(xb_shape, lambda nn, co, h: (nn, 0, 0, 0))
    else:  # stride == 2
        xb_shape = (4,) + x_prep.shape[1:]
        x_spec = pl.BlockSpec(xb_shape, lambda nn, co, h: (nn, 0, 0, 0))

    in_specs = [
        x_spec,
        pl.BlockSpec((num_taps * Cinp, TCO), lambda nn, co, h: (0, co)),
        pl.BlockSpec((1, TCO), lambda nn, co, h: (0, co)),
    ]
    args = [x_prep, w, shift_p]
    if residual is not None:
        in_specs.append(pl.BlockSpec((1, TH, Wo, TCO),
                                     lambda nn, co, h: (nn, h, 0, co)))
        args.append(residual)

    out_spec = pl.BlockSpec((1, TH, Wo, TCO), lambda nn, co, h: (nn, h, 0, co))
    scratch = [pltpu.VMEM((rows, num_taps * Cinp), jnp.bfloat16)]

    # VMEM budget from the actual block footprint (double-buffered pipeline
    # blocks + LHS scratch + f32 acc headroom), capped so it fits v7x (64 MiB).
    blk_bytes = (int(np.prod(xb_shape)) * 2 +              # x block (bf16)
                 num_taps * Cinp * TCO * 2 +                # weights
                 TCO * 4 +                                  # shift
                 (rows * TCO * 2 if residual is not None else 0) +
                 rows * TCO * 2) * 2                        # out; x2 dbl-buffer
    blk_bytes += rows * num_taps * Cinp * 2                 # LHS scratch
    blk_bytes += rows * TCO * 4 * 2                         # f32 acc headroom
    vmem_limit = int(min(48 * 1024 * 1024,
                         max(32 * 1024 * 1024, 2 * blk_bytes)))

    kernel = functools.partial(
        _conv_bn_act_kernel, kh=kh, kw=kw, stride=stride, th=TH, wo=Wo,
        cinp=Cinp, relu=relu, has_residual=residual is not None)

    return pl.pallas_call(
        kernel,
        out_shape=jax.ShapeDtypeStruct((n, Ho, Wo, Cp), jnp.bfloat16),
        grid=(n, Cp // TCO, HT),
        in_specs=in_specs,
        out_specs=out_spec,
        scratch_shapes=scratch,
        compiler_params=pltpu.CompilerParams(
            dimension_semantics=("parallel", "parallel", "parallel"),
            vmem_limit_bytes=vmem_limit),
    )(*args)


# ----------------------------------------------------------------------------
# JAX glue: BN folding, parameter init, block forward
# ----------------------------------------------------------------------------
def fold_bn(bn, bias=None, eps=1e-5):
    scale = bn["gamma"] / jnp.sqrt(bn["var"] + eps)
    shift = bn["beta"] - scale * bn["mean"]
    if bias is not None:
        shift = shift + scale * bias
    return scale, shift


def init_params(key, cin, cout, downsample):
    ks = jax.random.split(key, 7)

    def bn_params(k):
        a, b, c, d = jax.random.split(k, 4)
        return dict(
            gamma=jax.random.uniform(a, (cout,), jnp.float32, 0.5, 1.5),
            beta=jax.random.normal(b, (cout,), jnp.float32) * 0.1,
            mean=jax.random.normal(c, (cout,), jnp.float32) * 0.1,
            var=jax.random.uniform(d, (cout,), jnp.float32, 0.5, 1.5),
        )

    p = dict(
        w1=jax.random.normal(ks[0], (cout, cin, 3, 3), jnp.float32) * 0.1,
        bn1=bn_params(ks[1]),
        w2=jax.random.normal(ks[2], (cout, cout, 3, 3), jnp.float32) * 0.1,
        bn2=bn_params(ks[3]),
    )
    if downsample:
        p["ws"] = jax.random.normal(ks[4], (cout, cin, 1, 1), jnp.float32) * 0.1
        p["ws_b"] = jax.random.normal(ks[5], (cout,), jnp.float32) * 0.1
        p["bns"] = bn_params(ks[6])
    return p


def basic_block_forward(x_nchw, params, downsample):
    """Matches BasicBlock.forward: conv3x3(s)-BN-ReLU-conv3x3(1)-BN + shortcut, ReLU."""
    cout, cin = params["w1"].shape[0], params["w1"].shape[1]
    x = jnp.transpose(x_nchw, (0, 2, 3, 1))  # NCHW -> NHWC
    N, H, W, _ = x.shape
    cinp = _round_up(cin, LANE)
    cp = _round_up(cout, LANE)
    stride1 = 2 if downsample else 1
    H1 = (H + 2 - 3) // stride1 + 1
    W1 = (W + 2 - 3) // stride1 + 1

    # Channel-pad (lane-dense) and spatially pad once; bf16 activations.
    xc = jnp.pad(x.astype(jnp.bfloat16), ((0, 0), (0, 0), (0, 0), (0, cinp - cin)))
    xp = jnp.pad(xc, ((0, 0), (1, 1), (1, 1), (0, 0)))
    if downsample:
        Hp, Wp = H + 2, W + 2
        # Space-to-batch parity split of the padded input:
        #   x1[4n + 2*py + px, a, b, :] == xp[n, 2a+py, 2b+px, :]
        x1 = xp.reshape(N, Hp // 2, 2, Wp // 2, 2, cinp)
        x1 = jnp.transpose(x1, (0, 2, 4, 1, 3, 5)).reshape(
            N * 4, Hp // 2, Wp // 2, cinp)
    else:
        x1 = xp

    # conv1 (3x3, stride1) + bn1 + relu -- one fused Pallas kernel.
    # (BN scale folded into weights; shift is zero-padded so padded output
    #  channels stay exactly zero through the whole block.)
    s1, b1 = fold_bn(params["bn1"])
    y1 = conv_bn_act(x1, params["w1"] * s1[:, None, None, None], b1,
                     n=N, out_hw=(H1, W1), stride=stride1, relu=True)

    # shortcut path (kept channel-padded between kernels).
    if downsample:
        ss, bs = fold_bn(params["bns"], bias=params["ws_b"])
        # 1x1 stride-2 conv == 1x1 stride-1 conv on parity plane (1,1) of the
        # space-to-batch tensor already built for conv1 (== x[:, ::2, ::2, :]).
        short = conv_bn_act(x1, params["ws"] * ss[:, None, None, None], bs,
                            n=N, out_hw=(H1, W1), stride=1, relu=False,
                            plane_select=3)
    else:
        assert cin == cout, "identity shortcut requires Cin == Cout"
        short = xc  # (N, H, W, cp), already channel-padded bf16

    # conv2 (3x3, stride 1) + bn2 + residual add + relu -- one fused kernel.
    s2, b2 = fold_bn(params["bn2"])
    y1p = jnp.pad(y1, ((0, 0), (1, 1), (1, 1), (0, 0)))   # spatial halo only
    out = conv_bn_act(y1p, params["w2"] * s2[:, None, None, None], b2,
                      n=N, out_hw=(H1, W1), stride=1, relu=True, residual=short)
    out = out[:, :, :, :cout].astype(jnp.float32)          # drop channel padding
    return jnp.transpose(out, (0, 3, 1, 2))                # NHWC -> NCHW


# ----------------------------------------------------------------------------
# Pure-JAX f32 reference (for correctness check)
# ----------------------------------------------------------------------------
def ref_forward(x_nchw, params, downsample):
    x = jnp.transpose(x_nchw, (0, 2, 3, 1))

    def conv(z, w_oihw, stride, padding):
        return jax.lax.conv_general_dilated(
            z, jnp.transpose(w_oihw, (2, 3, 1, 0)),
            window_strides=(stride, stride), padding=padding,
            dimension_numbers=("NHWC", "HWIO", "NHWC"))

    def bn(z, p, bias=None):
        s, sh = fold_bn(p, bias)
        return z * s + sh

    stride1 = 2 if downsample else 1
    y = jax.nn.relu(bn(conv(x, params["w1"], stride1, ((1, 1), (1, 1))), params["bn1"]))
    y = bn(conv(y, params["w2"], 1, ((1, 1), (1, 1))), params["bn2"])
    if downsample:
        short = bn(conv(x, params["ws"], 2, ((0, 0), (0, 0))), params["bns"],
                   params["ws_b"])
    else:
        short = x
    out = jax.nn.relu(y + short)
    return jnp.transpose(out, (0, 3, 1, 2))


# ----------------------------------------------------------------------------
if __name__ == "__main__":
    key = jax.random.PRNGKey(0)
    kp1, kp2, kx1, kx2 = jax.random.split(key, 4)

    fwd_ds = jax.jit(functools.partial(basic_block_forward, downsample=True))
    fwd_id = jax.jit(functools.partial(basic_block_forward, downsample=False))

    # Case 1: downsample block (Cin=4 -> Cout=8, stride 2 + 1x1 shortcut conv).
    x1 = jax.random.normal(kx1, (2, 4, 16, 16), jnp.float32)
    params1 = init_params(kp1, 4, 8, downsample=True)
    out1 = fwd_ds(x1, params1)
    ref1 = ref_forward(x1, params1, downsample=True)

    # Case 2: identity block (C=8, stride 1, identity shortcut).
    x2 = jax.random.normal(kx2, (2, 8, 16, 16), jnp.float32)
    params2 = init_params(kp2, 8, 8, downsample=False)
    out2 = fwd_id(x2, params2)
    ref2 = ref_forward(x2, params2, downsample=False)

    jax.block_until_ready((out1, out2))
    assert out1.shape == (2, 8, 8, 8), out1.shape
    assert out2.shape == (2, 8, 16, 16), out2.shape
    # bf16 activations/weights on the MXU vs. the pure-f32 XLA reference.
    np.testing.assert_allclose(np.asarray(out1), np.asarray(ref1), rtol=5e-2, atol=5e-2)
    np.testing.assert_allclose(np.asarray(out2), np.asarray(ref2), rtol=5e-2, atol=5e-2)
    print("KERNEL_OK")
</pallas_src>

<mosaic_0001>
module attributes {stable_mosaic.version = 11 : i64} {
  func.func @_conv_bn_act_kernel(%arg0: i32, %arg1: i32, %arg2: i32, %arg3: memref<4x9x9x128xbf16, #tpu.memory_space<vmem>>, %arg4: memref<1152x128xbf16, #tpu.memory_space<vmem>>, %arg5: memref<1x128xf32, #tpu.memory_space<vmem>>, %arg6: memref<1x8x8x128xbf16, #tpu.memory_space<vmem>>, %arg7: memref<64x1152xbf16, #tpu.memory_space<vmem>>) attributes {dimension_semantics = [#tpu.dimension_semantics<parallel>, #tpu.dimension_semantics<parallel>, #tpu.dimension_semantics<parallel>], iteration_bounds = array<i64: 2, 1, 1>, scalar_prefetch = 0 : i64, scratch_operands = 1 : i64, tpu.core_type = #tpu.core_type<tc>, window_params = [{transform_indices = @transform_0, window_bounds = array<i64: 4, 9, 9, 128>}, {transform_indices = @transform_1, window_bounds = array<i64: 1152, 128>}, {transform_indices = @transform_2, window_bounds = array<i64: 1, 128>}, {transform_indices = @transform_3, window_bounds = array<i64: 1, 8, 8, 128>}]} {
    %c8_i32 = arith.constant 8 : i32
    %0 = arith.muli %arg2, %c8_i32 : i32
    %c0_i32 = arith.constant 0 : i32
    %1 = arith.addi %0, %c0_i32 : i32
    %c0 = arith.constant 0 : index
    %2 = arith.index_cast %1 : i32 to index
    %c0_0 = arith.constant 0 : index
    %c0_1 = arith.constant 0 : index
    %3 = vector.load %arg3[%c0, %2, %c0_0, %c0_1] : memref<4x9x9x128xbf16, #tpu.memory_space<vmem>>, vector<1x8x8x128xbf16>
    %4 = vector.shape_cast %3 : vector<1x8x8x128xbf16> to vector<8x8x128xbf16>
    %5 = vector.shape_cast %4 : vector<8x8x128xbf16> to vector<64x128xbf16>
    %c0_2 = arith.constant 0 : index
    %c0_3 = arith.constant 0 : index
    %6 = vector.load %arg7[%c0_2, %c0_3] : memref<64x1152xbf16, #tpu.memory_space<vmem>>, vector<64x128xbf16>
    tpu.vector_store %arg7[%c0_2, %c0_3], %5 {strides = array<i32>} : memref<64x1152xbf16, #tpu.memory_space<vmem>>, vector<64x128xbf16>,
    %c0_i32_4 = arith.constant 0 : i32
    %7 = arith.addi %0, %c0_i32_4 : i32
    %c1 = arith.constant 1 : index
    %8 = arith.index_cast %7 : i32 to index
    %c0_5 = arith.constant 0 : index
    %c0_6 = arith.constant 0 : index
    %9 = vector.load %arg3[%c1, %8, %c0_5, %c0_6] : memref<4x9x9x128xbf16, #tpu.memory_space<vmem>>, vector<1x8x8x128xbf16>
    %10 = vector.shape_cast %9 : vector<1x8x8x128xbf16> to vector<8x8x128xbf16>
    %11 = vector.shape_cast %10 : vector<8x8x128xbf16> to vector<64x128xbf16>
    %c0_7 = arith.constant 0 : index
    %c128 = arith.constant 128 : index
    %12 = vector.load %arg7[%c0_7, %c128] : memref<64x1152xbf16, #tpu.memory_space<vmem>>, vector<64x128xbf16>
    tpu.vector_store %arg7[%c0_7, %c128], %11 {strides = array<i32>} : memref<64x1152xbf16, #tpu.memory_space<vmem>>, vector<64x128xbf16>,
    %c0_i32_8 = arith.constant 0 : i32
    %13 = arith.addi %0, %c0_i32_8 : i32
    %c0_9 = arith.constant 0 : index
    %14 = arith.index_cast %13 : i32 to index
    %c1_10 = arith.constant 1 : index
    %c0_11 = arith.constant 0 : index
    %15 = vector.load %arg3[%c0_9, %14, %c1_10, %c0_11] : memref<4x9x9x128xbf16, #tpu.memory_space<vmem>>, vector<1x8x8x128xbf16>
    %16 = vector.shape_cast %15 : vector<1x8x8x128xbf16> to vector<8x8x128xbf16>
    %17 = vector.shape_cast %16 : vector<8x8x128xbf16> to vector<64x128xbf16>
    %c0_12 = arith.constant 0 : index
    %c256 = arith.constant 256 : index
    %18 = vector.load %arg7[%c0_12, %c256] : memref<64x1152xbf16, #tpu.memory_space<vmem>>, vector<64x128xbf16>
    tpu.vector_store %arg7[%c0_12, %c256], %17 {strides = array<i32>} : memref<64x1152xbf16, #tpu.memory_space<vmem>>, vector<64x128xbf16>,
    %c0_i32_13 = arith.constant 0 : i32
    %19 = arith.addi %0, %c0_i32_13 : i32
    %c2 = arith.constant 2 : index
    %20 = arith.index_cast %19 : i32 to index
    %c0_14 = arith.constant 0 : index
    %c0_15 = arith.constant 0 : index
    %21 = vector.load %arg3[%c2, %20, %c0_14, %c0_15] : memref<4x9x9x128xbf16, #tpu.memory_space<vmem>>, vector<1x8x8x128xbf16>
    %22 = vector.shape_cast %21 : vector<1x8x8x128xbf16> to vector<8x8x128xbf16>
    %23 = vector.shape_cast %22 : vector<8x8x128xbf16> to vector<64x128xbf16>
    %c0_16 = arith.constant 0 : index
    %c384 = arith.constant 384 : index
    %24 = vector.load %arg7[%c0_16, %c384] : memref<64x1152xbf16, #tpu.memory_space<vmem>>, vector<64x128xbf16>
    tpu.vector_store %arg7[%c0_16, %c384], %23 {strides = array<i32>} : memref<64x1152xbf16, #tpu.memory_space<vmem>>, vector<64x128xbf16>,
    %c0_i32_17 = arith.constant 0 : i32
    %25 = arith.addi %0, %c0_i32_17 : i32
    %c3 = arith.constant 3 : index
    %26 = arith.index_cast %25 : i32 to index
    %c0_18 = arith.constant 0 : index
    %c0_19 = arith.constant 0 : index
    %27 = vector.load %arg3[%c3, %26, %c0_18, %c0_19] : memref<4x9x9x128xbf16, #tpu.memory_space<vmem>>, vector<1x8x8x128xbf16>
    %28 = vector.shape_cast %27 : vector<1x8x8x128xbf16> to vector<8x8x128xbf16>
    %29 = vector.shape_cast %28 : vector<8x8x128xbf16> to vector<64x128xbf16>
    %c0_20 = arith.constant 0 : index
    %c512 = arith.constant 512 : index
    %30 = vector.load %arg7[%c0_20, %c512] : memref<64x1152xbf16, #tpu.memory_space<vmem>>, vector<64x128xbf16>
    tpu.vector_store %arg7[%c0_20, %c512], %29 {strides = array<i32>} : memref<64x1152xbf16, #tpu.memory_space<vmem>>, vector<64x128xbf16>,
    %c0_i32_21 = arith.constant 0 : i32
    %31 = arith.addi %0, %c0_i32_21 : i32
    %c2_22 = arith.constant 2 : index
    %32 = arith.index_cast %31 : i32 to index
    %c1_23 = arith.constant 1 : index
    %c0_24 = arith.constant 0 : index
    %33 = vector.load %arg3[%c2_22, %32, %c1_23, %c0_24] : memref<4x9x9x128xbf16, #tpu.memory_space<vmem>>, vector<1x8x8x128xbf16>
    %34 = vector.shape_cast %33 : vector<1x8x8x128xbf16> to vector<8x8x128xbf16>
    %35 = vector.shape_cast %34 : vector<8x8x128xbf16> to vector<64x128xbf16>
    %c0_25 = arith.constant 0 : index
    %c640 = arith.constant 640 : index
    %36 = vector.load %arg7[%c0_25, %c640] : memref<64x1152xbf16, #tpu.memory_space<vmem>>, vector<64x128xbf16>
    tpu.vector_store %arg7[%c0_25, %c640], %35 {strides = array<i32>} : memref<64x1152xbf16, #tpu.memory_space<vmem>>, vector<64x128xbf16>,
    %c1_i32 = arith.constant 1 : i32
    %37 = arith.addi %0, %c1_i32 : i32
    %c0_26 = arith.constant 0 : index
    %38 = arith.index_cast %37 : i32 to index
    %c0_27 = arith.constant 0 : index
    %c0_28 = arith.constant 0 : index
    %39 = vector.load %arg3[%c0_26, %38, %c0_27, %c0_28] : memref<4x9x9x128xbf16, #tpu.memory_space<vmem>>, vector<1x8x8x128xbf16>
    %40 = vector.shape_cast %39 : vector<1x8x8x128xbf16> to vector<8x8x128xbf16>
    %41 = vector.shape_cast %40 : vector<8x8x128xbf16> to vector<64x128xbf16>
    %c0_29 = arith.constant 0 : index
    %c768 = arith.constant 768 : index
    %42 = vector.load %arg7[%c0_29, %c768] : memref<64x1152xbf16, #tpu.memory_space<vmem>>, vector<64x128xbf16>
    tpu.vector_store %arg7[%c0_29, %c768], %41 {strides = array<i32>} : memref<64x1152xbf16, #tpu.memory_space<vmem>>, vector<64x128xbf16>,
    %c1_i32_30 = arith.constant 1 : i32
    %43 = arith.addi %0, %c1_i32_30 : i32
    %c1_31 = arith.constant 1 : index
    %44 = arith.index_cast %43 : i32 to index
    %c0_32 = arith.constant 0 : index
    %c0_33 = arith.constant 0 : index
    %45 = vector.load %arg3[%c1_31, %44, %c0_32, %c0_33] : memref<4x9x9x128xbf16, #tpu.memory_space<vmem>>, vector<1x8x8x128xbf16>
    %46 = vector.shape_cast %45 : vector<1x8x8x128xbf16> to vector<8x8x128xbf16>
    %47 = vector.shape_cast %46 : vector<8x8x128xbf16> to vector<64x128xbf16>
    %c0_34 = arith.constant 0 : index
    %c896 = arith.constant 896 : index
    %48 = vector.load %arg7[%c0_34, %c896] : memref<64x1152xbf16, #tpu.memory_space<vmem>>, vector<64x128xbf16>
    tpu.vector_store %arg7[%c0_34, %c896], %47 {strides = array<i32>} : memref<64x1152xbf16, #tpu.memory_space<vmem>>, vector<64x128xbf16>,
    %c1_i32_35 = arith.constant 1 : i32
    %49 = arith.addi %0, %c1_i32_35 : i32
    %c0_36 = arith.constant 0 : index
    %50 = arith.index_cast %49 : i32 to index
    %c1_37 = arith.constant 1 : index
    %c0_38 = arith.constant 0 : index
    %51 = vector.load %arg3[%c0_36, %50, %c1_37, %c0_38] : memref<4x9x9x128xbf16, #tpu.memory_space<vmem>>, vector<1x8x8x128xbf16>
    %52 = vector.shape_cast %51 : vector<1x8x8x128xbf16> to vector<8x8x128xbf16>
    %53 = vector.shape_cast %52 : vector<8x8x128xbf16> to vector<64x128xbf16>
    %c0_39 = arith.constant 0 : index
    %c1024 = arith.constant 1024 : index
    %54 = vector.load %arg7[%c0_39, %c1024] : memref<64x1152xbf16, #tpu.memory_space<vmem>>, vector<64x128xbf16>
    tpu.vector_store %arg7[%c0_39, %c1024], %53 {strides = array<i32>} : memref<64x1152xbf16, #tpu.memory_space<vmem>>, vector<64x128xbf16>,
    %c0_40 = arith.constant 0 : index
    %c0_41 = arith.constant 0 : index
    %55 = vector.load %arg7[%c0_40, %c0_41] : memref<64x1152xbf16, #tpu.memory_space<vmem>>, vector<64x1152xbf16>
    %c0_42 = arith.constant 0 : index
    %c0_43 = arith.constant 0 : index
    %56 = vector.load %arg4[%c0_42, %c0_43] : memref<1152x128xbf16, #tpu.memory_space<vmem>>, vector<1152x128xbf16>
    %cst = arith.constant dense<0.000000e+00> : vector<64x128xf32>
    %57 = tpu.matmul %55, %56, %cst {dimension_numbers = #tpu.dot_dimension_numbers<[1], [0], [0], [1], [0, 0, 1, 1], [], []>} : vector<64x1152xbf16>, vector<1152x128xbf16>, vector<64x128xf32> -> vector<64x128xf32>
    %c0_44 = arith.constant 0 : index
    %c0_45 = arith.constant 0 : index
    %58 = vector.load %arg5[%c0_44, %c0_45] : memref<1x128xf32, #tpu.memory_space<vmem>>, vector<1x128xf32>
    %59 = vector.broadcast %58 : vector<1x128xf32> to vector<64x128xf32>
    %60 = arith.addf %57, %59 : vector<64x128xf32>
    %cst_46 = arith.constant 0.000000e+00 : f32
    %61 = vector.broadcast %cst_46 : f32 to vector<64x128xf32>
    %62 = arith.maximumf %60, %61 : vector<64x128xf32>
    %63 = vector.shape_cast %62 : vector<64x128xf32> to vector<8x8x128xf32>
    %64 = arith.truncf %63 : vector<8x8x128xf32> to vector<8x8x128xbf16>
    %c0_47 = arith.constant 0 : index
    %c0_48 = arith.constant 0 : index
    %c0_49 = arith.constant 0 : index
    %c0_50 = arith.constant 0 : index
    %65 = vector.load %arg6[%c0_47, %c0_48, %c0_49, %c0_50] : memref<1x8x8x128xbf16, #tpu.memory_space<vmem>>, vector<1x8x8x128xbf16>
    %66 = vector.shape_cast %65 : vector<1x8x8x128xbf16> to vector<8x8x128xbf16>
    %67 = vector.shape_cast %64 : vector<8x8x128xbf16> to vector<1x8x8x128xbf16>
    tpu.vector_store %arg6[%c0_47, %c0_48, %c0_49, %c0_50], %67 {strides = array<i32>} : memref<1x8x8x128xbf16, #tpu.memory_space<vmem>>, vector<1x8x8x128xbf16>,
    return
  }
  func.func @transform_0(%arg0: i32, %arg1: i32, %arg2: i32) -> (i32, i32, i32, i32) {
    %c0_i32 = arith.constant 0 : i32
    %c0_i32_0 = arith.constant 0 : i32
    %c0_i32_1 = arith.constant 0 : i32
    %c0_i32_2 = arith.constant 0 : i32
    return %arg0, %c0_i32, %c0_i32_0, %c0_i32_1 : i32, i32, i32, i32
  }
  func.func @transform_1(%arg0: i32, %arg1: i32, %arg2: i32) -> (i32, i32) {
    %c0_i32 = arith.constant 0 : i32
    %c0_i32_0 = arith.constant 0 : i32
    return %c0_i32, %arg1 : i32, i32
  }
  func.func @transform_2(%arg0: i32, %arg1: i32, %arg2: i32) -> (i32, i32) {
    %c0_i32 = arith.constant 0 : i32
    %c0_i32_0 = arith.constant 0 : i32
    return %c0_i32, %arg1 : i32, i32
  }
  func.func @transform_3(%arg0: i32, %arg1: i32, %arg2: i32) -> (i32, i32, i32, i32) {
    %c0_i32 = arith.constant 0 : i32
    %c0_i32_0 = arith.constant 0 : i32
    return %arg0, %arg2, %c0_i32, %arg1 : i32, i32, i32, i32
  }
}

module attributes {stable_mosaic.version = 11 : i64} {
  func.func @_conv_bn_act_kernel(%arg0: i32, %arg1: i32, %arg2: i32, %arg3: memref<1x9x9x128xbf16, #tpu.memory_space<vmem>>, %arg4: memref<128x128xbf16, #tpu.memory_space<vmem>>, %arg5: memref<1x128xf32, #tpu.memory_space<vmem>>, %arg6: memref<1x8x8x128xbf16, #tpu.memory_space<vmem>>, %arg7: memref<64x128xbf16, #tpu.memory_space<vmem>>) attributes {dimension_semantics = [#tpu.dimension_semantics<parallel>, #tpu.dimension_semantics<parallel>, #tpu.dimension_semantics<parallel>], iteration_bounds = array<i64: 2, 1, 1>, scalar_prefetch = 0 : i64, scratch_operands = 1 : i64, tpu.core_type = #tpu.core_type<tc>, window_params = [{transform_indices = @transform_0, window_bounds = array<i64: 1, 9, 9, 128>}, {transform_indices = @transform_1, window_bounds = array<i64: 128, 128>}, {transform_indices = @transform_2, window_bounds = array<i64: 1, 128>}, {transform_indices = @transform_3, window_bounds = array<i64: 1, 8, 8, 128>}]} {
    %c8_i32 = arith.constant 8 : i32
    %0 = arith.muli %arg2, %c8_i32 : i32
    %c0 = arith.constant 0 : index
    %1 = arith.index_cast %0 : i32 to index
    %c0_0 = arith.constant 0 : index
    %c0_1 = arith.constant 0 : index
    %2 = vector.load %arg3[%c0, %1, %c0_0, %c0_1] : memref<1x9x9x128xbf16, #tpu.memory_space<vmem>>, vector<1x8x8x128xbf16>
    %3 = vector.shape_cast %2 : vector<1x8x8x128xbf16> to vector<8x8x128xbf16>
    %4 = vector.shape_cast %3 : vector<8x8x128xbf16> to vector<64x128xbf16>
    %c0_2 = arith.constant 0 : index
    %c0_3 = arith.constant 0 : index
    %5 = vector.load %arg4[%c0_2, %c0_3] : memref<128x128xbf16, #tpu.memory_space<vmem>>, vector<128x128xbf16>
    %cst = arith.constant dense<0.000000e+00> : vector<64x128xf32>
    %6 = tpu.matmul %4, %5, %cst {dimension_numbers = #tpu.dot_dimension_numbers<[1], [0], [0], [1], [0, 0, 1, 1], [], []>} : vector<64x128xbf16>, vector<128x128xbf16>, vector<64x128xf32> -> vector<64x128xf32>
    %c0_4 = arith.constant 0 : index
    %c0_5 = arith.constant 0 : index
    %7 = vector.load %arg5[%c0_4, %c0_5] : memref<1x128xf32, #tpu.memory_space<vmem>>, vector<1x128xf32>
    %8 = vector.broadcast %7 : vector<1x128xf32> to vector<64x128xf32>
    %9 = arith.addf %6, %8 : vector<64x128xf32>
    %10 = vector.shape_cast %9 : vector<64x128xf32> to vector<8x8x128xf32>
    %11 = arith.truncf %10 : vector<8x8x128xf32> to vector<8x8x128xbf16>
    %c0_6 = arith.constant 0 : index
    %c0_7 = arith.constant 0 : index
    %c0_8 = arith.constant 0 : index
    %c0_9 = arith.constant 0 : index
    %12 = vector.load %arg6[%c0_6, %c0_7, %c0_8, %c0_9] : memref<1x8x8x128xbf16, #tpu.memory_space<vmem>>, vector<1x8x8x128xbf16>
    %13 = vector.shape_cast %12 : vector<1x8x8x128xbf16> to vector<8x8x128xbf16>
    %14 = vector.shape_cast %11 : vector<8x8x128xbf16> to vector<1x8x8x128xbf16>
    tpu.vector_store %arg6[%c0_6, %c0_7, %c0_8, %c0_9], %14 {strides = array<i32>} : memref<1x8x8x128xbf16, #tpu.memory_space<vmem>>, vector<1x8x8x128xbf16>,
    return
  }
  func.func @transform_0(%arg0: i32, %arg1: i32, %arg2: i32) -> (i32, i32, i32, i32) {
    %c4_i32 = arith.constant 4 : i32
    %0 = arith.muli %c4_i32, %arg0 : i32
    %c3_i32 = arith.constant 3 : i32
    %1 = arith.addi %0, %c3_i32 : i32
    %c0_i32 = arith.constant 0 : i32
    %c0_i32_0 = arith.constant 0 : i32
    %c0_i32_1 = arith.constant 0 : i32
    %c0_i32_2 = arith.constant 0 : i32
    return %1, %c0_i32, %c0_i32_0, %c0_i32_1 : i32, i32, i32, i32
  }
  func.func @transform_1(%arg0: i32, %arg1: i32, %arg2: i32) -> (i32, i32) {
    %c0_i32 = arith.constant 0 : i32
    %c0_i32_0 = arith.constant 0 : i32
    return %c0_i32, %arg1 : i32, i32
  }
  func.func @transform_2(%arg0: i32, %arg1: i32, %arg2: i32) -> (i32, i32) {
    %c0_i32 = arith.constant 0 : i32
    %c0_i32_0 = arith.constant 0 : i32
    return %c0_i32, %arg1 : i32, i32
  }
  func.func @transform_3(%arg0: i32, %arg1: i32, %arg2: i32) -> (i32, i32, i32, i32) {
    %c0_i32 = arith.constant 0 : i32
    %c0_i32_0 = arith.constant 0 : i32
    return %arg0, %arg2, %c0_i32, %arg1 : i32, i32, i32, i32
  }
}

module attributes {stable_mosaic.version = 11 : i64} {
  func.func @_conv_bn_act_kernel(%arg0: i32, %arg1: i32, %arg2: i32, %arg3: memref<1x10x10x128xbf16, #tpu.memory_space<vmem>>, %arg4: memref<1152x128xbf16, #tpu.memory_space<vmem>>, %arg5: memref<1x128xf32, #tpu.memory_space<vmem>>, %arg6: memref<1x8x8x128xbf16, #tpu.memory_space<vmem>>, %arg7: memref<1x8x8x128xbf16, #tpu.memory_space<vmem>>, %arg8: memref<64x1152xbf16, #tpu.memory_space<vmem>>) attributes {dimension_semantics = [#tpu.dimension_semantics<parallel>, #tpu.dimension_semantics<parallel>, #tpu.dimension_semantics<parallel>], iteration_bounds = array<i64: 2, 1, 1>, scalar_prefetch = 0 : i64, scratch_operands = 1 : i64, tpu.core_type = #tpu.core_type<tc>, window_params = [{transform_indices = @transform_0, window_bounds = array<i64: 1, 10, 10, 128>}, {transform_indices = @transform_1, window_bounds = array<i64: 1152, 128>}, {transform_indices = @transform_2, window_bounds = array<i64: 1, 128>}, {transform_indices = @transform_3, window_bounds = array<i64: 1, 8, 8, 128>}, {transform_indices = @transform_4, window_bounds = array<i64: 1, 8, 8, 128>}]} {
    %c8_i32 = arith.constant 8 : i32
    %0 = arith.muli %arg2, %c8_i32 : i32
    %c0_i32 = arith.constant 0 : i32
    %1 = arith.addi %0, %c0_i32 : i32
    %c0 = arith.constant 0 : index
    %2 = arith.index_cast %1 : i32 to index
    %c0_0 = arith.constant 0 : index
    %c0_1 = arith.constant 0 : index
    %3 = vector.load %arg3[%c0, %2, %c0_0, %c0_1] : memref<1x10x10x128xbf16, #tpu.memory_space<vmem>>, vector<1x8x8x128xbf16>
    %4 = vector.shape_cast %3 : vector<1x8x8x128xbf16> to vector<8x8x128xbf16>
    %5 = vector.shape_cast %4 : vector<8x8x128xbf16> to vector<64x128xbf16>
    %c0_2 = arith.constant 0 : index
    %c0_3 = arith.constant 0 : index
    %6 = vector.load %arg8[%c0_2, %c0_3] : memref<64x1152xbf16, #tpu.memory_space<vmem>>, vector<64x128xbf16>
    tpu.vector_store %arg8[%c0_2, %c0_3], %5 {strides = array<i32>} : memref<64x1152xbf16, #tpu.memory_space<vmem>>, vector<64x128xbf16>,
    %c0_i32_4 = arith.constant 0 : i32
    %7 = arith.addi %0, %c0_i32_4 : i32
    %c0_5 = arith.constant 0 : index
    %8 = arith.index_cast %7 : i32 to index
    %c1 = arith.constant 1 : index
    %c0_6 = arith.constant 0 : index
    %9 = vector.load %arg3[%c0_5, %8, %c1, %c0_6] : memref<1x10x10x128xbf16, #tpu.memory_space<vmem>>, vector<1x8x8x128xbf16>
    %10 = vector.shape_cast %9 : vector<1x8x8x128xbf16> to vector<8x8x128xbf16>
    %11 = vector.shape_cast %10 : vector<8x8x128xbf16> to vector<64x128xbf16>
    %c0_7 = arith.constant 0 : index
    %c128 = arith.constant 128 : index
    %12 = vector.load %arg8[%c0_7, %c128] : memref<64x1152xbf16, #tpu.memory_space<vmem>>, vector<64x128xbf16>
    tpu.vector_store %arg8[%c0_7, %c128], %11 {strides = array<i32>} : memref<64x1152xbf16, #tpu.memory_space<vmem>>, vector<64x128xbf16>,
    %c0_i32_8 = arith.constant 0 : i32
    %13 = arith.addi %0, %c0_i32_8 : i32
    %c0_9 = arith.constant 0 : index
    %14 = arith.index_cast %13 : i32 to index
    %c2 = arith.constant 2 : index
    %c0_10 = arith.constant 0 : index
    %15 = vector.load %arg3[%c0_9, %14, %c2, %c0_10] : memref<1x10x10x128xbf16, #tpu.memory_space<vmem>>, vector<1x8x8x128xbf16>
    %16 = vector.shape_cast %15 : vector<1x8x8x128xbf16> to vector<8x8x128xbf16>
    %17 = vector.shape_cast %16 : vector<8x8x128xbf16> to vector<64x128xbf16>
    %c0_11 = arith.constant 0 : index
    %c256 = arith.constant 256 : index
    %18 = vector.load %arg8[%c0_11, %c256] : memref<64x1152xbf16, #tpu.memory_space<vmem>>, vector<64x128xbf16>
    tpu.vector_store %arg8[%c0_11, %c256], %17 {strides = array<i32>} : memref<64x1152xbf16, #tpu.memory_space<vmem>>, vector<64x128xbf16>,
    %c1_i32 = arith.constant 1 : i32
    %19 = arith.addi %0, %c1_i32 : i32
    %c0_12 = arith.constant 0 : index
    %20 = arith.index_cast %19 : i32 to index
    %c0_13 = arith.constant 0 : index
    %c0_14 = arith.constant 0 : index
    %21 = vector.load %arg3[%c0_12, %20, %c0_13, %c0_14] : memref<1x10x10x128xbf16, #tpu.memory_space<vmem>>, vector<1x8x8x128xbf16>
    %22 = vector.shape_cast %21 : vector<1x8x8x128xbf16> to vector<8x8x128xbf16>
    %23 = vector.shape_cast %22 : vector<8x8x128xbf16> to vector<64x128xbf16>
    %c0_15 = arith.constant 0 : index
    %c384 = arith.constant 384 : index
    %24 = vector.load %arg8[%c0_15, %c384] : memref<64x1152xbf16, #tpu.memory_space<vmem>>, vector<64x128xbf16>
    tpu.vector_store %arg8[%c0_15, %c384], %23 {strides = array<i32>} : memref<64x1152xbf16, #tpu.memory_space<vmem>>, vector<64x128xbf16>,
    %c1_i32_16 = arith.constant 1 : i32
    %25 = arith.addi %0, %c1_i32_16 : i32
    %c0_17 = arith.constant 0 : index
    %26 = arith.index_cast %25 : i32 to index
    %c1_18 = arith.constant 1 : index
    %c0_19 = arith.constant 0 : index
    %27 = vector.load %arg3[%c0_17, %26, %c1_18, %c0_19] : memref<1x10x10x128xbf16, #tpu.memory_space<vmem>>, vector<1x8x8x128xbf16>
    %28 = vector.shape_cast %27 : vector<1x8x8x128xbf16> to vector<8x8x128xbf16>
    %29 = vector.shape_cast %28 : vector<8x8x128xbf16> to vector<64x128xbf16>
    %c0_20 = arith.constant 0 : index
    %c512 = arith.constant 512 : index
    %30 = vector.load %arg8[%c0_20, %c512] : memref<64x1152xbf16, #tpu.memory_space<vmem>>, vector<64x128xbf16>
    tpu.vector_store %arg8[%c0_20, %c512], %29 {strides = array<i32>} : memref<64x1152xbf16, #tpu.memory_space<vmem>>, vector<64x128xbf16>,
    %c1_i32_21 = arith.constant 1 : i32
    %31 = arith.addi %0, %c1_i32_21 : i32
    %c0_22 = arith.constant 0 : index
    %32 = arith.index_cast %31 : i32 to index
    %c2_23 = arith.constant 2 : index
    %c0_24 = arith.constant 0 : index
    %33 = vector.load %arg3[%c0_22, %32, %c2_23, %c0_24] : memref<1x10x10x128xbf16, #tpu.memory_space<vmem>>, vector<1x8x8x128xbf16>
    %34 = vector.shape_cast %33 : vector<1x8x8x128xbf16> to vector<8x8x128xbf16>
    %35 = vector.shape_cast %34 : vector<8x8x128xbf16> to vector<64x128xbf16>
    %c0_25 = arith.constant 0 : index
    %c640 = arith.constant 640 : index
    %36 = vector.load %arg8[%c0_25, %c640] : memref<64x1152xbf16, #tpu.memory_space<vmem>>, vector<64x128xbf16>
    tpu.vector_store %arg8[%c0_25, %c640], %35 {strides = array<i32>} : memref<64x1152xbf16, #tpu.memory_space<vmem>>, vector<64x128xbf16>,
    %c2_i32 = arith.constant 2 : i32
    %37 = arith.addi %0, %c2_i32 : i32
    %c0_26 = arith.constant 0 : index
    %38 = arith.index_cast %37 : i32 to index
    %c0_27 = arith.constant 0 : index
    %c0_28 = arith.constant 0 : index
    %39 = vector.load %arg3[%c0_26, %38, %c0_27, %c0_28] : memref<1x10x10x128xbf16, #tpu.memory_space<vmem>>, vector<1x8x8x128xbf16>
    %40 = vector.shape_cast %39 : vector<1x8x8x128xbf16> to vector<8x8x128xbf16>
    %41 = vector.shape_cast %40 : vector<8x8x128xbf16> to vector<64x128xbf16>
    %c0_29 = arith.constant 0 : index
    %c768 = arith.constant 768 : index
    %42 = vector.load %arg8[%c0_29, %c768] : memref<64x1152xbf16, #tpu.memory_space<vmem>>, vector<64x128xbf16>
    tpu.vector_store %arg8[%c0_29, %c768], %41 {strides = array<i32>} : memref<64x1152xbf16, #tpu.memory_space<vmem>>, vector<64x128xbf16>,
    %c2_i32_30 = arith.constant 2 : i32
    %43 = arith.addi %0, %c2_i32_30 : i32
    %c0_31 = arith.constant 0 : index
    %44 = arith.index_cast %43 : i32 to index
    %c1_32 = arith.constant 1 : index
    %c0_33 = arith.constant 0 : index
    %45 = vector.load %arg3[%c0_31, %44, %c1_32, %c0_33] : memref<1x10x10x128xbf16, #tpu.memory_space<vmem>>, vector<1x8x8x128xbf16>
    %46 = vector.shape_cast %45 : vector<1x8x8x128xbf16> to vector<8x8x128xbf16>
    %47 = vector.shape_cast %46 : vector<8x8x128xbf16> to vector<64x128xbf16>
    %c0_34 = arith.constant 0 : index
    %c896 = arith.constant 896 : index
    %48 = vector.load %arg8[%c0_34, %c896] : memref<64x1152xbf16, #tpu.memory_space<vmem>>, vector<64x128xbf16>
    tpu.vector_store %arg8[%c0_34, %c896], %47 {strides = array<i32>} : memref<64x1152xbf16, #tpu.memory_space<vmem>>, vector<64x128xbf16>,
    %c2_i32_35 = arith.constant 2 : i32
    %49 = arith.addi %0, %c2_i32_35 : i32
    %c0_36 = arith.constant 0 : index
    %50 = arith.index_cast %49 : i32 to index
    %c2_37 = arith.constant 2 : index
    %c0_38 = arith.constant 0 : index
    %51 = vector.load %arg3[%c0_36, %50, %c2_37, %c0_38] : memref<1x10x10x128xbf16, #tpu.memory_space<vmem>>, vector<1x8x8x128xbf16>
    %52 = vector.shape_cast %51 : vector<1x8x8x128xbf16> to vector<8x8x128xbf16>
    %53 = vector.shape_cast %52 : vector<8x8x128xbf16> to vector<64x128xbf16>
    %c0_39 = arith.constant 0 : index
    %c1024 = arith.constant 1024 : index
    %54 = vector.load %arg8[%c0_39, %c1024] : memref<64x1152xbf16, #tpu.memory_space<vmem>>, vector<64x128xbf16>
    tpu.vector_store %arg8[%c0_39, %c1024], %53 {strides = array<i32>} : memref<64x1152xbf16, #tpu.memory_space<vmem>>, vector<64x128xbf16>,
    %c0_40 = arith.constant 0 : index
    %c0_41 = arith.constant 0 : index
    %55 = vector.load %arg8[%c0_40, %c0_41] : memref<64x1152xbf16, #tpu.memory_space<vmem>>, vector<64x1152xbf16>
    %c0_42 = arith.constant 0 : index
    %c0_43 = arith.constant 0 : index
    %56 = vector.load %arg4[%c0_42, %c0_43] : memref<1152x128xbf16, #tpu.memory_space<vmem>>, vector<1152x128xbf16>
    %cst = arith.constant dense<0.000000e+00> : vector<64x128xf32>
    %57 = tpu.matmul %55, %56, %cst {dimension_numbers = #tpu.dot_dimension_numbers<[1], [0], [0], [1], [0, 0, 1, 1], [], []>} : vector<64x1152xbf16>, vector<1152x128xbf16>, vector<64x128xf32> -> vector<64x128xf32>
    %c0_44 = arith.constant 0 : index
    %c0_45 = arith.constant 0 : index
    %58 = vector.load %arg5[%c0_44, %c0_45] : memref<1x128xf32, #tpu.memory_space<vmem>>, vector<1x128xf32>
    %59 = vector.broadcast %58 : vector<1x128xf32> to vector<64x128xf32>
    %60 = arith.addf %57, %59 : vector<64x128xf32>
    %c0_46 = arith.constant 0 : index
    %c0_47 = arith.constant 0 : index
    %c0_48 = arith.constant 0 : index
    %c0_49 = arith.constant 0 : index
    %61 = vector.load %arg6[%c0_46, %c0_47, %c0_48, %c0_49] : memref<1x8x8x128xbf16, #tpu.memory_space<vmem>>, vector<1x8x8x128xbf16>
    %62 = vector.shape_cast %61 : vector<1x8x8x128xbf16> to vector<8x8x128xbf16>
    %63 = vector.shape_cast %62 : vector<8x8x128xbf16> to vector<64x128xbf16>
    %64 = arith.extf %63 : vector<64x128xbf16> to vector<64x128xf32>
    %65 = arith.addf %60, %64 : vector<64x128xf32>
    %cst_50 = arith.constant 0.000000e+00 : f32
    %66 = vector.broadcast %cst_50 : f32 to vector<64x128xf32>
    %67 = arith.maximumf %65, %66 : vector<64x128xf32>
    %68 = vector.shape_cast %67 : vector<64x128xf32> to vector<8x8x128xf32>
    %69 = arith.truncf %68 : vector<8x8x128xf32> to vector<8x8x128xbf16>
    %c0_51 = arith.constant 0 : index
    %c0_52 = arith.constant 0 : index
    %c0_53 = arith.constant 0 : index
    %c0_54 = arith.constant 0 : index
    %70 = vector.load %arg7[%c0_51, %c0_52, %c0_53, %c0_54] : memref<1x8x8x128xbf16, #tpu.memory_space<vmem>>, vector<1x8x8x128xbf16>
    %71 = vector.shape_cast %70 : vector<1x8x8x128xbf16> to vector<8x8x128xbf16>
    %72 = vector.shape_cast %69 : vector<8x8x128xbf16> to vector<1x8x8x128xbf16>
    tpu.vector_store %arg7[%c0_51, %c0_52, %c0_53, %c0_54], %72 {strides = array<i32>} : memref<1x8x8x128xbf16, #tpu.memory_space<vmem>>, vector<1x8x8x128xbf16>,
    return
  }
  func.func @transform_0(%arg0: i32, %arg1: i32, %arg2: i32) -> (i32, i32, i32, i32) {
    %c0_i32 = arith.constant 0 : i32
    %c0_i32_0 = arith.constant 0 : i32
    %c0_i32_1 = arith.constant 0 : i32
    %c0_i32_2 = arith.constant 0 : i32
    return %arg0, %c0_i32, %c0_i32_0, %c0_i32_1 : i32, i32, i32, i32
  }
  func.func @transform_1(%arg0: i32, %arg1: i32, %arg2: i32) -> (i32, i32) {
    %c0_i32 = arith.constant 0 : i32
    %c0_i32_0 = arith.constant 0 : i32
    return %c0_i32, %arg1 : i32, i32
  }
  func.func @transform_2(%arg0: i32, %arg1: i32, %arg2: i32) -> (i32, i32) {
    %c0_i32 = arith.constant 0 : i32
    %c0_i32_0 = arith.constant 0 : i32
    return %c0_i32, %arg1 : i32, i32
  }
  func.func @transform_3(%arg0: i32, %arg1: i32, %arg2: i32) -> (i32, i32, i32, i32) {
    %c0_i32 = arith.constant 0 : i32
    %c0_i32_0 = arith.constant 0 : i32
    return %arg0, %arg2, %c0_i32, %arg1 : i32, i32, i32, i32
  }
  func.func @transform_4(%arg0: i32, %arg1: i32, %arg2: i32) -> (i32, i32, i32, i32) {
    %c0_i32 = arith.constant 0 : i32
    %c0_i32_0 = arith.constant 0 : i32
    return %arg0, %arg2, %c0_i32, %arg1 : i32, i32, i32, i32
  }
}

</mosaic_0001>

<llo_original>
// kernel: basic_block_forward.4
$region0: #{basic_block_forward.4}
  #allocation0 [shape = 'u32[]', space=smem, size = 0x4, offset = 0x4, fixed_abs, tag = 'smem constant byte address 0x4 - core index']
  #allocation1 [shape = 'u32[144,128]{1,0:T(1,128)}', space=vmem, size = 0x12000, scoped, tag = 'internal scratch']
  #allocation2 [shape = 'bf16[64,128]{1,0:T(16,128)(2,1)}', space=vmem, size = 0x4000, scoped, tag = 'scratch operand']
  %s0 = inlined_call_operand.vmem [shape: bf16[8,9,9,128], index: 0, kind: input, shape index: {}]
  %s1 = inlined_call_operand.vmem [shape: bf16[128,128], index: 1, kind: input, shape index: {}]
  %s2 = inlined_call_operand.vmem [shape: f32[1,128], index: 2, kind: input, shape index: {}]
  %s3 = inlined_call_operand.vmem [shape: bf16[2,8,8,128], index: 3, kind: output, shape index: {}]
  %s4 = sld [smem:[#allocation0]]
  $region45: #{basic_block_forward.4} parent=0
    _
  %s6 = ssub.s32 1, %s4
  %s7 = scalar_select 0, %s6, %s4
  loop: start=0, step=1, limit=4
  $region2: #{basic_block_forward.4} parent=0 // loop_pre_header
    _
  $region3: #{basic_block_forward.4} parent=0 // loop_header
    %s9 = sphi 0, %s13
    %p10 = scmp.ge.s32.totalorder %s9, 4
    %s16 = sphi 0, %s35
    %s17 = sphi 0, %s31
    %s18 = sphi 0, %s27
    %s19 = sphi 0, %s16
    %s20 = sphi 0, %s17
    %s21 = sphi 0, %s18
    %s22 = sphi 0, %s19
    %s23 = sphi 0, %s20
    %s24 = sphi 0, %s21
    %s42 = sphi 0, %s44
    %s45 = sphi 0, %s42
    %s46 = sphi 0, %s45
    %s62 = sphi 0, %s46
    %s68 = sphi 0, %s70
    %s71 = sphi 0, %s68
    %s72 = sphi 0, %s71
    %s88 = sphi 0, %s72
    %s94 = sphi 0, %s96
    %s97 = sphi 0, %s94
    %s98 = sphi 0, %s97
    %s114 = sphi 0, %s98
    %s124 = sphi 0, %s126
    %s127 = sphi 0, %s124
    %s128 = sphi 0, %s127
    %s144 = sphi 0, %s128
  $region4: #{basic_block_forward.4} parent=0 // loop_header_branch
    %12 = sbr.rel (%p10) target = $region8
  $region5: #{basic_block_forward.4} parent=0 // loop_body
    %s14 = ssub.s32 %s9, 1
    %s15 = ssub.s32 %s9, 2
    %s25 = sadd.s32 1, %s18
    %p26 = scmp.ge.s32.totalorder %s25, 1
    %s27 = scalar_select %p26, 0, %s25
    %s28 = sadd.s32 1, %s17
    %s29 = scalar_select %p26, %s28, %s17
    %p30 = scmp.ge.s32.totalorder %s29, 1
    %s31 = scalar_select %p30, 0, %s29
    %s32 = sadd.s32 1, %s16
    %s33 = scalar_select %p30, %s32, %s16
    %p34 = scmp.ge.s32.totalorder %s33, 2
    %s35 = scalar_select %p34, 0, %s33
    %s36 = smul.u32 %s16, 4
    %s37 = sadd.s32 %s36, 3
    %s38 = smul.u32 %s35, 4
    %s39 = sadd.s32 %s38, 3
    %s40 = ssub.s32 %s37, %s39
    %p41 = scmp.eq.s32.totalorder %s40, 0
    %s43 = sadd.s32 %s42, 1
    %s44 = scalar_select %p41, %s42, %s43
    %p47 = pneg %p41
    %p48 = scmp.eq.s32.totalorder %s9, 1
    %p49 = por %p47, %p48
    %p50 = scmp.ne.s32.totalorder %s42, %s45
    %p51 = scmp.eq.s32.totalorder %s9, 0
    %p52 = por %p50, %p51
    %p53 = scmp.ne.s32.totalorder %s42, %s45
    %p54 = scmp.eq.s32.totalorder %s14, 1
    %p55 = por %p53, %p54
    %p56 = scmp.ne.s32.totalorder %s45, %s46
    %p57 = scmp.eq.s32.totalorder %s14, 0
    %p58 = por %p56, %p57
    %p59 = scmp.ne.s32.totalorder %s45, %s46
    %p60 = scmp.eq.s32.totalorder %s15, 1
    %p61 = por %p59, %p60
    %p63 = scmp.ne.s32.totalorder %s46, %s62
    %p64 = scmp.eq.s32.totalorder %s15, 0
    %p65 = por %p63, %p64
    %s66 = ssub.s32 %s17, %s31
    %p67 = scmp.eq.s32.totalorder %s66, 0
    %s69 = sadd.s32 %s68, 1
    %s70 = scalar_select %p67, %s68, %s69
    %p73 = pneg %p67
    %p74 = scmp.eq.s32.totalorder %s9, 1
    %p75 = por %p73, %p74
    %p76 = scmp.ne.s32.totalorder %s68, %s71
    %p77 = scmp.eq.s32.totalorder %s9, 0
    %p78 = por %p76, %p77
    %p79 = scmp.ne.s32.totalorder %s68, %s71
    %p80 = scmp.eq.s32.totalorder %s14, 1
    %p81 = por %p79, %p80
    %p82 = scmp.ne.s32.totalorder %s71, %s72
    %p83 = scmp.eq.s32.totalorder %s14, 0
    %p84 = por %p82, %p83
    %p85 = scmp.ne.s32.totalorder %s71, %s72
    %p86 = scmp.eq.s32.totalorder %s15, 1
    %p87 = por %p85, %p86
    %p89 = scmp.ne.s32.totalorder %s72, %s88
    %p90 = scmp.eq.s32.totalorder %s15, 0
    %p91 = por %p89, %p90
    %s92 = ssub.s32 %s17, %s31
    %p93 = scmp.eq.s32.totalorder %s92, 0
    %s95 = sadd.s32 %s94, 1
    %s96 = scalar_select %p93, %s94, %s95
    %p99 = pneg %p93
    %p100 = scmp.eq.s32.totalorder %s9, 1
    %p101 = por %p99, %p100
    %p102 = scmp.ne.s32.totalorder %s94, %s97
    %p103 = scmp.eq.s32.totalorder %s9, 0
    %p104 = por %p102, %p103
    %p105 = scmp.ne.s32.totalorder %s94, %s97
    %p106 = scmp.eq.s32.totalorder %s14, 1
    %p107 = por %p105, %p106
    %p108 = scmp.ne.s32.totalorder %s97, %s98
    %p109 = scmp.eq.s32.totalorder %s14, 0
    %p110 = por %p108, %p109
    %p111 = scmp.ne.s32.totalorder %s97, %s98
    %p112 = scmp.eq.s32.totalorder %s15, 1
    %p113 = por %p111, %p112
    %p115 = scmp.ne.s32.totalorder %s98, %s114
    %p116 = scmp.eq.s32.totalorder %s15, 0
    %p117 = por %p115, %p116
    %s118 = ssub.s32 %s16, %s35
    %s119 = ssub.s32 %s18, %s27
    %s120 = sor.u32 %s118, %s119
    %s121 = ssub.s32 %s17, %s31
    %s122 = sor.u32 %s120, %s121
    %p123 = scmp.eq.s32.totalorder %s122, 0
    %s125 = sadd.s32 %s124, 1
    %s126 = scalar_select %p123, %s124, %s125
    %p129 = pneg %p123
    %p130 = scmp.eq.s32.totalorder %s9, 1
    %p131 = por %p129, %p130
    %p132 = scmp.ne.s32.totalorder %s124, %s127
    %p133 = scmp.eq.s32.totalorder %s9, 0
    %p134 = por %p132, %p133
    %p135 = scmp.ne.s32.totalorder %s124, %s127
    %p136 = scmp.eq.s32.totalorder %s14, 1
    %p137 = por %p135, %p136
    %p138 = scmp.ne.s32.totalorder %s127, %s128
    %p139 = scmp.eq.s32.totalorder %s14, 0
    %p140 = por %p138, %p139
    %p141 = scmp.ne.s32.totalorder %s127, %s128
    %p142 = scmp.eq.s32.totalorder %s15, 1
    %p143 = por %p141, %p142
    %p145 = scmp.ne.s32.totalorder %s128, %s144
    %p146 = scmp.eq.s32.totalorder %s15, 0
    %p147 = por %p145, %p146
    %p148 = scmp.le.s32.totalorder 1, %s9
    %p149 = scmp.lt.s32.totalorder %s9, 3
    %p150 = pnand %p148, %p149
    %p151 = pneg %p150
    // Predicated region
    $region9: #{basic_block_forward.4} parent=5 // pred_check
      _
    $region10: #{basic_block_forward.4} parent=5 // pred_check_branch
      %153 = sbr.rel (%p150) target = $region12
    $region11: #{basic_block_forward.4} parent=5 // pred_region
      %s154 = ssub.s32 %s9, 1
      // Predicated region
      $region13: #{basic_block_forward.4} parent=11 // pred_check
        %p155 = pneg %p84
      $region14: #{basic_block_forward.4} parent=11 // pred_check_branch
        %157 = sbr.rel (%p155) target = $region16
      $region15: #{basic_block_forward.4} parent=11 // pred_region
        %p158 = scmp.lt.s32.totalorder %s20, 0
        %s159 = scalar_select %p158, %s20, 0
        %s160 = smul.addr %s159, 4
        %s161 = scalar_lea.vmem %s1, %s160
      $region16: #{basic_block_forward.4} parent=11 // pred_fallthru
        _
      // Predicated region
      $region17: #{basic_block_forward.4} parent=11 // pred_check
        %p162 = pneg %p110
      $region18: #{basic_block_forward.4} parent=11 // pred_check_branch
        %164 = sbr.rel (%p162) target = $region20
      $region19: #{basic_block_forward.4} parent=11 // pred_region
        %p165 = scmp.lt.s32.totalorder %s20, 0
        %s166 = scalar_select %p165, %s20, 0
        %s167 = scalar_lea.vmem %s2, %s166
      $region20: #{basic_block_forward.4} parent=11 // pred_fallthru
        _
    $region12: #{basic_block_forward.4} parent=5 // pred_fallthru
      _
    %p168 = scmp.lt.s32.totalorder %s9, 2
    // Predicated region
    $region21: #{basic_block_forward.4} parent=5 // pred_check
      %p169 = pneg %p168
    $region22: #{basic_block_forward.4} parent=5 // pred_check_branch
      %171 = sbr.rel (%p169) target = $region24
    $region23: #{basic_block_forward.4} parent=5 // pred_region
      // Predicated region
      $region25: #{basic_block_forward.4} parent=23 // pred_check
        %p172 = pneg %p52
      $region26: #{basic_block_forward.4} parent=23 // pred_check_branch
        %174 = sbr.rel (%p172) target = $region28
      $region27: #{basic_block_forward.4} parent=23 // pred_region
        %s175 = smul.u32 %s16, 4
        %s176 = sadd.s32 %s175, 3
        %p177 = scmp.lt.s32.totalorder %s176, 7
        %s178 = scalar_select %p177, %s176, 7
        %s179 = smul.addr %s178, 18
        %s180 = smul.addr %s179, 4
        %s181 = scalar_lea.vmem %s0, %s180
        %s182 = smul.u32 %s16, 4
        %s183 = sadd.s32 %s182, 3
      $region28: #{basic_block_forward.4} parent=23 // pred_fallthru
        _
    $region24: #{basic_block_forward.4} parent=5 // pred_fallthru
      _
    %p184 = scmp.le.s32.totalorder 1, %s9
    %p185 = scmp.lt.s32.totalorder %s9, 3
    %p186 = pnand %p184, %p185
    %p187 = pneg %p186
    // Predicated region
    $region29: #{basic_block_forward.4} parent=5 // pred_check
      _
    $region30: #{basic_block_forward.4} parent=5 // pred_check_branch
      %189 = sbr.rel (%p186) target = $region32
    $region31: #{basic_block_forward.4} parent=5 // pred_region
      %s190 = ssub.s32 %s9, 1
      %s191 = smul.u32 %s19, 4
      %s192 = sadd.s32 %s191, 3
      %p193 = scmp.lt.s32.totalorder %s192, 7
      %s194 = scalar_select %p193, %s192, 7
      %s195 = smul.addr %s194, 18
      %s196 = smul.addr %s195, 4
      %s197 = scalar_lea.vmem %s0, %s196
      %p198 = pneg %p58
      %p199 = pneg %p55
      %p200 = scmp.lt.s32.totalorder %s20, 0
      %s201 = scalar_select %p200, %s20, 0
      %s202 = smul.addr %s201, 4
      %s203 = scalar_lea.vmem %s1, %s202
      %p204 = pneg %p84
      %p205 = pneg %p81
      %p206 = scmp.lt.s32.totalorder %s20, 0
      %s207 = scalar_select %p206, %s20, 0
      %s208 = scalar_lea.vmem %s2, %s207
      %p209 = pneg %p110
      %p210 = pneg %p107
      %p211 = pneg %p140
      %p212 = pneg %p137
      %s213 = smul.u32 8, %s21
      %p214 = scmp.lt.s32.totalorder %s19, 1
      %s215 = scalar_select %p214, %s19, 1
      %p216 = scmp.lt.s32.totalorder %s213, 7
      %s217 = scalar_select %p216, %s213, 7
      %p218 = scmp.lt.s32.totalorder %s20, 0
      %s219 = scalar_select %p218, %s20, 0
      %s220 = sadd.s32 %s219, %s217
      %s221 = smul.addr %s215, 8
      %s222 = sadd.s32 %s220, %s221
      %s223 = smul.addr %s222, 4
      %s224 = scalar_lea.vmem %s3, %s223
      %s225 = smul.u32 %s19, 4
      %s226 = sadd.s32 %s225, 3
      %p227 = scmp.lt.s32.totalorder %s226, 7
      %s228 = scalar_select %p227, %s226, 7
      %s229 = smul.addr %s228, 18
      %s230 = smul.addr %s229, 4
      %s231 = scalar_lea.vmem %s0, %s230
      %s232 = smul.u32 %s19, 4
      %s233 = sadd.s32 %s232, 3
      %p234 = scmp.lt.s32.totalorder %s20, 0
      %s235 = scalar_select %p234, %s20, 0
      %s236 = smul.addr %s235, 4
      %s237 = scalar_lea.vmem %s1, %s236
      %p238 = scmp.lt.s32.totalorder %s20, 0
      %s239 = scalar_select %p238, %s20, 0
      %s240 = scalar_lea.vmem %s2, %s239
      %s241 = smul.u32 8, %s21
      %p242 = scmp.lt.s32.totalorder %s19, 1
      %s243 = scalar_select %p242, %s19, 1
      %p244 = scmp.lt.s32.totalorder %s241, 7
      %s245 = scalar_select %p244, %s241, 7
      %p246 = scmp.lt.s32.totalorder %s20, 0
      %s247 = scalar_select %p246, %s20, 0
      %s248 = sadd.s32 %s247, %s245
      %s249 = smul.addr %s243, 8
      %s250 = sadd.s32 %s248, %s249
      %s251 = smul.addr %s250, 4
      %s252 = scalar_lea.vmem %s3, %s251
      %s253 = smul.u32 8, %s21
      %s255 = smul.u32 %s21, 8
      %s256 = smul.u32 %s255, 2
      %s257 = smul.addr %s256, 4
      %s258 = scalar_lea.vmem %s231, %s257
      %v259 = vld [vmem:[%s258] sm:$0xf]
      %v260 = vld [vmem:[%s258 + $0x8] sm:$0xf]
      %v261 = vld [vmem:[%s258 + $0x10] sm:$0xf]
      %v262 = vld [vmem:[%s258 + $0x18] sm:$0xf]
      %v263 = vld [vmem:[%s258 + $0x20] sm:$0xf]
      %v264 = vld [vmem:[%s258 + $0x28] sm:$0xf]
      %v265 = vld [vmem:[%s258 + $0x30] sm:$0xf]
      %v266 = vld [vmem:[%s258 + $0x38] sm:$0xf]
      %v267 = vld [vmem:[%s237] sm:$0xf]
      %v268 = vld [vmem:[%s237 + $0x4] sm:$0xf]
      %v269 = vld [vmem:[%s237 + $0x8] sm:$0xf]
      %v270 = vld [vmem:[%s237 + $0xc] sm:$0xf]
      %v271 = vld [vmem:[%s237 + $0x10] sm:$0xf]
      %v272 = vld [vmem:[%s237 + $0x14] sm:$0xf]
      %v273 = vld [vmem:[%s237 + $0x18] sm:$0xf]
      %v274 = vld [vmem:[%s237 + $0x1c] sm:$0xf]
      %v275 = vld [vmem:[%s237 + $0x20] sm:$0xf]
      %v276 = vld [vmem:[%s237 + $0x24] sm:$0xf]
      %v277 = vld [vmem:[%s237 + $0x28] sm:$0xf]
      %v278 = vld [vmem:[%s237 + $0x2c] sm:$0xf]
      %v279 = vld [vmem:[%s237 + $0x30] sm:$0xf]
      %v280 = vld [vmem:[%s237 + $0x34] sm:$0xf]
      %v281 = vld [vmem:[%s237 + $0x38] sm:$0xf]
      %v282 = vld [vmem:[%s237 + $0x3c] sm:$0xf]
      %v283 = vld [vmem:[%s240] sm:$0x1]
      %v285 = vlaneseq
      %v286 = vshrl.u32 %v285, 7
      %v287 = vsub.s32 0, %v286
      %v288 = vrot.slane %v283, %v287
      %v298 = vunpack.c.l.b16 %v259
      %v299 = vunpack.c.l.b16 %v260
      %v300 = vunpack.c.l.b16 %v261
      %v301 = vunpack.c.l.b16 %v262
      %v302 = vunpack.c.l.b16 %v263
      %v303 = vunpack.c.l.b16 %v264
      %v304 = vunpack.c.l.b16 %v265
      %v305 = vunpack.c.l.b16 %v266
      %v306 = vpack.c.b16 %v299, %v298
      %v307 = vpack.c.b16 %v301, %v300
      %v308 = vpack.c.b16 %v303, %v302
      %v309 = vpack.c.b16 %v305, %v304
      %v330 = vunpack.c.l.b16 %v267
      %v331 = vunpack.c.l.b16 %v268
      %v332 = vunpack.c.l.b16 %v269
      %v333 = vunpack.c.l.b16 %v270
      %v334 = vunpack.c.l.b16 %v271
      %v335 = vunpack.c.l.b16 %v272
      %v336 = vunpack.c.l.b16 %v273
      %v337 = vunpack.c.l.b16 %v274
      %v338 = vunpack.c.l.b16 %v275
      %v339 = vunpack.c.l.b16 %v276
      %v340 = vunpack.c.l.b16 %v277
      %v341 = vunpack.c.l.b16 %v278
      %v342 = vunpack.c.l.b16 %v279
      %v343 = vunpack.c.l.b16 %v280
      %v344 = vunpack.c.l.b16 %v281
      %v345 = vunpack.c.l.b16 %v282
      %v346 = vpack.c.b16 %v331, %v330
      %v347 = vpack.c.b16 %v333, %v332
      %v348 = vpack.c.b16 %v335, %v334
      %v349 = vpack.c.b16 %v337, %v336
      %v350 = vpack.c.b16 %v339, %v338
      %v351 = vpack.c.b16 %v341, %v340
      %v352 = vpack.c.b16 %v343, %v342
      %v353 = vpack.c.b16 %v345, %v344
      %362 = vmatprep.subr.bf16.mxu0 0
      %363 = vmatpush1.bf16.msra.mxu0 %v346
      %364 = vmatprep.subr.bf16.mxu0 0
      %365 = vmatpush1.bf16.msra.mxu0 %v347
      %366 = vmatprep.subr.bf16.mxu0 0
      %367 = vmatpush1.bf16.msra.mxu0 %v348
      %368 = vmatprep.subr.bf16.mxu0 0
      %369 = vmatpush1.bf16.msra.mxu0 %v349
      %370 = vmatprep.subr.bf16.mxu0 0
      %371 = vmatpush1.bf16.msra.mxu0 %v350
      %372 = vmatprep.subr.bf16.mxu0 0
      %373 = vmatpush1.bf16.msra.mxu0 %v351
      %374 = vmatprep.subr.bf16.mxu0 0
      %375 = vmatpush1.bf16.msra.mxu0 %v352
      %376 = vmatprep.subr.bf16.mxu0 0
      %377 = vmatpush1.bf16.msra.mxu0 %v353
      %378 = vmatprep.subr.bf16.mxu0 0
      %379 = vmatpush1.bf16.msra.mxu0 0
      %380 = vmatprep.subr.bf16.mxu0 0
      %381 = vmatpush1.bf16.msra.mxu0 0
      %382 = vmatprep.subr.bf16.mxu0 0
      %383 = vmatpush1.bf16.msra.mxu0 0
      %384 = vmatprep.subr.bf16.mxu0 0
      %385 = vmatpush1.bf16.msra.mxu0 0
      %386 = vmatprep.subr.bf16.mxu0 0
      %387 = vmatpush1.bf16.msra.mxu0 0
      %388 = vmatprep.subr.bf16.mxu0 0
      %389 = vmatpush1.bf16.msra.mxu0 0
      %390 = vmatprep.subr.bf16.mxu0 0
      %391 = vmatpush1.bf16.msra.mxu0 0
      %392 = vmatprep.subr.bf16.mxu0 0
      %393 = vmatpush1.bf16.msra.mxu0 0
      %394 = vmatprep.mubr.bf16.mxu0 0
      %395 = vmatmul.mubr.bf16.gmra.mrb[0].mxu0 %v306
      %v396 = vpop.f32.mrb[0].mxu0
      %v397 = vadd.f32 %v288, %v396
      %v398 = vpop.f32.mrb[0].mxu0
      %v399 = vpop.f32.mrb[0].mxu0
      %v400 = vadd.f32 %v288, %v399
      %v401 = vpop.f32.mrb[0].mxu0
      %402 = vmatprep.mubr.bf16.mxu0 0
      %403 = vmatmul.mubr.bf16.gmra.mrb[0].mxu0 %v307
      %v404 = vpop.f32.mrb[0].mxu0
      %v405 = vadd.f32 %v288, %v404
      %v406 = vpop.f32.mrb[0].mxu0
      %v407 = vpop.f32.mrb[0].mxu0
      %v408 = vadd.f32 %v288, %v407
      %v409 = vpop.f32.mrb[0].mxu0
      %410 = vmatprep.mubr.bf16.mxu0 0
      %411 = vmatmul.mubr.bf16.gmra.mrb[0].mxu0 %v308
      %v412 = vpop.f32.mrb[0].mxu0
      %v413 = vadd.f32 %v288, %v412
      %v414 = vpop.f32.mrb[0].mxu0
      %v415 = vpop.f32.mrb[0].mxu0
      %v416 = vadd.f32 %v288, %v415
      %v417 = vpop.f32.mrb[0].mxu0
      %418 = vmatprep.mubr.bf16.mxu0 0
      %419 = vmatmul.mubr.bf16.gmra.mrb[0].mxu0 %v309
      %v420 = vpop.f32.mrb[0].mxu0
      %v421 = vadd.f32 %v288, %v420
      %v422 = vpop.f32.mrb[0].mxu0
      %v423 = vpop.f32.mrb[0].mxu0
      %v424 = vadd.f32 %v288, %v423
      %v425 = vpop.f32.mrb[0].mxu0
      %426 = vdwg.mxu0
      %v427 = vpack.c.bf16 %v397, %v397
      %v428 = vpack.c.bf16 %v400, %v400
      %v429 = vpack.c.bf16 %v405, %v405
      %v430 = vpack.c.bf16 %v408, %v408
      %v431 = vpack.c.bf16 %v413, %v413
      %v432 = vpack.c.bf16 %v416, %v416
      %v433 = vpack.c.bf16 %v421, %v421
      %v434 = vpack.c.bf16 %v424, %v424
      %435 = vst [vmem:[%s252] sm:$0xf] %v427
      %436 = vst [vmem:[%s252 + $0x4] sm:$0xf] %v428
      %437 = vst [vmem:[%s252 + $0x8] sm:$0xf] %v429
      %438 = vst [vmem:[%s252 + $0xc] sm:$0xf] %v430
      %439 = vst [vmem:[%s252 + $0x10] sm:$0xf] %v431
      %440 = vst [vmem:[%s252 + $0x14] sm:$0xf] %v432
      %441 = vst [vmem:[%s252 + $0x18] sm:$0xf] %v433
      %442 = vst [vmem:[%s252 + $0x1c] sm:$0xf] %v434
      %s443 = smul.u32 8, %s21
      %p444 = scmp.lt.s32.totalorder %s19, 1
      %s445 = scalar_select %p444, %s19, 1
      %p446 = scmp.lt.s32.totalorder %s443, 7
      %s447 = scalar_select %p446, %s443, 7
      %p448 = scmp.lt.s32.totalorder %s20, 0
      %s449 = scalar_select %p448, %s20, 0
      %s450 = sadd.s32 %s449, %s447
      %s451 = smul.addr %s445, 8
      %s452 = sadd.s32 %s450, %s451
      %s453 = smul.addr %s452, 4
      %s454 = scalar_lea.vmem %s3, %s453
      // Predicated region
      $region33: #{basic_block_forward.4} parent=31 // pred_check
        %p455 = pneg %p137
      $region34: #{basic_block_forward.4} parent=31 // pred_check_branch
        %457 = sbr.rel (%p455) target = $region36
      $region35: #{basic_block_forward.4} parent=31 // pred_region
        %s458 = smul.u32 8, %s21
      $region36: #{basic_block_forward.4} parent=31 // pred_fallthru
        _
    $region32: #{basic_block_forward.4} parent=5 // pred_fallthru
      _
    %p459 = scmp.le.s32.totalorder 2, %s9
    // Predicated region
    $region37: #{basic_block_forward.4} parent=5 // pred_check
      %p460 = pneg %p459
    $region38: #{basic_block_forward.4} parent=5 // pred_check_branch
      %462 = sbr.rel (%p460) target = $region40
    $region39: #{basic_block_forward.4} parent=5 // pred_region
      %s463 = ssub.s32 %s9, 2
      // Predicated region
      $region41: #{basic_block_forward.4} parent=39 // pred_check
        %p464 = pneg %p143
      $region42: #{basic_block_forward.4} parent=39 // pred_check_branch
        %466 = sbr.rel (%p464) target = $region44
      $region43: #{basic_block_forward.4} parent=39 // pred_region
        %s467 = smul.u32 8, %s24
        %p468 = scmp.lt.s32.totalorder %s22, 1
        %s469 = scalar_select %p468, %s22, 1
        %p470 = scmp.lt.s32.totalorder %s467, 7
        %s471 = scalar_select %p470, %s467, 7
        %p472 = scmp.lt.s32.totalorder %s23, 0
        %s473 = scalar_select %p472, %s23, 0
        %s474 = sadd.s32 %s473, %s471
        %s475 = smul.addr %s469, 8
        %s476 = sadd.s32 %s474, %s475
        %s477 = smul.addr %s476, 4
        %s478 = scalar_lea.vmem %s3, %s477
      $region44: #{basic_block_forward.4} parent=39 // pred_fallthru
        _
    $region40: #{basic_block_forward.4} parent=5 // pred_fallthru
      _
  $region6: #{basic_block_forward.4} parent=0 // loop_footer
    %s13 = sadd.s32 1, %s9
  $region7: #{basic_block_forward.4} parent=0 // loop_footer_branch
    %8 = sbr.rel target = $region3
  $region8: #{basic_block_forward.4} parent=0 // loop_exit
    _

// kernel: basic_block_forward.3
$region0: #{basic_block_forward.3}
  #allocation0 [shape = 'u32[]', space=smem, size = 0x4, offset = 0x4, fixed_abs, tag = 'smem constant byte address 0x4 - core index']
  #allocation1 [shape = 'u32[144,128]{1,0:T(1,128)}', space=vmem, size = 0x12000, scoped, tag = 'internal scratch']
  #allocation2 [shape = 'bf16[64,1152]{1,0:T(16,128)(2,1)}', space=vmem, size = 0x24000, scoped, tag = 'scratch operand']
  %s0 = inlined_call_operand.vmem [shape: bf16[8,9,9,128], index: 0, kind: input, shape index: {}]
  %s1 = inlined_call_operand.vmem [shape: bf16[1152,128], index: 1, kind: input, shape index: {}]
  %s2 = inlined_call_operand.vmem [shape: f32[1,128], index: 2, kind: input, shape index: {}]
  %s3 = inlined_call_operand.vmem [shape: bf16[2,8,8,128], index: 3, kind: output, shape index: {}]
  %s4 = sld [smem:[#allocation0]]
  $region45: #{basic_block_forward.3} parent=0
    _
  %s6 = ssub.s32 1, %s4
  %s7 = scalar_select 0, %s6, %s4
  loop: start=0, step=1, limit=4
  $region2: #{basic_block_forward.3} parent=0 // loop_pre_header
    _
  $region3: #{basic_block_forward.3} parent=0 // loop_header
    %s9 = sphi 0, %s13
    %p10 = scmp.ge.s32.totalorder %s9, 4
    %s16 = sphi 0, %s35
    %s17 = sphi 0, %s31
    %s18 = sphi 0, %s27
    %s19 = sphi 0, %s16
    %s20 = sphi 0, %s17
    %s21 = sphi 0, %s18
    %s22 = sphi 0, %s19
    %s23 = sphi 0, %s20
    %s24 = sphi 0, %s21
    %s38 = sphi 0, %s40
    %s41 = sphi 0, %s38
    %s42 = sphi 0, %s41
    %s58 = sphi 0, %s42
    %s64 = sphi 0, %s66
    %s67 = sphi 0, %s64
    %s68 = sphi 0, %s67
    %s84 = sphi 0, %s68
    %s90 = sphi 0, %s92
    %s93 = sphi 0, %s90
    %s94 = sphi 0, %s93
    %s110 = sphi 0, %s94
    %s120 = sphi 0, %s122
    %s123 = sphi 0, %s120
    %s124 = sphi 0, %s123
    %s140 = sphi 0, %s124
  $region4: #{basic_block_forward.3} parent=0 // loop_header_branch
    %12 = sbr.rel (%p10) target = $region8
  $region5: #{basic_block_forward.3} parent=0 // loop_body
    %s14 = ssub.s32 %s9, 1
    %s15 = ssub.s32 %s9, 2
    %s25 = sadd.s32 1, %s18
    %p26 = scmp.ge.s32.totalorder %s25, 1
    %s27 = scalar_select %p26, 0, %s25
    %s28 = sadd.s32 1, %s17
    %s29 = scalar_select %p26, %s28, %s17
    %p30 = scmp.ge.s32.totalorder %s29, 1
    %s31 = scalar_select %p30, 0, %s29
    %s32 = sadd.s32 1, %s16
    %s33 = scalar_select %p30, %s32, %s16
    %p34 = scmp.ge.s32.totalorder %s33, 2
    %s35 = scalar_select %p34, 0, %s33
    %s36 = ssub.s32 %s16, %s35
    %p37 = scmp.eq.s32.totalorder %s36, 0
    %s39 = sadd.s32 %s38, 1
    %s40 = scalar_select %p37, %s38, %s39
    %p43 = pneg %p37
    %p44 = scmp.eq.s32.totalorder %s9, 1
    %p45 = por %p43, %p44
    %p46 = scmp.ne.s32.totalorder %s38, %s41
    %p47 = scmp.eq.s32.totalorder %s9, 0
    %p48 = por %p46, %p47
    %p49 = scmp.ne.s32.totalorder %s38, %s41
    %p50 = scmp.eq.s32.totalorder %s14, 1
    %p51 = por %p49, %p50
    %p52 = scmp.ne.s32.totalorder %s41, %s42
    %p53 = scmp.eq.s32.totalorder %s14, 0
    %p54 = por %p52, %p53
    %p55 = scmp.ne.s32.totalorder %s41, %s42
    %p56 = scmp.eq.s32.totalorder %s15, 1
    %p57 = por %p55, %p56
    %p59 = scmp.ne.s32.totalorder %s42, %s58
    %p60 = scmp.eq.s32.totalorder %s15, 0
    %p61 = por %p59, %p60
    %s62 = ssub.s32 %s17, %s31
    %p63 = scmp.eq.s32.totalorder %s62, 0
    %s65 = sadd.s32 %s64, 1
    %s66 = scalar_select %p63, %s64, %s65
    %p69 = pneg %p63
    %p70 = scmp.eq.s32.totalorder %s9, 1
    %p71 = por %p69, %p70
    %p72 = scmp.ne.s32.totalorder %s64, %s67
    %p73 = scmp.eq.s32.totalorder %s9, 0
    %p74 = por %p72, %p73
    %p75 = scmp.ne.s32.totalorder %s64, %s67
    %p76 = scmp.eq.s32.totalorder %s14, 1
    %p77 = por %p75, %p76
    %p78 = scmp.ne.s32.totalorder %s67, %s68
    %p79 = scmp.eq.s32.totalorder %s14, 0
    %p80 = por %p78, %p79
    %p81 = scmp.ne.s32.totalorder %s67, %s68
    %p82 = scmp.eq.s32.totalorder %s15, 1
    %p83 = por %p81, %p82
    %p85 = scmp.ne.s32.totalorder %s68, %s84
    %p86 = scmp.eq.s32.totalorder %s15, 0
    %p87 = por %p85, %p86
    %s88 = ssub.s32 %s17, %s31
    %p89 = scmp.eq.s32.totalorder %s88, 0
    %s91 = sadd.s32 %s90, 1
    %s92 = scalar_select %p89, %s90, %s91
    %p95 = pneg %p89
    %p96 = scmp.eq.s32.totalorder %s9, 1
    %p97 = por %p95, %p96
    %p98 = scmp.ne.s32.totalorder %s90, %s93
    %p99 = scmp.eq.s32.totalorder %s9, 0
    %p100 = por %p98, %p99
    %p101 = scmp.ne.s32.totalorder %s90, %s93
    %p102 = scmp.eq.s32.totalorder %s14, 1
    %p103 = por %p101, %p102
    %p104 = scmp.ne.s32.totalorder %s93, %s94
    %p105 = scmp.eq.s32.totalorder %s14, 0
    %p106 = por %p104, %p105
    %p107 = scmp.ne.s32.totalorder %s93, %s94
    %p108 = scmp.eq.s32.totalorder %s15, 1
    %p109 = por %p107, %p108
    %p111 = scmp.ne.s32.totalorder %s94, %s110
    %p112 = scmp.eq.s32.totalorder %s15, 0
    %p113 = por %p111, %p112
    %s114 = ssub.s32 %s16, %s35
    %s115 = ssub.s32 %s18, %s27
    %s116 = sor.u32 %s114, %s115
    %s117 = ssub.s32 %s17, %s31
    %s118 = sor.u32 %s116, %s117
    %p119 = scmp.eq.s32.totalorder %s118, 0
    %s121 = sadd.s32 %s120, 1
    %s122 = scalar_select %p119, %s120, %s121
    %p125 = pneg %p119
    %p126 = scmp.eq.s32.totalorder %s9, 1
    %p127 = por %p125, %p126
    %p128 = scmp.ne.s32.totalorder %s120, %s123
    %p129 = scmp.eq.s32.totalorder %s9, 0
    %p130 = por %p128, %p129
    %p131 = scmp.ne.s32.totalorder %s120, %s123
    %p132 = scmp.eq.s32.totalorder %s14, 1
    %p133 = por %p131, %p132
    %p134 = scmp.ne.s32.totalorder %s123, %s124
    %p135 = scmp.eq.s32.totalorder %s14, 0
    %p136 = por %p134, %p135
    %p137 = scmp.ne.s32.totalorder %s123, %s124
    %p138 = scmp.eq.s32.totalorder %s15, 1
    %p139 = por %p137, %p138
    %p141 = scmp.ne.s32.totalorder %s124, %s140
    %p142 = scmp.eq.s32.totalorder %s15, 0
    %p143 = por %p141, %p142
    %p144 = scmp.le.s32.totalorder 1, %s9
    %p145 = scmp.lt.s32.totalorder %s9, 3
    %p146 = pnand %p144, %p145
    %p147 = pneg %p146
    // Predicated region
    $region9: #{basic_block_forward.3} parent=5 // pred_check
      _
    $region10: #{basic_block_forward.3} parent=5 // pred_check_branch
      %149 = sbr.rel (%p146) target = $region12
    $region11: #{basic_block_forward.3} parent=5 // pred_region
      %s150 = ssub.s32 %s9, 1
      // Predicated region
      $region13: #{basic_block_forward.3} parent=11 // pred_check
        %p151 = pneg %p80
      $region14: #{basic_block_forward.3} parent=11 // pred_check_branch
        %153 = sbr.rel (%p151) target = $region16
      $region15: #{basic_block_forward.3} parent=11 // pred_region
        %p154 = scmp.lt.s32.totalorder %s20, 0
        %s155 = scalar_select %p154, %s20, 0
        %s156 = smul.addr %s155, 4
        %s157 = scalar_lea.vmem %s1, %s156
      $region16: #{basic_block_forward.3} parent=11 // pred_fallthru
        _
      // Predicated region
      $region17: #{basic_block_forward.3} parent=11 // pred_check
        %p158 = pneg %p106
      $region18: #{basic_block_forward.3} parent=11 // pred_check_branch
        %160 = sbr.rel (%p158) target = $region20
      $region19: #{basic_block_forward.3} parent=11 // pred_region
        %p161 = scmp.lt.s32.totalorder %s20, 0
        %s162 = scalar_select %p161, %s20, 0
        %s163 = scalar_lea.vmem %s2, %s162
      $region20: #{basic_block_forward.3} parent=11 // pred_fallthru
        _
    $region12: #{basic_block_forward.3} parent=5 // pred_fallthru
      _
    %p164 = scmp.lt.s32.totalorder %s9, 2
    // Predicated region
    $region21: #{basic_block_forward.3} parent=5 // pred_check
      %p165 = pneg %p164
    $region22: #{basic_block_forward.3} parent=5 // pred_check_branch
      %167 = sbr.rel (%p165) target = $region24
    $region23: #{basic_block_forward.3} parent=5 // pred_region
      // Predicated region
      $region25: #{basic_block_forward.3} parent=23 // pred_check
        %p168 = pneg %p48
      $region26: #{basic_block_forward.3} parent=23 // pred_check_branch
        %170 = sbr.rel (%p168) target = $region28
      $region27: #{basic_block_forward.3} parent=23 // pred_region
        %s171 = smul.u32 4, %s16
        %p172 = scmp.lt.s32.totalorder %s171, 7
        %s173 = scalar_select %p172, %s171, 7
        %s174 = smul.addr %s173, 18
        %s175 = smul.addr %s174, 4
        %s176 = scalar_lea.vmem %s0, %s175
        %s177 = smul.u32 4, %s16
      $region28: #{basic_block_forward.3} parent=23 // pred_fallthru
        _
    $region24: #{basic_block_forward.3} parent=5 // pred_fallthru
      _
    %p178 = scmp.le.s32.totalorder 1, %s9
    %p179 = scmp.lt.s32.totalorder %s9, 3
    %p180 = pnand %p178, %p179
    %p181 = pneg %p180
    // Predicated region
    $region29: #{basic_block_forward.3} parent=5 // pred_check
      _
    $region30: #{basic_block_forward.3} parent=5 // pred_check_branch
      %183 = sbr.rel (%p180) target = $region32
    $region31: #{basic_block_forward.3} parent=5 // pred_region
      %s184 = ssub.s32 %s9, 1
      %s185 = smul.u32 4, %s19
      %p186 = scmp.lt.s32.totalorder %s185, 7
      %s187 = scalar_select %p186, %s185, 7
      %s188 = smul.addr %s187, 18
      %s189 = smul.addr %s188, 4
      %s190 = scalar_lea.vmem %s0, %s189
      %p191 = pneg %p54
      %p192 = pneg %p51
      %p193 = scmp.lt.s32.totalorder %s20, 0
      %s194 = scalar_select %p193, %s20, 0
      %s195 = smul.addr %s194, 4
      %s196 = scalar_lea.vmem %s1, %s195
      %p197 = pneg %p80
      %p198 = pneg %p77
      %p199 = scmp.lt.s32.totalorder %s20, 0
      %s200 = scalar_select %p199, %s20, 0
      %s201 = scalar_lea.vmem %s2, %s200
      %p202 = pneg %p106
      %p203 = pneg %p103
      %p204 = pneg %p136
      %p205 = pneg %p133
      %s206 = smul.u32 8, %s21
      %p207 = scmp.lt.s32.totalorder %s19, 1
      %s208 = scalar_select %p207, %s19, 1
      %p209 = scmp.lt.s32.totalorder %s206, 7
      %s210 = scalar_select %p209, %s206, 7
      %p211 = scmp.lt.s32.totalorder %s20, 0
      %s212 = scalar_select %p211, %s20, 0
      %s213 = sadd.s32 %s212, %s210
      %s214 = smul.addr %s208, 8
      %s215 = sadd.s32 %s213, %s214
      %s216 = smul.addr %s215, 4
      %s217 = scalar_lea.vmem %s3, %s216
      %s218 = smul.u32 4, %s19
      %p219 = scmp.lt.s32.totalorder %s218, 7
      %s220 = scalar_select %p219, %s218, 7
      %s221 = smul.addr %s220, 18
      %s222 = smul.addr %s221, 4
      %s223 = scalar_lea.vmem %s0, %s222
      %s224 = smul.u32 4, %s19
      %p225 = scmp.lt.s32.totalorder %s20, 0
      %s226 = scalar_select %p225, %s20, 0
      %s227 = smul.addr %s226, 4
      %s228 = scalar_lea.vmem %s1, %s227
      %p229 = scmp.lt.s32.totalorder %s20, 0
      %s230 = scalar_select %p229, %s20, 0
      %s231 = scalar_lea.vmem %s2, %s230
      %s232 = smul.u32 8, %s21
      %p233 = scmp.lt.s32.totalorder %s19, 1
      %s234 = scalar_select %p233, %s19, 1
      %p235 = scmp.lt.s32.totalorder %s232, 7
      %s236 = scalar_select %p235, %s232, 7
      %p237 = scmp.lt.s32.totalorder %s20, 0
      %s238 = scalar_select %p237, %s20, 0
      %s239 = sadd.s32 %s238, %s236
      %s240 = smul.addr %s234, 8
      %s241 = sadd.s32 %s239, %s240
      %s242 = smul.addr %s241, 4
      %s243 = scalar_lea.vmem %s3, %s242
      %s244 = smul.u32 8, %s21
      %s246 = smul.u32 %s21, 8
      %s247 = smul.u32 %s246, 2
      %s248 = smul.addr %s247, 4
      %s249 = scalar_lea.vmem %s223, %s248
      %v250 = vld [vmem:[%s249] sm:$0xf]
      %v251 = vld [vmem:[%s249 + $0x8] sm:$0xf]
      %v252 = vld [vmem:[%s249 + $0x10] sm:$0xf]
      %v253 = vld [vmem:[%s249 + $0x18] sm:$0xf]
      %v254 = vld [vmem:[%s249 + $0x20] sm:$0xf]
      %v255 = vld [vmem:[%s249 + $0x28] sm:$0xf]
      %v256 = vld [vmem:[%s249 + $0x30] sm:$0xf]
      %v257 = vld [vmem:[%s249 + $0x38] sm:$0xf]
      %v266 = vunpack.c.l.b16 %v250
      %v267 = vunpack.c.l.b16 %v251
      %v268 = vunpack.c.l.b16 %v252
      %v269 = vunpack.c.l.b16 %v253
      %v270 = vunpack.c.l.b16 %v254
      %v271 = vunpack.c.l.b16 %v255
      %v272 = vunpack.c.l.b16 %v256
      %v273 = vunpack.c.l.b16 %v257
      %v274 = vpack.c.b16 %v267, %v266
      %v275 = vpack.c.b16 %v269, %v268
      %v276 = vpack.c.b16 %v271, %v270
      %v277 = vpack.c.b16 %v273, %v272
      %282 = vst [vmem:[#allocation2] sm:$0xff] %v274
      %283 = vst [vmem:[#allocation2 + $0x48] sm:$0xff] %v275
      %284 = vst [vmem:[#allocation2 + $0x90] sm:$0xff] %v276
      %285 = vst [vmem:[#allocation2 + $0xd8] sm:$0xff] %v277
      %s286 = sadd.s32 %s247, 18
      %s287 = smul.addr %s286, 4
      %s288 = scalar_lea.vmem %s223, %s287
      %v289 = vld [vmem:[%s288] sm:$0xf]
      %v290 = vld [vmem:[%s288 + $0x8] sm:$0xf]
      %v291 = vld [vmem:[%s288 + $0x10] sm:$0xf]
      %v292 = vld [vmem:[%s288 + $0x18] sm:$0xf]
      %v293 = vld [vmem:[%s288 + $0x20] sm:$0xf]
      %v294 = vld [vmem:[%s288 + $0x28] sm:$0xf]
      %v295 = vld [vmem:[%s288 + $0x30] sm:$0xf]
      %v296 = vld [vmem:[%s288 + $0x38] sm:$0xf]
      %v305 = vunpack.c.l.b16 %v289
      %v306 = vunpack.c.l.b16 %v290
      %v307 = vunpack.c.l.b16 %v291
      %v308 = vunpack.c.l.b16 %v292
      %v309 = vunpack.c.l.b16 %v293
      %v310 = vunpack.c.l.b16 %v294
      %v311 = vunpack.c.l.b16 %v295
      %v312 = vunpack.c.l.b16 %v296
      %v313 = vpack.c.b16 %v306, %v305
      %v314 = vpack.c.b16 %v308, %v307
      %v315 = vpack.c.b16 %v310, %v309
      %v316 = vpack.c.b16 %v312, %v311
      %321 = vst [vmem:[#allocation2 + $0x8] sm:$0xff] %v313
      %322 = vst [vmem:[#allocation2 + $0x50] sm:$0xff] %v314
      %323 = vst [vmem:[#allocation2 + $0x98] sm:$0xff] %v315
      %324 = vst [vmem:[#allocation2 + $0xe0] sm:$0xff] %v316
      %v325 = vld [vmem:[%s249] sm:$0xf]
      %v326 = vld [vmem:[%s249 + $0x4] sm:$0x1]
      %v327 = vld [vmem:[%s249 + $0x8] sm:$0xf]
      %v328 = vld [vmem:[%s249 + $0xc] sm:$0x1]
      %v329 = vld [vmem:[%s249 + $0x10] sm:$0xf]
      %v330 = vld [vmem:[%s249 + $0x14] sm:$0x1]
      %v331 = vld [vmem:[%s249 + $0x18] sm:$0xf]
      %v332 = vld [vmem:[%s249 + $0x1c] sm:$0x1]
      %v333 = vld [vmem:[%s249 + $0x20] sm:$0xf]
      %v334 = vld [vmem:[%s249 + $0x24] sm:$0x1]
      %v335 = vld [vmem:[%s249 + $0x28] sm:$0xf]
      %v336 = vld [vmem:[%s249 + $0x2c] sm:$0x1]
      %v337 = vld [vmem:[%s249 + $0x30] sm:$0xf]
      %v338 = vld [vmem:[%s249 + $0x34] sm:$0x1]
      %v339 = vld [vmem:[%s249 + $0x38] sm:$0xf]
      %v340 = vld [vmem:[%s249 + $0x3c] sm:$0x1]
      %vm341 = vsmask.f32 3328
      %vm342 = vsmask.f32 7440
      %vm343 = vmor %vm341, %vm342
      %v345 = vshrl.u32 %v325, 16
      %v347 = vrot.slane %v345, 4
      %v348 = vshll.u32 %v325, 16
      %v350 = vrot.slane %v348, 5
      %v351 = vor.u32 %v347, %v350
      %v352 = vrot.slane %v351, 4
      %v354 = vshll.u32 %v326, 16
      %v356 = vrot.slane %v354, 5
      %v357 = vsel %vm343, %v352, %v356
      %v359 = vshrl.u32 %v327, 16
      %v361 = vrot.slane %v359, 4
      %v362 = vshll.u32 %v327, 16
      %v364 = vrot.slane %v362, 5
      %v365 = vor.u32 %v361, %v364
      %v366 = vrot.slane %v365, 4
      %v368 = vshll.u32 %v328, 16
      %v370 = vrot.slane %v368, 5
      %v371 = vsel %vm343, %v366, %v370
      %v373 = vshrl.u32 %v329, 16
      %v375 = vrot.slane %v373, 4
      %v376 = vshll.u32 %v329, 16
      %v378 = vrot.slane %v376, 5
      %v379 = vor.u32 %v375, %v378
      %v380 = vrot.slane %v379, 4
      %v382 = vshll.u32 %v330, 16
      %v384 = vrot.slane %v382, 5
      %v385 = vsel %vm343, %v380, %v384
      %v387 = vshrl.u32 %v331, 16
      %v389 = vrot.slane %v387, 4
      %v390 = vshll.u32 %v331, 16
      %v392 = vrot.slane %v390, 5
      %v393 = vor.u32 %v389, %v392
      %v394 = vrot.slane %v393, 4
      %v396 = vshll.u32 %v332, 16
      %v398 = vrot.slane %v396, 5
      %v399 = vsel %vm343, %v394, %v398
      %v401 = vshrl.u32 %v333, 16
      %v403 = vrot.slane %v401, 4
      %v404 = vshll.u32 %v333, 16
      %v406 = vrot.slane %v404, 5
      %v407 = vor.u32 %v403, %v406
      %v408 = vrot.slane %v407, 4
      %v410 = vshll.u32 %v334, 16
      %v412 = vrot.slane %v410, 5
      %v413 = vsel %vm343, %v408, %v412
      %v415 = vshrl.u32 %v335, 16
      %v417 = vrot.slane %v415, 4
      %v418 = vshll.u32 %v335, 16
      %v420 = vrot.slane %v418, 5
      %v421 = vor.u32 %v417, %v420
      %v422 = vrot.slane %v421, 4
      %v424 = vshll.u32 %v336, 16
      %v426 = vrot.slane %v424, 5
      %v427 = vsel %vm343, %v422, %v426
      %v429 = vshrl.u32 %v337, 16
      %v431 = vrot.slane %v429, 4
      %v432 = vshll.u32 %v337, 16
      %v434 = vrot.slane %v432, 5
      %v435 = vor.u32 %v431, %v434
      %v436 = vrot.slane %v435, 4
      %v438 = vshll.u32 %v338, 16
      %v440 = vrot.slane %v438, 5
      %v441 = vsel %vm343, %v436, %v440
      %v443 = vshrl.u32 %v339, 16
      %v445 = vrot.slane %v443, 4
      %v446 = vshll.u32 %v339, 16
      %v448 = vrot.slane %v446, 5
      %v449 = vor.u32 %v445, %v448
      %v450 = vrot.slane %v449, 4
      %v452 = vshll.u32 %v340, 16
      %v454 = vrot.slane %v452, 5
      %v455 = vsel %vm343, %v450, %v454
      %v456 = vunpack.c.l.b16 %v357
      %v457 = vunpack.c.l.b16 %v371
      %v458 = vunpack.c.l.b16 %v385
      %v459 = vunpack.c.l.b16 %v399
      %v460 = vunpack.c.l.b16 %v413
      %v461 = vunpack.c.l.b16 %v427
      %v462 = vunpack.c.l.b16 %v441
      %v463 = vunpack.c.l.b16 %v455
      %v464 = vpack.c.b16 %v457, %v456
      %v465 = vpack.c.b16 %v459, %v458
      %v466 = vpack.c.b16 %v461, %v460
      %v467 = vpack.c.b16 %v463, %v462
      %472 = vst [vmem:[#allocation2 + $0x10] sm:$0xff] %v464
      %473 = vst [vmem:[#allocation2 + $0x58] sm:$0xff] %v465
      %474 = vst [vmem:[#allocation2 + $0xa0] sm:$0xff] %v466
      %475 = vst [vmem:[#allocation2 + $0xe8] sm:$0xff] %v467
      %s476 = sadd.s32 %s247, 36
      %s477 = smul.addr %s476, 4
      %s478 = scalar_lea.vmem %s223, %s477
      %v479 = vld [vmem:[%s478] sm:$0xf]
      %v480 = vld [vmem:[%s478 + $0x8] sm:$0xf]
      %v481 = vld [vmem:[%s478 + $0x10] sm:$0xf]
      %v482 = vld [vmem:[%s478 + $0x18] sm:$0xf]
      %v483 = vld [vmem:[%s478 + $0x20] sm:$0xf]
      %v484 = vld [vmem:[%s478 + $0x28] sm:$0xf]
      %v485 = vld [vmem:[%s478 + $0x30] sm:$0xf]
      %v486 = vld [vmem:[%s478 + $0x38] sm:$0xf]
      %v495 = vunpack.c.l.b16 %v479
      %v496 = vunpack.c.l.b16 %v480
      %v497 = vunpack.c.l.b16 %v481
      %v498 = vunpack.c.l.b16 %v482
      %v499 = vunpack.c.l.b16 %v483
      %v500 = vunpack.c.l.b16 %v484
      %v501 = vunpack.c.l.b16 %v485
      %v502 = vunpack.c.l.b16 %v486
      %v503 = vpack.c.b16 %v496, %v495
      %v504 = vpack.c.b16 %v498, %v497
      %v505 = vpack.c.b16 %v500, %v499
      %v506 = vpack.c.b16 %v502, %v501
      %511 = vst [vmem:[#allocation2 + $0x18] sm:$0xff] %v503
      %512 = vst [vmem:[#allocation2 + $0x60] sm:$0xff] %v504
      %513 = vst [vmem:[#allocation2 + $0xa8] sm:$0xff] %v505
      %514 = vst [vmem:[#allocation2 + $0xf0] sm:$0xff] %v506
      %s515 = sadd.s32 %s247, 54
      %s516 = smul.addr %s515, 4
      %s517 = scalar_lea.vmem %s223, %s516
      %v518 = vld [vmem:[%s517] sm:$0xf]
      %v519 = vld [vmem:[%s517 + $0x8] sm:$0xf]
      %v520 = vld [vmem:[%s517 + $0x10] sm:$0xf]
      %v521 = vld [vmem:[%s517 + $0x18] sm:$0xf]
      %v522 = vld [vmem:[%s517 + $0x20] sm:$0xf]
      %v523 = vld [vmem:[%s517 + $0x28] sm:$0xf]
      %v524 = vld [vmem:[%s517 + $0x30] sm:$0xf]
      %v525 = vld [vmem:[%s517 + $0x38] sm:$0xf]
      %v534 = vunpack.c.l.b16 %v518
      %v535 = vunpack.c.l.b16 %v519
      %v536 = vunpack.c.l.b16 %v520
      %v537 = vunpack.c.l.b16 %v521
      %v538 = vunpack.c.l.b16 %v522
      %v539 = vunpack.c.l.b16 %v523
      %v540 = vunpack.c.l.b16 %v524
      %v541 = vunpack.c.l.b16 %v525
      %v542 = vpack.c.b16 %v535, %v534
      %v543 = vpack.c.b16 %v537, %v536
      %v544 = vpack.c.b16 %v539, %v538
      %v545 = vpack.c.b16 %v541, %v540
      %550 = vst [vmem:[#allocation2 + $0x20] sm:$0xff] %v542
      %551 = vst [vmem:[#allocation2 + $0x68] sm:$0xff] %v543
      %552 = vst [vmem:[#allocation2 + $0xb0] sm:$0xff] %v544
      %553 = vst [vmem:[#allocation2 + $0xf8] sm:$0xff] %v545
      %v554 = vld [vmem:[%s478] sm:$0xf]
      %v555 = vld [vmem:[%s478 + $0x4] sm:$0x1]
      %v556 = vld [vmem:[%s478 + $0x8] sm:$0xf]
      %v557 = vld [vmem:[%s478 + $0xc] sm:$0x1]
      %v558 = vld [vmem:[%s478 + $0x10] sm:$0xf]
      %v559 = vld [vmem:[%s478 + $0x14] sm:$0x1]
      %v560 = vld [vmem:[%s478 + $0x18] sm:$0xf]
      %v561 = vld [vmem:[%s478 + $0x1c] sm:$0x1]
      %v562 = vld [vmem:[%s478 + $0x20] sm:$0xf]
      %v563 = vld [vmem:[%s478 + $0x24] sm:$0x1]
      %v564 = vld [vmem:[%s478 + $0x28] sm:$0xf]
      %v565 = vld [vmem:[%s478 + $0x2c] sm:$0x1]
      %v566 = vld [vmem:[%s478 + $0x30] sm:$0xf]
      %v567 = vld [vmem:[%s478 + $0x34] sm:$0x1]
      %v568 = vld [vmem:[%s478 + $0x38] sm:$0xf]
      %v569 = vld [vmem:[%s478 + $0x3c] sm:$0x1]
      %v571 = vshrl.u32 %v554, 16
      %v573 = vrot.slane %v571, 4
      %v574 = vshll.u32 %v554, 16
      %v576 = vrot.slane %v574, 5
      %v577 = vor.u32 %v573, %v576
      %v578 = vrot.slane %v577, 4
      %v580 = vshll.u32 %v555, 16
      %v582 = vrot.slane %v580, 5
      %v583 = vsel %vm343, %v578, %v582
      %v585 = vshrl.u32 %v556, 16
      %v587 = vrot.slane %v585, 4
      %v588 = vshll.u32 %v556, 16
      %v590 = vrot.slane %v588, 5
      %v591 = vor.u32 %v587, %v590
      %v592 = vrot.slane %v591, 4
      %v594 = vshll.u32 %v557, 16
      %v596 = vrot.slane %v594, 5
      %v597 = vsel %vm343, %v592, %v596
      %v599 = vshrl.u32 %v558, 16
      %v601 = vrot.slane %v599, 4
      %v602 = vshll.u32 %v558, 16
      %v604 = vrot.slane %v602, 5
      %v605 = vor.u32 %v601, %v604
      %v606 = vrot.slane %v605, 4
      %v608 = vshll.u32 %v559, 16
      %v610 = vrot.slane %v608, 5
      %v611 = vsel %vm343, %v606, %v610
      %v613 = vshrl.u32 %v560, 16
      %v615 = vrot.slane %v613, 4
      %v616 = vshll.u32 %v560, 16
      %v618 = vrot.slane %v616, 5
      %v619 = vor.u32 %v615, %v618
      %v620 = vrot.slane %v619, 4
      %v622 = vshll.u32 %v561, 16
      %v624 = vrot.slane %v622, 5
      %v625 = vsel %vm343, %v620, %v624
      %v627 = vshrl.u32 %v562, 16
      %v629 = vrot.slane %v627, 4
      %v630 = vshll.u32 %v562, 16
      %v632 = vrot.slane %v630, 5
      %v633 = vor.u32 %v629, %v632
      %v634 = vrot.slane %v633, 4
      %v636 = vshll.u32 %v563, 16
      %v638 = vrot.slane %v636, 5
      %v639 = vsel %vm343, %v634, %v638
      %v641 = vshrl.u32 %v564, 16
      %v643 = vrot.slane %v641, 4
      %v644 = vshll.u32 %v564, 16
      %v646 = vrot.slane %v644, 5
      %v647 = vor.u32 %v643, %v646
      %v648 = vrot.slane %v647, 4
      %v650 = vshll.u32 %v565, 16
      %v652 = vrot.slane %v650, 5
      %v653 = vsel %vm343, %v648, %v652
      %v655 = vshrl.u32 %v566, 16
      %v657 = vrot.slane %v655, 4
      %v658 = vshll.u32 %v566, 16
      %v660 = vrot.slane %v658, 5
      %v661 = vor.u32 %v657, %v660
      %v662 = vrot.slane %v661, 4
      %v664 = vshll.u32 %v567, 16
      %v666 = vrot.slane %v664, 5
      %v667 = vsel %vm343, %v662, %v666
      %v669 = vshrl.u32 %v568, 16
      %v671 = vrot.slane %v669, 4
      %v672 = vshll.u32 %v568, 16
      %v674 = vrot.slane %v672, 5
      %v675 = vor.u32 %v671, %v674
      %v676 = vrot.slane %v675, 4
      %v678 = vshll.u32 %v569, 16
      %v680 = vrot.slane %v678, 5
      %v681 = vsel %vm343, %v676, %v680
      %v682 = vunpack.c.l.b16 %v583
      %v683 = vunpack.c.l.b16 %v597
      %v684 = vunpack.c.l.b16 %v611
      %v685 = vunpack.c.l.b16 %v625
      %v686 = vunpack.c.l.b16 %v639
      %v687 = vunpack.c.l.b16 %v653
      %v688 = vunpack.c.l.b16 %v667
      %v689 = vunpack.c.l.b16 %v681
      %v690 = vpack.c.b16 %v683, %v682
      %v691 = vpack.c.b16 %v685, %v684
      %v692 = vpack.c.b16 %v687, %v686
      %v693 = vpack.c.b16 %v689, %v688
      %698 = vst [vmem:[#allocation2 + $0x28] sm:$0xff] %v690
      %699 = vst [vmem:[#allocation2 + $0x70] sm:$0xff] %v691
      %700 = vst [vmem:[#allocation2 + $0xb8] sm:$0xff] %v692
      %701 = vst [vmem:[#allocation2 + $0x100] sm:$0xff] %v693
      %s702 = sadd.s32 %s246, 1
      %s703 = smul.u32 %s702, 2
      %s704 = smul.addr %s703, 4
      %s705 = scalar_lea.vmem %s223, %s704
      %v706 = vld [vmem:[%s705] sm:$0xf]
      %v707 = vld [vmem:[%s705 + $0x8] sm:$0xf]
      %v708 = vld [vmem:[%s705 + $0x10] sm:$0xf]
      %v709 = vld [vmem:[%s705 + $0x18] sm:$0xf]
      %v710 = vld [vmem:[%s705 + $0x20] sm:$0xf]
      %v711 = vld [vmem:[%s705 + $0x28] sm:$0xf]
      %v712 = vld [vmem:[%s705 + $0x30] sm:$0xf]
      %v713 = vld [vmem:[%s705 + $0x38] sm:$0xf]
      %v722 = vunpack.c.l.b16 %v706
      %v723 = vunpack.c.l.b16 %v707
      %v724 = vunpack.c.l.b16 %v708
      %v725 = vunpack.c.l.b16 %v709
      %v726 = vunpack.c.l.b16 %v710
      %v727 = vunpack.c.l.b16 %v711
      %v728 = vunpack.c.l.b16 %v712
      %v729 = vunpack.c.l.b16 %v713
      %v730 = vpack.c.b16 %v723, %v722
      %v731 = vpack.c.b16 %v725, %v724
      %v732 = vpack.c.b16 %v727, %v726
      %v733 = vpack.c.b16 %v729, %v728
      %738 = vst [vmem:[#allocation2 + $0x30] sm:$0xff] %v730
      %739 = vst [vmem:[#allocation2 + $0x78] sm:$0xff] %v731
      %740 = vst [vmem:[#allocation2 + $0xc0] sm:$0xff] %v732
      %741 = vst [vmem:[#allocation2 + $0x108] sm:$0xff] %v733
      %s742 = sadd.s32 %s703, 18
      %s743 = smul.addr %s742, 4
      %s744 = scalar_lea.vmem %s223, %s743
      %v745 = vld [vmem:[%s744] sm:$0xf]
      %v746 = vld [vmem:[%s744 + $0x8] sm:$0xf]
      %v747 = vld [vmem:[%s744 + $0x10] sm:$0xf]
      %v748 = vld [vmem:[%s744 + $0x18] sm:$0xf]
      %v749 = vld [vmem:[%s744 + $0x20] sm:$0xf]
      %v750 = vld [vmem:[%s744 + $0x28] sm:$0xf]
      %v751 = vld [vmem:[%s744 + $0x30] sm:$0xf]
      %v752 = vld [vmem:[%s744 + $0x38] sm:$0xf]
      %v761 = vunpack.c.l.b16 %v745
      %v762 = vunpack.c.l.b16 %v746
      %v763 = vunpack.c.l.b16 %v747
      %v764 = vunpack.c.l.b16 %v748
      %v765 = vunpack.c.l.b16 %v749
      %v766 = vunpack.c.l.b16 %v750
      %v767 = vunpack.c.l.b16 %v751
      %v768 = vunpack.c.l.b16 %v752
      %v769 = vpack.c.b16 %v762, %v761
      %v770 = vpack.c.b16 %v764, %v763
      %v771 = vpack.c.b16 %v766, %v765
      %v772 = vpack.c.b16 %v768, %v767
      %777 = vst [vmem:[#allocation2 + $0x38] sm:$0xff] %v769
      %778 = vst [vmem:[#allocation2 + $0x80] sm:$0xff] %v770
      %779 = vst [vmem:[#allocation2 + $0xc8] sm:$0xff] %v771
      %780 = vst [vmem:[#allocation2 + $0x110] sm:$0xff] %v772
      %v781 = vld [vmem:[%s705] sm:$0xf]
      %v782 = vld [vmem:[%s705 + $0x4] sm:$0x1]
      %v783 = vld [vmem:[%s705 + $0x8] sm:$0xf]
      %v784 = vld [vmem:[%s705 + $0xc] sm:$0x1]
      %v785 = vld [vmem:[%s705 + $0x10] sm:$0xf]
      %v786 = vld [vmem:[%s705 + $0x14] sm:$0x1]
      %v787 = vld [vmem:[%s705 + $0x18] sm:$0xf]
      %v788 = vld [vmem:[%s705 + $0x1c] sm:$0x1]
      %v789 = vld [vmem:[%s705 + $0x20] sm:$0xf]
      %v790 = vld [vmem:[%s705 + $0x24] sm:$0x1]
      %v791 = vld [vmem:[%s705 + $0x28] sm:$0xf]
      %v792 = vld [vmem:[%s705 + $0x2c] sm:$0x1]
      %v793 = vld [vmem:[%s705 + $0x30] sm:$0xf]
      %v794 = vld [vmem:[%s705 + $0x34] sm:$0x1]
      %v795 = vld [vmem:[%s705 + $0x38] sm:$0xf]
      %v796 = vld [vmem:[%s705 + $0x3c] sm:$0x1]
      %v798 = vshrl.u32 %v781, 16
      %v800 = vrot.slane %v798, 4
      %v801 = vshll.u32 %v781, 16
      %v803 = vrot.slane %v801, 5
      %v804 = vor.u32 %v800, %v803
      %v805 = vrot.slane %v804, 4
      %v807 = vshll.u32 %v782, 16
      %v809 = vrot.slane %v807, 5
      %v810 = vsel %vm343, %v805, %v809
      %v812 = vshrl.u32 %v783, 16
      %v814 = vrot.slane %v812, 4
      %v815 = vshll.u32 %v783, 16
      %v817 = vrot.slane %v815, 5
      %v818 = vor.u32 %v814, %v817
      %v819 = vrot.slane %v818, 4
      %v821 = vshll.u32 %v784, 16
      %v823 = vrot.slane %v821, 5
      %v824 = vsel %vm343, %v819, %v823
      %v826 = vshrl.u32 %v785, 16
      %v828 = vrot.slane %v826, 4
      %v829 = vshll.u32 %v785, 16
      %v831 = vrot.slane %v829, 5
      %v832 = vor.u32 %v828, %v831
      %v833 = vrot.slane %v832, 4
      %v835 = vshll.u32 %v786, 16
      %v837 = vrot.slane %v835, 5
      %v838 = vsel %vm343, %v833, %v837
      %v840 = vshrl.u32 %v787, 16
      %v842 = vrot.slane %v840, 4
      %v843 = vshll.u32 %v787, 16
      %v845 = vrot.slane %v843, 5
      %v846 = vor.u32 %v842, %v845
      %v847 = vrot.slane %v846, 4
      %v849 = vshll.u32 %v788, 16
      %v851 = vrot.slane %v849, 5
      %v852 = vsel %vm343, %v847, %v851
      %v854 = vshrl.u32 %v789, 16
      %v856 = vrot.slane %v854, 4
      %v857 = vshll.u32 %v789, 16
      %v859 = vrot.slane %v857, 5
      %v860 = vor.u32 %v856, %v859
      %v861 = vrot.slane %v860, 4
      %v863 = vshll.u32 %v790, 16
      %v865 = vrot.slane %v863, 5
      %v866 = vsel %vm343, %v861, %v865
      %v868 = vshrl.u32 %v791, 16
      %v870 = vrot.slane %v868, 4
      %v871 = vshll.u32 %v791, 16
      %v873 = vrot.slane %v871, 5
      %v874 = vor.u32 %v870, %v873
      %v875 = vrot.slane %v874, 4
      %v877 = vshll.u32 %v792, 16
      %v879 = vrot.slane %v877, 5
      %v880 = vsel %vm343, %v875, %v879
      %v882 = vshrl.u32 %v793, 16
      %v884 = vrot.slane %v882, 4
      %v885 = vshll.u32 %v793, 16
      %v887 = vrot.slane %v885, 5
      %v888 = vor.u32 %v884, %v887
      %v889 = vrot.slane %v888, 4
      %v891 = vshll.u32 %v794, 16
      %v893 = vrot.slane %v891, 5
      %v894 = vsel %vm343, %v889, %v893
      %v896 = vshrl.u32 %v795, 16
      %v898 = vrot.slane %v896, 4
      %v899 = vshll.u32 %v795, 16
      %v901 = vrot.slane %v899, 5
      %v902 = vor.u32 %v898, %v901
      %v903 = vrot.slane %v902, 4
      %v905 = vshll.u32 %v796, 16
      %v907 = vrot.slane %v905, 5
      %v908 = vsel %vm343, %v903, %v907
      %v909 = vunpack.c.l.b16 %v810
      %v910 = vunpack.c.l.b16 %v824
      %v911 = vunpack.c.l.b16 %v838
      %v912 = vunpack.c.l.b16 %v852
      %v913 = vunpack.c.l.b16 %v866
      %v914 = vunpack.c.l.b16 %v880
      %v915 = vunpack.c.l.b16 %v894
      %v916 = vunpack.c.l.b16 %v908
      %v917 = vpack.c.b16 %v910, %v909
      %v918 = vpack.c.b16 %v912, %v911
      %v919 = vpack.c.b16 %v914, %v913
      %v920 = vpack.c.b16 %v916, %v915
      %925 = vst [vmem:[#allocation2 + $0x40] sm:$0xff] %v917
      %926 = vst [vmem:[#allocation2 + $0x88] sm:$0xff] %v918
      %927 = vst [vmem:[#allocation2 + $0xd0] sm:$0xff] %v919
      %928 = vst [vmem:[#allocation2 + $0x118] sm:$0xff] %v920
      %v929 = vld [vmem:[#allocation2] sm:$0xff]
      %v930 = vld [vmem:[#allocation2 + $0x8] sm:$0xff]
      %v931 = vld [vmem:[#allocation2 + $0x10] sm:$0xff]
      %v932 = vld [vmem:[#allocation2 + $0x18] sm:$0xff]
      %v933 = vld [vmem:[#allocation2 + $0x20] sm:$0xff]
      %v934 = vld [vmem:[#allocation2 + $0x28] sm:$0xff]
      %v935 = vld [vmem:[#allocation2 + $0x30] sm:$0xff]
      %v936 = vld [vmem:[#allocation2 + $0x38] sm:$0xff]
      %v937 = vld [vmem:[#allocation2 + $0x40] sm:$0xff]
      %v938 = vld [vmem:[#allocation2 + $0x48] sm:$0xff]
      %v939 = vld [vmem:[#allocation2 + $0x50] sm:$0xff]
      %v940 = vld [vmem:[#allocation2 + $0x58] sm:$0xff]
      %v941 = vld [vmem:[#allocation2 + $0x60] sm:$0xff]
      %v942 = vld [vmem:[#allocation2 + $0x68] sm:$0xff]
      %v943 = vld [vmem:[#allocation2 + $0x70] sm:$0xff]
      %v944 = vld [vmem:[#allocation2 + $0x78] sm:$0xff]
      %v945 = vld [vmem:[#allocation2 + $0x80] sm:$0xff]
      %v946 = vld [vmem:[#allocation2 + $0x88] sm:$0xff]
      %v947 = vld [vmem:[#allocation2 + $0x90] sm:$0xff]
      %v948 = vld [vmem:[#allocation2 + $0x98] sm:$0xff]
      %v949 = vld [vmem:[#allocation2 + $0xa0] sm:$0xff]
      %v950 = vld [vmem:[#allocation2 + $0xa8] sm:$0xff]
      %v951 = vld [vmem:[#allocation2 + $0xb0] sm:$0xff]
      %v952 = vld [vmem:[#allocation2 + $0xb8] sm:$0xff]
      %v953 = vld [vmem:[#allocation2 + $0xc0] sm:$0xff]
      %v954 = vld [vmem:[#allocation2 + $0xc8] sm:$0xff]
      %v955 = vld [vmem:[#allocation2 + $0xd0] sm:$0xff]
      %v956 = vld [vmem:[#allocation2 + $0xd8] sm:$0xff]
      %v957 = vld [vmem:[#allocation2 + $0xe0] sm:$0xff]
      %v958 = vld [vmem:[#allocation2 + $0xe8] sm:$0xff]
      %v959 = vld [vmem:[#allocation2 + $0xf0] sm:$0xff]
      %v960 = vld [vmem:[#allocation2 + $0xf8] sm:$0xff]
      %v961 = vld [vmem:[#allocation2 + $0x100] sm:$0xff]
      %v962 = vld [vmem:[#allocation2 + $0x108] sm:$0xff]
      %v963 = vld [vmem:[#allocation2 + $0x110] sm:$0xff]
      %v964 = vld [vmem:[#allocation2 + $0x118] sm:$0xff]
      %v965 = vld [vmem:[%s228] sm:$0xf]
      %v966 = vld [vmem:[%s228 + $0x4] sm:$0xf]
      %v967 = vld [vmem:[%s228 + $0x8] sm:$0xf]
      %v968 = vld [vmem:[%s228 + $0xc] sm:$0xf]
      %v969 = vld [vmem:[%s228 + $0x10] sm:$0xf]
      %v970 = vld [vmem:[%s228 + $0x14] sm:$0xf]
      %v971 = vld [vmem:[%s228 + $0x18] sm:$0xf]
      %v972 = vld [vmem:[%s228 + $0x1c] sm:$0xf]
      %v973 = vld [vmem:[%s228 + $0x20] sm:$0xf]
      %v974 = vld [vmem:[%s228 + $0x24] sm:$0xf]
      %v975 = vld [vmem:[%s228 + $0x28] sm:$0xf]
      %v976 = vld [vmem:[%s228 + $0x2c] sm:$0xf]
      %v977 = vld [vmem:[%s228 + $0x30] sm:$0xf]
      %v978 = vld [vmem:[%s228 + $0x34] sm:$0xf]
      %v979 = vld [vmem:[%s228 + $0x38] sm:$0xf]
      %v980 = vld [vmem:[%s228 + $0x3c] sm:$0xf]
      %v981 = vld [vmem:[%s228 + $0x40] sm:$0xf]
      %v982 = vld [vmem:[%s228 + $0x44] sm:$0xf]
      %v983 = vld [vmem:[%s228 + $0x48] sm:$0xf]
      %v984 = vld [vmem:[%s228 + $0x4c] sm:$0xf]
      %v985 = vld [vmem:[%s228 + $0x50] sm:$0xf]
      %v986 = vld [vmem:[%s228 + $0x54] sm:$0xf]
      %v987 = vld [vmem:[%s228 + $0x58] sm:$0xf]
      %v988 = vld [vmem:[%s228 + $0x5c] sm:$0xf]
      %v989 = vld [vmem:[%s228 + $0x60] sm:$0xf]
      %v990 = vld [vmem:[%s228 + $0x64] sm:$0xf]
      %v991 = vld [vmem:[%s228 + $0x68] sm:$0xf]
      %v992 = vld [vmem:[%s228 + $0x6c] sm:$0xf]
      %v993 = vld [vmem:[%s228 + $0x70] sm:$0xf]
      %v994 = vld [vmem:[%s228 + $0x74] sm:$0xf]
      %v995 = vld [vmem:[%s228 + $0x78] sm:$0xf]
      %v996 = vld [vmem:[%s228 + $0x7c] sm:$0xf]
      %v997 = vld [vmem:[%s228 + $0x80] sm:$0xf]
      %v998 = vld [vmem:[%s228 + $0x84] sm:$0xf]
      %v999 = vld [vmem:[%s228 + $0x88] sm:$0xf]
      %v1000 = vld [vmem:[%s228 + $0x8c] sm:$0xf]
      %v1001 = vld [vmem:[%s228 + $0x90] sm:$0xf]
      %v1002 = vld [vmem:[%s228 + $0x94] sm:$0xf]
      %v1003 = vld [vmem:[%s228 + $0x98] sm:$0xf]
      %v1004 = vld [vmem:[%s228 + $0x9c] sm:$0xf]
      %v1005 = vld [vmem:[%s228 + $0xa0] sm:$0xf]
      %v1006 = vld [vmem:[%s228 + $0xa4] sm:$0xf]
      %v1007 = vld [vmem:[%s228 + $0xa8] sm:$0xf]
      %v1008 = vld [vmem:[%s228 + $0xac] sm:$0xf]
      %v1009 = vld [vmem:[%s228 + $0xb0] sm:$0xf]
      %v1010 = vld [vmem:[%s228 + $0xb4] sm:$0xf]
      %v1011 = vld [vmem:[%s228 + $0xb8] sm:$0xf]
      %v1012 = vld [vmem:[%s228 + $0xbc] sm:$0xf]
      %v1013 = vld [vmem:[%s228 + $0xc0] sm:$0xf]
      %v1014 = vld [vmem:[%s228 + $0xc4] sm:$0xf]
      %v1015 = vld [vmem:[%s228 + $0xc8] sm:$0xf]
      %v1016 = vld [vmem:[%s228 + $0xcc] sm:$0xf]
      %v1017 = vld [vmem:[%s228 + $0xd0] sm:$0xf]
      %v1018 = vld [vmem:[%s228 + $0xd4] sm:$0xf]
      %v1019 = vld [vmem:[%s228 + $0xd8] sm:$0xf]
      %v1020 = vld [vmem:[%s228 + $0xdc] sm:$0xf]
      %v1021 = vld [vmem:[%s228 + $0xe0] sm:$0xf]
      %v1022 = vld [vmem:[%s228 + $0xe4] sm:$0xf]
      %v1023 = vld [vmem:[%s228 + $0xe8] sm:$0xf]
      %v1024 = vld [vmem:[%s228 + $0xec] sm:$0xf]
      %v1025 = vld [vmem:[%s228 + $0xf0] sm:$0xf]
      %v1026 = vld [vmem:[%s228 + $0xf4] sm:$0xf]
      %v1027 = vld [vmem:[%s228 + $0xf8] sm:$0xf]
      %v1028 = vld [vmem:[%s228 + $0xfc] sm:$0xf]
      %v1029 = vld [vmem:[%s228 + $0x100] sm:$0xf]
      %v1030 = vld [vmem:[%s228 + $0x104] sm:$0xf]
      %v1031 = vld [vmem:[%s228 + $0x108] sm:$0xf]
      %v1032 = vld [vmem:[%s228 + $0x10c] sm:$0xf]
      %v1033 = vld [vmem:[%s228 + $0x110] sm:$0xf]
      %v1034 = vld [vmem:[%s228 + $0x114] sm:$0xf]
      %v1035 = vld [vmem:[%s228 + $0x118] sm:$0xf]
      %v1036 = vld [vmem:[%s228 + $0x11c] sm:$0xf]
      %v1037 = vld [vmem:[%s228 + $0x120] sm:$0xf]
      %v1038 = vld [vmem:[%s228 + $0x124] sm:$0xf]
      %v1039 = vld [vmem:[%s228 + $0x128] sm:$0xf]
      %v1040 = vld [vmem:[%s228 + $0x12c] sm:$0xf]
      %v1041 = vld [vmem:[%s228 + $0x130] sm:$0xf]
      %v1042 = vld [vmem:[%s228 + $0x134] sm:$0xf]
      %v1043 = vld [vmem:[%s228 + $0x138] sm:$0xf]
      %v1044 = vld [vmem:[%s228 + $0x13c] sm:$0xf]
      %v1045 = vld [vmem:[%s228 + $0x140] sm:$0xf]
      %v1046 = vld [vmem:[%s228 + $0x144] sm:$0xf]
      %v1047 = vld [vmem:[%s228 + $0x148] sm:$0xf]
      %v1048 = vld [vmem:[%s228 + $0x14c] sm:$0xf]
      %v1049 = vld [vmem:[%s228 + $0x150] sm:$0xf]
      %v1050 = vld [vmem:[%s228 + $0x154] sm:$0xf]
      %v1051 = vld [vmem:[%s228 + $0x158] sm:$0xf]
      %v1052 = vld [vmem:[%s228 + $0x15c] sm:$0xf]
      %v1053 = vld [vmem:[%s228 + $0x160] sm:$0xf]
      %v1054 = vld [vmem:[%s228 + $0x164] sm:$0xf]
      %v1055 = vld [vmem:[%s228 + $0x168] sm:$0xf]
      %v1056 = vld [vmem:[%s228 + $0x16c] sm:$0xf]
      %v1057 = vld [vmem:[%s228 + $0x170] sm:$0xf]
      %v1058 = vld [vmem:[%s228 + $0x174] sm:$0xf]
      %v1059 = vld [vmem:[%s228 + $0x178] sm:$0xf]
      %v1060 = vld [vmem:[%s228 + $0x17c] sm:$0xf]
      %v1061 = vld [vmem:[%s228 + $0x180] sm:$0xf]
      %v1062 = vld [vmem:[%s228 + $0x184] sm:$0xf]
      %v1063 = vld [vmem:[%s228 + $0x188] sm:$0xf]
      %v1064 = vld [vmem:[%s228 + $0x18c] sm:$0xf]
      %v1065 = vld [vmem:[%s228 + $0x190] sm:$0xf]
      %v1066 = vld [vmem:[%s228 + $0x194] sm:$0xf]
      %v1067 = vld [vmem:[%s228 + $0x198] sm:$0xf]
      %v1068 = vld [vmem:[%s228 + $0x19c] sm:$0xf]
      %v1069 = vld [vmem:[%s228 + $0x1a0] sm:$0xf]
      %v1070 = vld [vmem:[%s228 + $0x1a4] sm:$0xf]
      %v1071 = vld [vmem:[%s228 + $0x1a8] sm:$0xf]
      %v1072 = vld [vmem:[%s228 + $0x1ac] sm:$0xf]
      %v1073 = vld [vmem:[%s228 + $0x1b0] sm:$0xf]
      %v1074 = vld [vmem:[%s228 + $0x1b4] sm:$0xf]
      %v1075 = vld [vmem:[%s228 + $0x1b8] sm:$0xf]
      %v1076 = vld [vmem:[%s228 + $0x1bc] sm:$0xf]
      %v1077 = vld [vmem:[%s228 + $0x1c0] sm:$0xf]
      %v1078 = vld [vmem:[%s228 + $0x1c4] sm:$0xf]
      %v1079 = vld [vmem:[%s228 + $0x1c8] sm:$0xf]
      %v1080 = vld [vmem:[%s228 + $0x1cc] sm:$0xf]
      %v1081 = vld [vmem:[%s228 + $0x1d0] sm:$0xf]
      %v1082 = vld [vmem:[%s228 + $0x1d4] sm:$0xf]
      %v1083 = vld [vmem:[%s228 + $0x1d8] sm:$0xf]
      %v1084 = vld [vmem:[%s228 + $0x1dc] sm:$0xf]
      %v1085 = vld [vmem:[%s228 + $0x1e0] sm:$0xf]
      %v1086 = vld [vmem:[%s228 + $0x1e4] sm:$0xf]
      %v1087 = vld [vmem:[%s228 + $0x1e8] sm:$0xf]
      %v1088 = vld [vmem:[%s228 + $0x1ec] sm:$0xf]
      %v1089 = vld [vmem:[%s228 + $0x1f0] sm:$0xf]
      %v1090 = vld [vmem:[%s228 + $0x1f4] sm:$0xf]
      %v1091 = vld [vmem:[%s228 + $0x1f8] sm:$0xf]
      %v1092 = vld [vmem:[%s228 + $0x1fc] sm:$0xf]
      %v1093 = vld [vmem:[%s228 + $0x200] sm:$0xf]
      %v1094 = vld [vmem:[%s228 + $0x204] sm:$0xf]
      %v1095 = vld [vmem:[%s228 + $0x208] sm:$0xf]
      %v1096 = vld [vmem:[%s228 + $0x20c] sm:$0xf]
      %v1097 = vld [vmem:[%s228 + $0x210] sm:$0xf]
      %v1098 = vld [vmem:[%s228 + $0x214] sm:$0xf]
      %v1099 = vld [vmem:[%s228 + $0x218] sm:$0xf]
      %v1100 = vld [vmem:[%s228 + $0x21c] sm:$0xf]
      %v1101 = vld [vmem:[%s228 + $0x220] sm:$0xf]
      %v1102 = vld [vmem:[%s228 + $0x224] sm:$0xf]
      %v1103 = vld [vmem:[%s228 + $0x228] sm:$0xf]
      %v1104 = vld [vmem:[%s228 + $0x22c] sm:$0xf]
      %v1105 = vld [vmem:[%s228 + $0x230] sm:$0xf]
      %v1106 = vld [vmem:[%s228 + $0x234] sm:$0xf]
      %v1107 = vld [vmem:[%s228 + $0x238] sm:$0xf]
      %v1108 = vld [vmem:[%s228 + $0x23c] sm:$0xf]
      %v1109 = vld [vmem:[%s231] sm:$0x1]
      %v1111 = vlaneseq
      %v1112 = vshrl.u32 %v1111, 7
      %v1113 = vsub.s32 0, %v1112
      %v1114 = vrot.slane %v1109, %v1113
      %v1260 = vunpack.c.l.b16 %v965
      %v1261 = vunpack.c.l.b16 %v966
      %v1262 = vunpack.c.l.b16 %v967
      %v1263 = vunpack.c.l.b16 %v968
      %v1264 = vunpack.c.l.b16 %v969
      %v1265 = vunpack.c.l.b16 %v970
      %v1266 = vunpack.c.l.b16 %v971
      %v1267 = vunpack.c.l.b16 %v972
      %v1268 = vunpack.c.l.b16 %v973
      %v1269 = vunpack.c.l.b16 %v974
      %v1270 = vunpack.c.l.b16 %v975
      %v1271 = vunpack.c.l.b16 %v976
      %v1272 = vunpack.c.l.b16 %v977
      %v1273 = vunpack.c.l.b16 %v978
      %v1274 = vunpack.c.l.b16 %v979
      %v1275 = vunpack.c.l.b16 %v980
      %v1276 = vunpack.c.l.b16 %v981
      %v1277 = vunpack.c.l.b16 %v982
      %v1278 = vunpack.c.l.b16 %v983
      %v1279 = vunpack.c.l.b16 %v984
      %v1280 = vunpack.c.l.b16 %v985
      %v1281 = vunpack.c.l.b16 %v986
      %v1282 = vunpack.c.l.b16 %v987
      %v1283 = vunpack.c.l.b16 %v988
      %v1284 = vunpack.c.l.b16 %v989
      %v1285 = vunpack.c.l.b16 %v990
      %v1286 = vunpack.c.l.b16 %v991
      %v1287 = vunpack.c.l.b16 %v992
      %v1288 = vunpack.c.l.b16 %v993
      %v1289 = vunpack.c.l.b16 %v994
      %v1290 = vunpack.c.l.b16 %v995
      %v1291 = vunpack.c.l.b16 %v996
      %v1292 = vunpack.c.l.b16 %v997
      %v1293 = vunpack.c.l.b16 %v998
      %v1294 = vunpack.c.l.b16 %v999
      %v1295 = vunpack.c.l.b16 %v1000
      %v1296 = vunpack.c.l.b16 %v1001
      %v1297 = vunpack.c.l.b16 %v1002
      %v1298 = vunpack.c.l.b16 %v1003
      %v1299 = vunpack.c.l.b16 %v1004
      %v1300 = vunpack.c.l.b16 %v1005
      %v1301 = vunpack.c.l.b16 %v1006
      %v1302 = vunpack.c.l.b16 %v1007
      %v1303 = vunpack.c.l.b16 %v1008
      %v1304 = vunpack.c.l.b16 %v1009
      %v1305 = vunpack.c.l.b16 %v1010
      %v1306 = vunpack.c.l.b16 %v1011
      %v1307 = vunpack.c.l.b16 %v1012
      %v1308 = vunpack.c.l.b16 %v1013
      %v1309 = vunpack.c.l.b16 %v1014
      %v1310 = vunpack.c.l.b16 %v1015
      %v1311 = vunpack.c.l.b16 %v1016
      %v1312 = vunpack.c.l.b16 %v1017
      %v1313 = vunpack.c.l.b16 %v1018
      %v1314 = vunpack.c.l.b16 %v1019
      %v1315 = vunpack.c.l.b16 %v1020
      %v1316 = vunpack.c.l.b16 %v1021
      %v1317 = vunpack.c.l.b16 %v1022
      %v1318 = vunpack.c.l.b16 %v1023
      %v1319 = vunpack.c.l.b16 %v1024
      %v1320 = vunpack.c.l.b16 %v1025
      %v1321 = vunpack.c.l.b16 %v1026
      %v1322 = vunpack.c.l.b16 %v1027
      %v1323 = vunpack.c.l.b16 %v1028
      %v1324 = vunpack.c.l.b16 %v1029
      %v1325 = vunpack.c.l.b16 %v1030
      %v1326 = vunpack.c.l.b16 %v1031
      %v1327 = vunpack.c.l.b16 %v1032
      %v1328 = vunpack.c.l.b16 %v1033
      %v1329 = vunpack.c.l.b16 %v1034
      %v1330 = vunpack.c.l.b16 %v1035
      %v1331 = vunpack.c.l.b16 %v1036
      %v1332 = vunpack.c.l.b16 %v1037
      %v1333 = vunpack.c.l.b16 %v1038
      %v1334 = vunpack.c.l.b16 %v1039
      %v1335 = vunpack.c.l.b16 %v1040
      %v1336 = vunpack.c.l.b16 %v1041
      %v1337 = vunpack.c.l.b16 %v1042
      %v1338 = vunpack.c.l.b16 %v1043
      %v1339 = vunpack.c.l.b16 %v1044
      %v1340 = vunpack.c.l.b16 %v1045
      %v1341 = vunpack.c.l.b16 %v1046
      %v1342 = vunpack.c.l.b16 %v1047
      %v1343 = vunpack.c.l.b16 %v1048
      %v1344 = vunpack.c.l.b16 %v1049
      %v1345 = vunpack.c.l.b16 %v1050
      %v1346 = vunpack.c.l.b16 %v1051
      %v1347 = vunpack.c.l.b16 %v1052
      %v1348 = vunpack.c.l.b16 %v1053
      %v1349 = vunpack.c.l.b16 %v1054
      %v1350 = vunpack.c.l.b16 %v1055
      %v1351 = vunpack.c.l.b16 %v1056
      %v1352 = vunpack.c.l.b16 %v1057
      %v1353 = vunpack.c.l.b16 %v1058
      %v1354 = vunpack.c.l.b16 %v1059
      %v1355 = vunpack.c.l.b16 %v1060
      %v1356 = vunpack.c.l.b16 %v1061
      %v1357 = vunpack.c.l.b16 %v1062
      %v1358 = vunpack.c.l.b16 %v1063
      %v1359 = vunpack.c.l.b16 %v1064
      %v1360 = vunpack.c.l.b16 %v1065
      %v1361 = vunpack.c.l.b16 %v1066
      %v1362 = vunpack.c.l.b16 %v1067
      %v1363 = vunpack.c.l.b16 %v1068
      %v1364 = vunpack.c.l.b16 %v1069
      %v1365 = vunpack.c.l.b16 %v1070
      %v1366 = vunpack.c.l.b16 %v1071
      %v1367 = vunpack.c.l.b16 %v1072
      %v1368 = vunpack.c.l.b16 %v1073
      %v1369 = vunpack.c.l.b16 %v1074
      %v1370 = vunpack.c.l.b16 %v1075
      %v1371 = vunpack.c.l.b16 %v1076
      %v1372 = vunpack.c.l.b16 %v1077
      %v1373 = vunpack.c.l.b16 %v1078
      %v1374 = vunpack.c.l.b16 %v1079
      %v1375 = vunpack.c.l.b16 %v1080
      %v1376 = vunpack.c.l.b16 %v1081
      %v1377 = vunpack.c.l.b16 %v1082
      %v1378 = vunpack.c.l.b16 %v1083
      %v1379 = vunpack.c.l.b16 %v1084
      %v1380 = vunpack.c.l.b16 %v1085
      %v1381 = vunpack.c.l.b16 %v1086
      %v1382 = vunpack.c.l.b16 %v1087
      %v1383 = vunpack.c.l.b16 %v1088
      %v1384 = vunpack.c.l.b16 %v1089
      %v1385 = vunpack.c.l.b16 %v1090
      %v1386 = vunpack.c.l.b16 %v1091
      %v1387 = vunpack.c.l.b16 %v1092
      %v1388 = vunpack.c.l.b16 %v1093
      %v1389 = vunpack.c.l.b16 %v1094
      %v1390 = vunpack.c.l.b16 %v1095
      %v1391 = vunpack.c.l.b16 %v1096
      %v1392 = vunpack.c.l.b16 %v1097
      %v1393 = vunpack.c.l.b16 %v1098
      %v1394 = vunpack.c.l.b16 %v1099
      %v1395 = vunpack.c.l.b16 %v1100
      %v1396 = vunpack.c.l.b16 %v1101
      %v1397 = vunpack.c.l.b16 %v1102
      %v1398 = vunpack.c.l.b16 %v1103
      %v1399 = vunpack.c.l.b16 %v1104
      %v1400 = vunpack.c.l.b16 %v1105
      %v1401 = vunpack.c.l.b16 %v1106
      %v1402 = vunpack.c.l.b16 %v1107
      %v1403 = vunpack.c.l.b16 %v1108
      %v1404 = vpack.c.b16 %v1261, %v1260
      %v1405 = vpack.c.b16 %v1263, %v1262
      %v1406 = vpack.c.b16 %v1265, %v1264
      %v1407 = vpack.c.b16 %v1267, %v1266
      %v1408 = vpack.c.b16 %v1269, %v1268
      %v1409 = vpack.c.b16 %v1271, %v1270
      %v1410 = vpack.c.b16 %v1273, %v1272
      %v1411 = vpack.c.b16 %v1275, %v1274
      %v1412 = vpack.c.b16 %v1277, %v1276
      %v1413 = vpack.c.b16 %v1279, %v1278
      %v1414 = vpack.c.b16 %v1281, %v1280
      %v1415 = vpack.c.b16 %v1283, %v1282
      %v1416 = vpack.c.b16 %v1285, %v1284
      %v1417 = vpack.c.b16 %v1287, %v1286
      %v1418 = vpack.c.b16 %v1289, %v1288
      %v1419 = vpack.c.b16 %v1291, %v1290
      %v1420 = vpack.c.b16 %v1293, %v1292
      %v1421 = vpack.c.b16 %v1295, %v1294
      %v1422 = vpack.c.b16 %v1297, %v1296
      %v1423 = vpack.c.b16 %v1299, %v1298
      %v1424 = vpack.c.b16 %v1301, %v1300
      %v1425 = vpack.c.b16 %v1303, %v1302
      %v1426 = vpack.c.b16 %v1305, %v1304
      %v1427 = vpack.c.b16 %v1307, %v1306
      %v1428 = vpack.c.b16 %v1309, %v1308
      %v1429 = vpack.c.b16 %v1311, %v1310
      %v1430 = vpack.c.b16 %v1313, %v1312
      %v1431 = vpack.c.b16 %v1315, %v1314
      %v1432 = vpack.c.b16 %v1317, %v1316
      %v1433 = vpack.c.b16 %v1319, %v1318
      %v1434 = vpack.c.b16 %v1321, %v1320
      %v1435 = vpack.c.b16 %v1323, %v1322
      %v1436 = vpack.c.b16 %v1325, %v1324
      %v1437 = vpack.c.b16 %v1327, %v1326
      %v1438 = vpack.c.b16 %v1329, %v1328
      %v1439 = vpack.c.b16 %v1331, %v1330
      %v1440 = vpack.c.b16 %v1333, %v1332
      %v1441 = vpack.c.b16 %v1335, %v1334
      %v1442 = vpack.c.b16 %v1337, %v1336
      %v1443 = vpack.c.b16 %v1339, %v1338
      %v1444 = vpack.c.b16 %v1341, %v1340
      %v1445 = vpack.c.b16 %v1343, %v1342
      %v1446 = vpack.c.b16 %v1345, %v1344
      %v1447 = vpack.c.b16 %v1347, %v1346
      %v1448 = vpack.c.b16 %v1349, %v1348
      %v1449 = vpack.c.b16 %v1351, %v1350
      %v1450 = vpack.c.b16 %v1353, %v1352
      %v1451 = vpack.c.b16 %v1355, %v1354
      %v1452 = vpack.c.b16 %v1357, %v1356
      %v1453 = vpack.c.b16 %v1359, %v1358
      %v1454 = vpack.c.b16 %v1361, %v1360
      %v1455 = vpack.c.b16 %v1363, %v1362
      %v1456 = vpack.c.b16 %v1365, %v1364
      %v1457 = vpack.c.b16 %v1367, %v1366
      %v1458 = vpack.c.b16 %v1369, %v1368
      %v1459 = vpack.c.b16 %v1371, %v1370
      %v1460 = vpack.c.b16 %v1373, %v1372
      %v1461 = vpack.c.b16 %v1375, %v1374
      %v1462 = vpack.c.b16 %v1377, %v1376
      %v1463 = vpack.c.b16 %v1379, %v1378
      %v1464 = vpack.c.b16 %v1381, %v1380
      %v1465 = vpack.c.b16 %v1383, %v1382
      %v1466 = vpack.c.b16 %v1385, %v1384
      %v1467 = vpack.c.b16 %v1387, %v1386
      %v1468 = vpack.c.b16 %v1389, %v1388
      %v1469 = vpack.c.b16 %v1391, %v1390
      %v1470 = vpack.c.b16 %v1393, %v1392
      %v1471 = vpack.c.b16 %v1395, %v1394
      %v1472 = vpack.c.b16 %v1397, %v1396
      %v1473 = vpack.c.b16 %v1399, %v1398
      %v1474 = vpack.c.b16 %v1401, %v1400
      %v1475 = vpack.c.b16 %v1403, %v1402
      %1548 = vmatprep.subr.bf16.mxu0 0
      %1549 = vmatpush1.bf16.msra.mxu0 %v1404
      %1550 = vmatprep.subr.bf16.mxu0 0
      %1551 = vmatpush1.bf16.msra.mxu0 %v1405
      %1552 = vmatprep.subr.bf16.mxu0 0
      %1553 = vmatpush1.bf16.msra.mxu0 %v1406
      %1554 = vmatprep.subr.bf16.mxu0 0
      %1555 = vmatpush1.bf16.msra.mxu0 %v1407
      %1556 = vmatprep.subr.bf16.mxu0 0
      %1557 = vmatpush1.bf16.msra.mxu0 %v1408
      %1558 = vmatprep.subr.bf16.mxu0 0
      %1559 = vmatpush1.bf16.msra.mxu0 %v1409
      %1560 = vmatprep.subr.bf16.mxu0 0
      %1561 = vmatpush1.bf16.msra.mxu0 %v1410
      %1562 = vmatprep.subr.bf16.mxu0 0
      %1563 = vmatpush1.bf16.msra.mxu0 %v1411
      %1564 = vmatprep.subr.bf16.mxu0 0
      %1565 = vmatpush1.bf16.msra.mxu0 %v1412
      %1566 = vmatprep.subr.bf16.mxu0 0
      %1567 = vmatpush1.bf16.msra.mxu0 %v1413
      %1568 = vmatprep.subr.bf16.mxu0 0
      %1569 = vmatpush1.bf16.msra.mxu0 %v1414
      %1570 = vmatprep.subr.bf16.mxu0 0
      %1571 = vmatpush1.bf16.msra.mxu0 %v1415
      %1572 = vmatprep.subr.bf16.mxu0 0
      %1573 = vmatpush1.bf16.msra.mxu0 %v1416
      %1574 = vmatprep.subr.bf16.mxu0 0
      %1575 = vmatpush1.bf16.msra.mxu0 %v1417
      %1576 = vmatprep.subr.bf16.mxu0 0
      %1577 = vmatpush1.bf16.msra.mxu0 %v1418
      %1578 = vmatprep.subr.bf16.mxu0 0
      %1579 = vmatpush1.bf16.msra.mxu0 %v1419
      %1580 = vmatprep.mubr.bf16.mxu0 %v930
      %1581 = vmatmul.mubr.bf16.gmra.mrb[0].mxu0 %v929
      %v1582 = vpop.f32.mrb[0].mxu0
      %v1583 = vadd.f32 %v1114, %v1582
      %v1584 = vpop.f32.mrb[0].mxu0
      %v1585 = vpop.f32.mrb[0].mxu0
      %v1586 = vadd.f32 %v1114, %v1585
      %v1587 = vpop.f32.mrb[0].mxu0
      %1588 = vmatprep.mubr.bf16.mxu0 %v939
      %1589 = vmatmul.mubr.bf16.gmra.mrb[0].mxu0 %v938
      %v1590 = vpop.f32.mrb[0].mxu0
      %v1591 = vadd.f32 %v1114, %v1590
      %v1592 = vpop.f32.mrb[0].mxu0
      %v1593 = vpop.f32.mrb[0].mxu0
      %v1594 = vadd.f32 %v1114, %v1593
      %v1595 = vpop.f32.mrb[0].mxu0
      %1596 = vmatprep.mubr.bf16.mxu0 %v948
      %1597 = vmatmul.mubr.bf16.gmra.mrb[0].mxu0 %v947
      %v1598 = vpop.f32.mrb[0].mxu0
      %v1599 = vadd.f32 %v1114, %v1598
      %v1600 = vpop.f32.mrb[0].mxu0
      %v1601 = vpop.f32.mrb[0].mxu0
      %v1602 = vadd.f32 %v1114, %v1601
      %v1603 = vpop.f32.mrb[0].mxu0
      %1604 = vmatprep.mubr.bf16.mxu0 %v957
      %1605 = vmatmul.mubr.bf16.gmra.mrb[0].mxu0 %v956
      %v1606 = vpop.f32.mrb[0].mxu0
      %v1607 = vadd.f32 %v1114, %v1606
      %v1608 = vpop.f32.mrb[0].mxu0
      %v1609 = vpop.f32.mrb[0].mxu0
      %v1610 = vadd.f32 %v1114, %v1609
      %v1611 = vpop.f32.mrb[0].mxu0
      %1612 = vdwg.mxu0
      %1613 = vmatprep.subr.bf16.mxu0 0
      %1614 = vmatpush1.bf16.msra.mxu0 %v1420
      %1615 = vmatprep.subr.bf16.mxu0 0
      %1616 = vmatpush1.bf16.msra.mxu0 %v1421
      %1617 = vmatprep.subr.bf16.mxu0 0
      %1618 = vmatpush1.bf16.msra.mxu0 %v1422
      %1619 = vmatprep.subr.bf16.mxu0 0
      %1620 = vmatpush1.bf16.msra.mxu0 %v1423
      %1621 = vmatprep.subr.bf16.mxu0 0
      %1622 = vmatpush1.bf16.msra.mxu0 %v1424
      %1623 = vmatprep.subr.bf16.mxu0 0
      %1624 = vmatpush1.bf16.msra.mxu0 %v1425
      %1625 = vmatprep.subr.bf16.mxu0 0
      %1626 = vmatpush1.bf16.msra.mxu0 %v1426
      %1627 = vmatprep.subr.bf16.mxu0 0
      %1628 = vmatpush1.bf16.msra.mxu0 %v1427
      %1629 = vmatprep.subr.bf16.mxu0 0
      %1630 = vmatpush1.bf16.msra.mxu0 %v1428
      %1631 = vmatprep.subr.bf16.mxu0 0
      %1632 = vmatpush1.bf16.msra.mxu0 %v1429
      %1633 = vmatprep.subr.bf16.mxu0 0
      %1634 = vmatpush1.bf16.msra.mxu0 %v1430
      %1635 = vmatprep.subr.bf16.mxu0 0
      %1636 = vmatpush1.bf16.msra.mxu0 %v1431
      %1637 = vmatprep.subr.bf16.mxu0 0
      %1638 = vmatpush1.bf16.msra.mxu0 %v1432
      %1639 = vmatprep.subr.bf16.mxu0 0
      %1640 = vmatpush1.bf16.msra.mxu0 %v1433
      %1641 = vmatprep.subr.bf16.mxu0 0
      %1642 = vmatpush1.bf16.msra.mxu0 %v1434
      %1643 = vmatprep.subr.bf16.mxu0 0
      %1644 = vmatpush1.bf16.msra.mxu0 %v1435
      %1645 = vmatprep.mubr.bf16.mxu0 %v932
      %1646 = vmatmul.mubr.bf16.gmra.mrb[0].mxu0 %v931
      %v1647 = vpop.f32.mrb[0].mxu0
      %v1648 = vadd.f32 %v1583, %v1647
      %v1649 = vpop.f32.mrb[0].mxu0
      %v1650 = vpop.f32.mrb[0].mxu0
      %v1651 = vadd.f32 %v1586, %v1650
      %v1652 = vpop.f32.mrb[0].mxu0
      %1653 = vmatprep.mubr.bf16.mxu0 %v941
      %1654 = vmatmul.mubr.bf16.gmra.mrb[0].mxu0 %v940
      %v1655 = vpop.f32.mrb[0].mxu0
      %v1656 = vadd.f32 %v1591, %v1655
      %v1657 = vpop.f32.mrb[0].mxu0
      %v1658 = vpop.f32.mrb[0].mxu0
      %v1659 = vadd.f32 %v1594, %v1658
      %v1660 = vpop.f32.mrb[0].mxu0
      %1661 = vmatprep.mubr.bf16.mxu0 %v950
      %1662 = vmatmul.mubr.bf16.gmra.mrb[0].mxu0 %v949
      %v1663 = vpop.f32.mrb[0].mxu0
      %v1664 = vadd.f32 %v1599, %v1663
      %v1665 = vpop.f32.mrb[0].mxu0
      %v1666 = vpop.f32.mrb[0].mxu0
      %v1667 = vadd.f32 %v1602, %v1666
      %v1668 = vpop.f32.mrb[0].mxu0
      %1669 = vmatprep.mubr.bf16.mxu0 %v959
      %1670 = vmatmul.mubr.bf16.gmra.mrb[0].mxu0 %v958
      %v1671 = vpop.f32.mrb[0].mxu0
      %v1672 = vadd.f32 %v1607, %v1671
      %v1673 = vpop.f32.mrb[0].mxu0
      %v1674 = vpop.f32.mrb[0].mxu0
      %v1675 = vadd.f32 %v1610, %v1674
      %v1676 = vpop.f32.mrb[0].mxu0
      %1677 = vdwg.mxu0
      %1678 = vmatprep.subr.bf16.mxu0 0
      %1679 = vmatpush1.bf16.msra.mxu0 %v1436
      %1680 = vmatprep.subr.bf16.mxu0 0
      %1681 = vmatpush1.bf16.msra.mxu0 %v1437
      %1682 = vmatprep.subr.bf16.mxu0 0
      %1683 = vmatpush1.bf16.msra.mxu0 %v1438
      %1684 = vmatprep.subr.bf16.mxu0 0
      %1685 = vmatpush1.bf16.msra.mxu0 %v1439
      %1686 = vmatprep.subr.bf16.mxu0 0
      %1687 = vmatpush1.bf16.msra.mxu0 %v1440
      %1688 = vmatprep.subr.bf16.mxu0 0
      %1689 = vmatpush1.bf16.msra.mxu0 %v1441
      %1690 = vmatprep.subr.bf16.mxu0 0
      %1691 = vmatpush1.bf16.msra.mxu0 %v1442
      %1692 = vmatprep.subr.bf16.mxu0 0
      %1693 = vmatpush1.bf16.msra.mxu0 %v1443
      %1694 = vmatprep.subr.bf16.mxu0 0
      %1695 = vmatpush1.bf16.msra.mxu0 %v1444
      %1696 = vmatprep.subr.bf16.mxu0 0
      %1697 = vmatpush1.bf16.msra.mxu0 %v1445
      %1698 = vmatprep.subr.bf16.mxu0 0
      %1699 = vmatpush1.bf16.msra.mxu0 %v1446
      %1700 = vmatprep.subr.bf16.mxu0 0
      %1701 = vmatpush1.bf16.msra.mxu0 %v1447
      %1702 = vmatprep.subr.bf16.mxu0 0
      %1703 = vmatpush1.bf16.msra.mxu0 %v1448
      %1704 = vmatprep.subr.bf16.mxu0 0
      %1705 = vmatpush1.bf16.msra.mxu0 %v1449
      %1706 = vmatprep.subr.bf16.mxu0 0
      %1707 = vmatpush1.bf16.msra.mxu0 %v1450
      %1708 = vmatprep.subr.bf16.mxu0 0
      %1709 = vmatpush1.bf16.msra.mxu0 %v1451
      %1710 = vmatprep.mubr.bf16.mxu0 %v934
      %1711 = vmatmul.mubr.bf16.gmra.mrb[0].mxu0 %v933
      %v1712 = vpop.f32.mrb[0].mxu0
      %v1713 = vadd.f32 %v1648, %v1712
      %v1714 = vpop.f32.mrb[0].mxu0
      %v1715 = vpop.f32.mrb[0].mxu0
      %v1716 = vadd.f32 %v1651, %v1715
      %v1717 = vpop.f32.mrb[0].mxu0
      %1718 = vmatprep.mubr.bf16.mxu0 %v943
      %1719 = vmatmul.mubr.bf16.gmra.mrb[0].mxu0 %v942
      %v1720 = vpop.f32.mrb[0].mxu0
      %v1721 = vadd.f32 %v1656, %v1720
      %v1722 = vpop.f32.mrb[0].mxu0
      %v1723 = vpop.f32.mrb[0].mxu0
      %v1724 = vadd.f32 %v1659, %v1723
      %v1725 = vpop.f32.mrb[0].mxu0
      %1726 = vmatprep.mubr.bf16.mxu0 %v952
      %1727 = vmatmul.mubr.bf16.gmra.mrb[0].mxu0 %v951
      %v1728 = vpop.f32.mrb[0].mxu0
      %v1729 = vadd.f32 %v1664, %v1728
      %v1730 = vpop.f32.mrb[0].mxu0
      %v1731 = vpop.f32.mrb[0].mxu0
      %v1732 = vadd.f32 %v1667, %v1731
      %v1733 = vpop.f32.mrb[0].mxu0
      %1734 = vmatprep.mubr.bf16.mxu0 %v961
      %1735 = vmatmul.mubr.bf16.gmra.mrb[0].mxu0 %v960
      %v1736 = vpop.f32.mrb[0].mxu0
      %v1737 = vadd.f32 %v1672, %v1736
      %v1738 = vpop.f32.mrb[0].mxu0
      %v1739 = vpop.f32.mrb[0].mxu0
      %v1740 = vadd.f32 %v1675, %v1739
      %v1741 = vpop.f32.mrb[0].mxu0
      %1742 = vdwg.mxu0
      %1743 = vmatprep.subr.bf16.mxu0 0
      %1744 = vmatpush1.bf16.msra.mxu0 %v1452
      %1745 = vmatprep.subr.bf16.mxu0 0
      %1746 = vmatpush1.bf16.msra.mxu0 %v1453
      %1747 = vmatprep.subr.bf16.mxu0 0
      %1748 = vmatpush1.bf16.msra.mxu0 %v1454
      %1749 = vmatprep.subr.bf16.mxu0 0
      %1750 = vmatpush1.bf16.msra.mxu0 %v1455
      %1751 = vmatprep.subr.bf16.mxu0 0
      %1752 = vmatpush1.bf16.msra.mxu0 %v1456
      %1753 = vmatprep.subr.bf16.mxu0 0
      %1754 = vmatpush1.bf16.msra.mxu0 %v1457
      %1755 = vmatprep.subr.bf16.mxu0 0
      %1756 = vmatpush1.bf16.msra.mxu0 %v1458
      %1757 = vmatprep.subr.bf16.mxu0 0
      %1758 = vmatpush1.bf16.msra.mxu0 %v1459
      %1759 = vmatprep.subr.bf16.mxu0 0
      %1760 = vmatpush1.bf16.msra.mxu0 %v1460
      %1761 = vmatprep.subr.bf16.mxu0 0
      %1762 = vmatpush1.bf16.msra.mxu0 %v1461
      %1763 = vmatprep.subr.bf16.mxu0 0
      %1764 = vmatpush1.bf16.msra.mxu0 %v1462
      %1765 = vmatprep.subr.bf16.mxu0 0
      %1766 = vmatpush1.bf16.msra.mxu0 %v1463
      %1767 = vmatprep.subr.bf16.mxu0 0
      %1768 = vmatpush1.bf16.msra.mxu0 %v1464
      %1769 = vmatprep.subr.bf16.mxu0 0
      %1770 = vmatpush1.bf16.msra.mxu0 %v1465
      %1771 = vmatprep.subr.bf16.mxu0 0
      %1772 = vmatpush1.bf16.msra.mxu0 %v1466
      %1773 = vmatprep.subr.bf16.mxu0 0
      %1774 = vmatpush1.bf16.msra.mxu0 %v1467
      %1775 = vmatprep.mubr.bf16.mxu0 %v936
      %1776 = vmatmul.mubr.bf16.gmra.mrb[0].mxu0 %v935
      %v1777 = vpop.f32.mrb[0].mxu0
      %v1778 = vadd.f32 %v1713, %v1777
      %v1779 = vpop.f32.mrb[0].mxu0
      %v1780 = vpop.f32.mrb[0].mxu0
      %v1781 = vadd.f32 %v1716, %v1780
      %v1782 = vpop.f32.mrb[0].mxu0
      %1783 = vmatprep.mubr.bf16.mxu0 %v945
      %1784 = vmatmul.mubr.bf16.gmra.mrb[0].mxu0 %v944
      %v1785 = vpop.f32.mrb[0].mxu0
      %v1786 = vadd.f32 %v1721, %v1785
      %v1787 = vpop.f32.mrb[0].mxu0
      %v1788 = vpop.f32.mrb[0].mxu0
      %v1789 = vadd.f32 %v1724, %v1788
      %v1790 = vpop.f32.mrb[0].mxu0
      %1791 = vmatprep.mubr.bf16.mxu0 %v954
      %1792 = vmatmul.mubr.bf16.gmra.mrb[0].mxu0 %v953
      %v1793 = vpop.f32.mrb[0].mxu0
      %v1794 = vadd.f32 %v1729, %v1793
      %v1795 = vpop.f32.mrb[0].mxu0
      %v1796 = vpop.f32.mrb[0].mxu0
      %v1797 = vadd.f32 %v1732, %v1796
      %v1798 = vpop.f32.mrb[0].mxu0
      %1799 = vmatprep.mubr.bf16.mxu0 %v963
      %1800 = vmatmul.mubr.bf16.gmra.mrb[0].mxu0 %v962
      %v1801 = vpop.f32.mrb[0].mxu0
      %v1802 = vadd.f32 %v1737, %v1801
      %v1803 = vpop.f32.mrb[0].mxu0
      %v1804 = vpop.f32.mrb[0].mxu0
      %v1805 = vadd.f32 %v1740, %v1804
      %v1806 = vpop.f32.mrb[0].mxu0
      %1807 = vdwg.mxu0
      %1808 = vmatprep.subr.bf16.mxu0 0
      %1809 = vmatpush1.bf16.msra.mxu0 %v1468
      %1810 = vmatprep.subr.bf16.mxu0 0
      %1811 = vmatpush1.bf16.msra.mxu0 %v1469
      %1812 = vmatprep.subr.bf16.mxu0 0
      %1813 = vmatpush1.bf16.msra.mxu0 %v1470
      %1814 = vmatprep.subr.bf16.mxu0 0
      %1815 = vmatpush1.bf16.msra.mxu0 %v1471
      %1816 = vmatprep.subr.bf16.mxu0 0
      %1817 = vmatpush1.bf16.msra.mxu0 %v1472
      %1818 = vmatprep.subr.bf16.mxu0 0
      %1819 = vmatpush1.bf16.msra.mxu0 %v1473
      %1820 = vmatprep.subr.bf16.mxu0 0
      %1821 = vmatpush1.bf16.msra.mxu0 %v1474
      %1822 = vmatprep.subr.bf16.mxu0 0
      %1823 = vmatpush1.bf16.msra.mxu0 %v1475
      %1824 = vmatprep.subr.bf16.mxu0 0
      %1825 = vmatpush1.bf16.msra.mxu0 0
      %1826 = vmatprep.subr.bf16.mxu0 0
      %1827 = vmatpush1.bf16.msra.mxu0 0
      %1828 = vmatprep.subr.bf16.mxu0 0
      %1829 = vmatpush1.bf16.msra.mxu0 0
      %1830 = vmatprep.subr.bf16.mxu0 0
      %1831 = vmatpush1.bf16.msra.mxu0 0
      %1832 = vmatprep.subr.bf16.mxu0 0
      %1833 = vmatpush1.bf16.msra.mxu0 0
      %1834 = vmatprep.subr.bf16.mxu0 0
      %1835 = vmatpush1.bf16.msra.mxu0 0
      %1836 = vmatprep.subr.bf16.mxu0 0
      %1837 = vmatpush1.bf16.msra.mxu0 0
      %1838 = vmatprep.subr.bf16.mxu0 0
      %1839 = vmatpush1.bf16.msra.mxu0 0
      %1840 = vmatprep.mubr.bf16.mxu0 0
      %1841 = vmatmul.mubr.bf16.gmra.mrb[0].mxu0 %v937
      %v1842 = vpop.f32.mrb[0].mxu0
      %v1843 = vadd.f32 %v1778, %v1842
      %v1844 = vpop.f32.mrb[0].mxu0
      %v1845 = vpop.f32.mrb[0].mxu0
      %v1846 = vadd.f32 %v1781, %v1845
      %v1847 = vpop.f32.mrb[0].mxu0
      %1848 = vmatprep.mubr.bf16.mxu0 0
      %1849 = vmatmul.mubr.bf16.gmra.mrb[0].mxu0 %v946
      %v1850 = vpop.f32.mrb[0].mxu0
      %v1851 = vadd.f32 %v1786, %v1850
      %v1852 = vpop.f32.mrb[0].mxu0
      %v1853 = vpop.f32.mrb[0].mxu0
      %v1854 = vadd.f32 %v1789, %v1853
      %v1855 = vpop.f32.mrb[0].mxu0
      %1856 = vmatprep.mubr.bf16.mxu0 0
      %1857 = vmatmul.mubr.bf16.gmra.mrb[0].mxu0 %v955
      %v1858 = vpop.f32.mrb[0].mxu0
      %v1859 = vadd.f32 %v1794, %v1858
      %v1860 = vpop.f32.mrb[0].mxu0
      %v1861 = vpop.f32.mrb[0].mxu0
      %v1862 = vadd.f32 %v1797, %v1861
      %v1863 = vpop.f32.mrb[0].mxu0
      %1864 = vmatprep.mubr.bf16.mxu0 0
      %1865 = vmatmul.mubr.bf16.gmra.mrb[0].mxu0 %v964
      %v1866 = vpop.f32.mrb[0].mxu0
      %v1867 = vadd.f32 %v1802, %v1866
      %v1868 = vpop.f32.mrb[0].mxu0
      %v1869 = vpop.f32.mrb[0].mxu0
      %v1870 = vadd.f32 %v1805, %v1869
      %v1871 = vpop.f32.mrb[0].mxu0
      %1872 = vdwg.mxu0
      %v1873 = vmax.f32 %v1843, 0.0
      %v1874 = vmax.f32 %v1846, 0.0
      %v1875 = vmax.f32 %v1851, 0.0
      %v1876 = vmax.f32 %v1854, 0.0
      %v1877 = vmax.f32 %v1859, 0.0
      %v1878 = vmax.f32 %v1862, 0.0
      %v1879 = vmax.f32 %v1867, 0.0
      %v1880 = vmax.f32 %v1870, 0.0
      %v1881 = vpack.c.bf16 %v1873, %v1873
      %v1882 = vpack.c.bf16 %v1874, %v1874
      %v1883 = vpack.c.bf16 %v1875, %v1875
      %v1884 = vpack.c.bf16 %v1876, %v1876
      %v1885 = vpack.c.bf16 %v1877, %v1877
      %v1886 = vpack.c.bf16 %v1878, %v1878
      %v1887 = vpack.c.bf16 %v1879, %v1879
      %v1888 = vpack.c.bf16 %v1880, %v1880
      %1889 = vst [vmem:[%s243] sm:$0xf] %v1881
      %1890 = vst [vmem:[%s243 + $0x4] sm:$0xf] %v1882
      %1891 = vst [vmem:[%s243 + $0x8] sm:$0xf] %v1883
      %1892 = vst [vmem:[%s243 + $0xc] sm:$0xf] %v1884
      %1893 = vst [vmem:[%s243 + $0x10] sm:$0xf] %v1885
      %1894 = vst [vmem:[%s243 + $0x14] sm:$0xf] %v1886
      %1895 = vst [vmem:[%s243 + $0x18] sm:$0xf] %v1887
      %1896 = vst [vmem:[%s243 + $0x1c] sm:$0xf] %v1888
      %s1897 = smul.u32 8, %s21
      %p1898 = scmp.lt.s32.totalorder %s19, 1
      %s1899 = scalar_select %p1898, %s19, 1
      %p1900 = scmp.lt.s32.totalorder %s1897, 7
      %s1901 = scalar_select %p1900, %s1897, 7
      %p1902 = scmp.lt.s32.totalorder %s20, 0
      %s1903 = scalar_select %p1902, %s20, 0
      %s1904 = sadd.s32 %s1903, %s1901
      %s1905 = smul.addr %s1899, 8
      %s1906 = sadd.s32 %s1904, %s1905
      %s1907 = smul.addr %s1906, 4
      %s1908 = scalar_lea.vmem %s3, %s1907
      // Predicated region
      $region33: #{basic_block_forward.3} parent=31 // pred_check
        %p1909 = pneg %p133
      $region34: #{basic_block_forward.3} parent=31 // pred_check_branch
        %1911 = sbr.rel (%p1909) target = $region36
      $region35: #{basic_block_forward.3} parent=31 // pred_region
        %s1912 = smul.u32 8, %s21
      $region36: #{basic_block_forward.3} parent=31 // pred_fallthru
        _
    $region32: #{basic_block_forward.3} parent=5 // pred_fallthru
      _
    %p1913 = scmp.le.s32.totalorder 2, %s9
    // Predicated region
    $region37: #{basic_block_forward.3} parent=5 // pred_check
      %p1914 = pneg %p1913
    $region38: #{basic_block_forward.3} parent=5 // pred_check_branch
      %1916 = sbr.rel (%p1914) target = $region40
    $region39: #{basic_block_forward.3} parent=5 // pred_region
      %s1917 = ssub.s32 %s9, 2
      // Predicated region
      $region41: #{basic_block_forward.3} parent=39 // pred_check
        %p1918 = pneg %p139
      $region42: #{basic_block_forward.3} parent=39 // pred_check_branch
        %1920 = sbr.rel (%p1918) target = $region44
      $region43: #{basic_block_forward.3} parent=39 // pred_region
        %s1921 = smul.u32 8, %s24
        %p1922 = scmp.lt.s32.totalorder %s22, 1
        %s1923 = scalar_select %p1922, %s22, 1
        %p1924 = scmp.lt.s32.totalorder %s1921, 7
        %s1925 = scalar_select %p1924, %s1921, 7
        %p1926 = scmp.lt.s32.totalorder %s23, 0
        %s1927 = scalar_select %p1926, %s23, 0
        %s1928 = sadd.s32 %s1927, %s1925
        %s1929 = smul.addr %s1923, 8
        %s1930 = sadd.s32 %s1928, %s1929
        %s1931 = smul.addr %s1930, 4
        %s1932 = scalar_lea.vmem %s3, %s1931
      $region44: #{basic_block_forward.3} parent=39 // pred_fallthru
        _
    $region40: #{basic_block_forward.3} parent=5 // pred_fallthru
      _
  $region6: #{basic_block_forward.3} parent=0 // loop_footer
    %s13 = sadd.s32 1, %s9
  $region7: #{basic_block_forward.3} parent=0 // loop_footer_branch
    %8 = sbr.rel target = $region3
  $region8: #{basic_block_forward.3} parent=0 // loop_exit
    _

// kernel: basic_block_forward.5
$region0: #{basic_block_forward.5}
  #allocation0 [shape = 'u32[]', space=smem, size = 0x4, offset = 0x4, fixed_abs, tag = 'smem constant byte address 0x4 - core index']
  #allocation1 [shape = 'u32[144,128]{1,0:T(1,128)}', space=vmem, size = 0x12000, scoped, tag = 'internal scratch']
  #allocation2 [shape = 'bf16[64,1152]{1,0:T(16,128)(2,1)}', space=vmem, size = 0x24000, scoped, tag = 'scratch operand']
  %s0 = inlined_call_operand.vmem [shape: bf16[2,10,10,128], index: 0, kind: input, shape index: {}]
  %s1 = inlined_call_operand.vmem [shape: bf16[1152,128], index: 1, kind: input, shape index: {}]
  %s2 = inlined_call_operand.vmem [shape: f32[1,128], index: 2, kind: input, shape index: {}]
  %s3 = inlined_call_operand.vmem [shape: bf16[2,8,8,128], index: 3, kind: input, shape index: {}]
  %s4 = inlined_call_operand.vmem [shape: bf16[2,8,8,128], index: 4, kind: output, shape index: {}]
  %s5 = sld [smem:[#allocation0]]
  $region49: #{basic_block_forward.5} parent=0
    _
  %s7 = ssub.s32 1, %s5
  %s8 = scalar_select 0, %s7, %s5
  loop: start=0, step=1, limit=4
  $region2: #{basic_block_forward.5} parent=0 // loop_pre_header
    _
  $region3: #{basic_block_forward.5} parent=0 // loop_header
    %s10 = sphi 0, %s14
    %p11 = scmp.ge.s32.totalorder %s10, 4
    %s17 = sphi 0, %s36
    %s18 = sphi 0, %s32
    %s19 = sphi 0, %s28
    %s20 = sphi 0, %s17
    %s21 = sphi 0, %s18
    %s22 = sphi 0, %s19
    %s23 = sphi 0, %s20
    %s24 = sphi 0, %s21
    %s25 = sphi 0, %s22
    %s39 = sphi 0, %s41
    %s42 = sphi 0, %s39
    %s43 = sphi 0, %s42
    %s59 = sphi 0, %s43
    %s65 = sphi 0, %s67
    %s68 = sphi 0, %s65
    %s69 = sphi 0, %s68
    %s85 = sphi 0, %s69
    %s91 = sphi 0, %s93
    %s94 = sphi 0, %s91
    %s95 = sphi 0, %s94
    %s111 = sphi 0, %s95
    %s121 = sphi 0, %s123
    %s124 = sphi 0, %s121
    %s125 = sphi 0, %s124
    %s141 = sphi 0, %s125
    %s151 = sphi 0, %s153
    %s154 = sphi 0, %s151
    %s155 = sphi 0, %s154
    %s171 = sphi 0, %s155
  $region4: #{basic_block_forward.5} parent=0 // loop_header_branch
    %13 = sbr.rel (%p11) target = $region8
  $region5: #{basic_block_forward.5} parent=0 // loop_body
    %s15 = ssub.s32 %s10, 1
    %s16 = ssub.s32 %s10, 2
    %s26 = sadd.s32 1, %s19
    %p27 = scmp.ge.s32.totalorder %s26, 1
    %s28 = scalar_select %p27, 0, %s26
    %s29 = sadd.s32 1, %s18
    %s30 = scalar_select %p27, %s29, %s18
    %p31 = scmp.ge.s32.totalorder %s30, 1
    %s32 = scalar_select %p31, 0, %s30
    %s33 = sadd.s32 1, %s17
    %s34 = scalar_select %p31, %s33, %s17
    %p35 = scmp.ge.s32.totalorder %s34, 2
    %s36 = scalar_select %p35, 0, %s34
    %s37 = ssub.s32 %s17, %s36
    %p38 = scmp.eq.s32.totalorder %s37, 0
    %s40 = sadd.s32 %s39, 1
    %s41 = scalar_select %p38, %s39, %s40
    %p44 = pneg %p38
    %p45 = scmp.eq.s32.totalorder %s10, 1
    %p46 = por %p44, %p45
    %p47 = scmp.ne.s32.totalorder %s39, %s42
    %p48 = scmp.eq.s32.totalorder %s10, 0
    %p49 = por %p47, %p48
    %p50 = scmp.ne.s32.totalorder %s39, %s42
    %p51 = scmp.eq.s32.totalorder %s15, 1
    %p52 = por %p50, %p51
    %p53 = scmp.ne.s32.totalorder %s42, %s43
    %p54 = scmp.eq.s32.totalorder %s15, 0
    %p55 = por %p53, %p54
    %p56 = scmp.ne.s32.totalorder %s42, %s43
    %p57 = scmp.eq.s32.totalorder %s16, 1
    %p58 = por %p56, %p57
    %p60 = scmp.ne.s32.totalorder %s43, %s59
    %p61 = scmp.eq.s32.totalorder %s16, 0
    %p62 = por %p60, %p61
    %s63 = ssub.s32 %s18, %s32
    %p64 = scmp.eq.s32.totalorder %s63, 0
    %s66 = sadd.s32 %s65, 1
    %s67 = scalar_select %p64, %s65, %s66
    %p70 = pneg %p64
    %p71 = scmp.eq.s32.totalorder %s10, 1
    %p72 = por %p70, %p71
    %p73 = scmp.ne.s32.totalorder %s65, %s68
    %p74 = scmp.eq.s32.totalorder %s10, 0
    %p75 = por %p73, %p74
    %p76 = scmp.ne.s32.totalorder %s65, %s68
    %p77 = scmp.eq.s32.totalorder %s15, 1
    %p78 = por %p76, %p77
    %p79 = scmp.ne.s32.totalorder %s68, %s69
    %p80 = scmp.eq.s32.totalorder %s15, 0
    %p81 = por %p79, %p80
    %p82 = scmp.ne.s32.totalorder %s68, %s69
    %p83 = scmp.eq.s32.totalorder %s16, 1
    %p84 = por %p82, %p83
    %p86 = scmp.ne.s32.totalorder %s69, %s85
    %p87 = scmp.eq.s32.totalorder %s16, 0
    %p88 = por %p86, %p87
    %s89 = ssub.s32 %s18, %s32
    %p90 = scmp.eq.s32.totalorder %s89, 0
    %s92 = sadd.s32 %s91, 1
    %s93 = scalar_select %p90, %s91, %s92
    %p96 = pneg %p90
    %p97 = scmp.eq.s32.totalorder %s10, 1
    %p98 = por %p96, %p97
    %p99 = scmp.ne.s32.totalorder %s91, %s94
    %p100 = scmp.eq.s32.totalorder %s10, 0
    %p101 = por %p99, %p100
    %p102 = scmp.ne.s32.totalorder %s91, %s94
    %p103 = scmp.eq.s32.totalorder %s15, 1
    %p104 = por %p102, %p103
    %p105 = scmp.ne.s32.totalorder %s94, %s95
    %p106 = scmp.eq.s32.totalorder %s15, 0
    %p107 = por %p105, %p106
    %p108 = scmp.ne.s32.totalorder %s94, %s95
    %p109 = scmp.eq.s32.totalorder %s16, 1
    %p110 = por %p108, %p109
    %p112 = scmp.ne.s32.totalorder %s95, %s111
    %p113 = scmp.eq.s32.totalorder %s16, 0
    %p114 = por %p112, %p113
    %s115 = ssub.s32 %s17, %s36
    %s116 = ssub.s32 %s19, %s28
    %s117 = sor.u32 %s115, %s116
    %s118 = ssub.s32 %s18, %s32
    %s119 = sor.u32 %s117, %s118
    %p120 = scmp.eq.s32.totalorder %s119, 0
    %s122 = sadd.s32 %s121, 1
    %s123 = scalar_select %p120, %s121, %s122
    %p126 = pneg %p120
    %p127 = scmp.eq.s32.totalorder %s10, 1
    %p128 = por %p126, %p127
    %p129 = scmp.ne.s32.totalorder %s121, %s124
    %p130 = scmp.eq.s32.totalorder %s10, 0
    %p131 = por %p129, %p130
    %p132 = scmp.ne.s32.totalorder %s121, %s124
    %p133 = scmp.eq.s32.totalorder %s15, 1
    %p134 = por %p132, %p133
    %p135 = scmp.ne.s32.totalorder %s124, %s125
    %p136 = scmp.eq.s32.totalorder %s15, 0
    %p137 = por %p135, %p136
    %p138 = scmp.ne.s32.totalorder %s124, %s125
    %p139 = scmp.eq.s32.totalorder %s16, 1
    %p140 = por %p138, %p139
    %p142 = scmp.ne.s32.totalorder %s125, %s141
    %p143 = scmp.eq.s32.totalorder %s16, 0
    %p144 = por %p142, %p143
    %s145 = ssub.s32 %s17, %s36
    %s146 = ssub.s32 %s19, %s28
    %s147 = sor.u32 %s145, %s146
    %s148 = ssub.s32 %s18, %s32
    %s149 = sor.u32 %s147, %s148
    %p150 = scmp.eq.s32.totalorder %s149, 0
    %s152 = sadd.s32 %s151, 1
    %s153 = scalar_select %p150, %s151, %s152
    %p156 = pneg %p150
    %p157 = scmp.eq.s32.totalorder %s10, 1
    %p158 = por %p156, %p157
    %p159 = scmp.ne.s32.totalorder %s151, %s154
    %p160 = scmp.eq.s32.totalorder %s10, 0
    %p161 = por %p159, %p160
    %p162 = scmp.ne.s32.totalorder %s151, %s154
    %p163 = scmp.eq.s32.totalorder %s15, 1
    %p164 = por %p162, %p163
    %p165 = scmp.ne.s32.totalorder %s154, %s155
    %p166 = scmp.eq.s32.totalorder %s15, 0
    %p167 = por %p165, %p166
    %p168 = scmp.ne.s32.totalorder %s154, %s155
    %p169 = scmp.eq.s32.totalorder %s16, 1
    %p170 = por %p168, %p169
    %p172 = scmp.ne.s32.totalorder %s155, %s171
    %p173 = scmp.eq.s32.totalorder %s16, 0
    %p174 = por %p172, %p173
    %p175 = scmp.le.s32.totalorder 1, %s10
    %p176 = scmp.lt.s32.totalorder %s10, 3
    %p177 = pnand %p175, %p176
    %p178 = pneg %p177
    // Predicated region
    $region9: #{basic_block_forward.5} parent=5 // pred_check
      _
    $region10: #{basic_block_forward.5} parent=5 // pred_check_branch
      %180 = sbr.rel (%p177) target = $region12
    $region11: #{basic_block_forward.5} parent=5 // pred_region
      %s181 = ssub.s32 %s10, 1
      // Predicated region
      $region13: #{basic_block_forward.5} parent=11 // pred_check
        %p182 = pneg %p81
      $region14: #{basic_block_forward.5} parent=11 // pred_check_branch
        %184 = sbr.rel (%p182) target = $region16
      $region15: #{basic_block_forward.5} parent=11 // pred_region
        %p185 = scmp.lt.s32.totalorder %s21, 0
        %s186 = scalar_select %p185, %s21, 0
        %s187 = smul.addr %s186, 4
        %s188 = scalar_lea.vmem %s1, %s187
      $region16: #{basic_block_forward.5} parent=11 // pred_fallthru
        _
      // Predicated region
      $region17: #{basic_block_forward.5} parent=11 // pred_check
        %p189 = pneg %p107
      $region18: #{basic_block_forward.5} parent=11 // pred_check_branch
        %191 = sbr.rel (%p189) target = $region20
      $region19: #{basic_block_forward.5} parent=11 // pred_region
        %p192 = scmp.lt.s32.totalorder %s21, 0
        %s193 = scalar_select %p192, %s21, 0
        %s194 = scalar_lea.vmem %s2, %s193
      $region20: #{basic_block_forward.5} parent=11 // pred_fallthru
        _
    $region12: #{basic_block_forward.5} parent=5 // pred_fallthru
      _
    %p195 = scmp.lt.s32.totalorder %s10, 2
    // Predicated region
    $region21: #{basic_block_forward.5} parent=5 // pred_check
      %p196 = pneg %p195
    $region22: #{basic_block_forward.5} parent=5 // pred_check_branch
      %198 = sbr.rel (%p196) target = $region24
    $region23: #{basic_block_forward.5} parent=5 // pred_region
      // Predicated region
      $region25: #{basic_block_forward.5} parent=23 // pred_check
        %p199 = pneg %p49
      $region26: #{basic_block_forward.5} parent=23 // pred_check_branch
        %201 = sbr.rel (%p199) target = $region28
      $region27: #{basic_block_forward.5} parent=23 // pred_region
        %p202 = scmp.lt.s32.totalorder %s17, 1
        %s203 = scalar_select %p202, %s17, 1
        %s204 = smul.addr %s203, 20
        %s205 = smul.addr %s204, 4
        %s206 = scalar_lea.vmem %s0, %s205
      $region28: #{basic_block_forward.5} parent=23 // pred_fallthru
        _
      // Predicated region
      $region29: #{basic_block_forward.5} parent=23 // pred_check
        %p207 = pneg %p131
      $region30: #{basic_block_forward.5} parent=23 // pred_check_branch
        %209 = sbr.rel (%p207) target = $region32
      $region31: #{basic_block_forward.5} parent=23 // pred_region
        %s210 = smul.u32 8, %s19
        %p211 = scmp.lt.s32.totalorder %s17, 1
        %s212 = scalar_select %p211, %s17, 1
        %p213 = scmp.lt.s32.totalorder %s210, 7
        %s214 = scalar_select %p213, %s210, 7
        %p215 = scmp.lt.s32.totalorder %s18, 0
        %s216 = scalar_select %p215, %s18, 0
        %s217 = sadd.s32 %s216, %s214
        %s218 = smul.addr %s212, 8
        %s219 = sadd.s32 %s217, %s218
        %s220 = smul.addr %s219, 4
        %s221 = scalar_lea.vmem %s3, %s220
        %s222 = smul.u32 8, %s19
      $region32: #{basic_block_forward.5} parent=23 // pred_fallthru
        _
    $region24: #{basic_block_forward.5} parent=5 // pred_fallthru
      _
    %p223 = scmp.le.s32.totalorder 1, %s10
    %p224 = scmp.lt.s32.totalorder %s10, 3
    %p225 = pnand %p223, %p224
    %p226 = pneg %p225
    // Predicated region
    $region33: #{basic_block_forward.5} parent=5 // pred_check
      _
    $region34: #{basic_block_forward.5} parent=5 // pred_check_branch
      %228 = sbr.rel (%p225) target = $region36
    $region35: #{basic_block_forward.5} parent=5 // pred_region
      %s229 = ssub.s32 %s10, 1
      %p230 = scmp.lt.s32.totalorder %s20, 1
      %s231 = scalar_select %p230, %s20, 1
      %s232 = smul.addr %s231, 20
      %s233 = smul.addr %s232, 4
      %s234 = scalar_lea.vmem %s0, %s233
      %p235 = pneg %p55
      %p236 = pneg %p52
      %p237 = scmp.lt.s32.totalorder %s21, 0
      %s238 = scalar_select %p237, %s21, 0
      %s239 = smul.addr %s238, 4
      %s240 = scalar_lea.vmem %s1, %s239
      %p241 = pneg %p81
      %p242 = pneg %p78
      %p243 = scmp.lt.s32.totalorder %s21, 0
      %s244 = scalar_select %p243, %s21, 0
      %s245 = scalar_lea.vmem %s2, %s244
      %p246 = pneg %p107
      %p247 = pneg %p104
      %s248 = smul.u32 8, %s22
      %p249 = scmp.lt.s32.totalorder %s20, 1
      %s250 = scalar_select %p249, %s20, 1
      %p251 = scmp.lt.s32.totalorder %s248, 7
      %s252 = scalar_select %p251, %s248, 7
      %p253 = scmp.lt.s32.totalorder %s21, 0
      %s254 = scalar_select %p253, %s21, 0
      %s255 = sadd.s32 %s254, %s252
      %s256 = smul.addr %s250, 8
      %s257 = sadd.s32 %s255, %s256
      %s258 = smul.addr %s257, 4
      %s259 = scalar_lea.vmem %s3, %s258
      %p260 = pneg %p137
      %p261 = pneg %p134
      %p262 = pneg %p167
      %p263 = pneg %p164
      %s264 = smul.u32 8, %s22
      %p265 = scmp.lt.s32.totalorder %s20, 1
      %s266 = scalar_select %p265, %s20, 1
      %p267 = scmp.lt.s32.totalorder %s264, 7
      %s268 = scalar_select %p267, %s264, 7
      %p269 = scmp.lt.s32.totalorder %s21, 0
      %s270 = scalar_select %p269, %s21, 0
      %s271 = sadd.s32 %s270, %s268
      %s272 = smul.addr %s266, 8
      %s273 = sadd.s32 %s271, %s272
      %s274 = smul.addr %s273, 4
      %s275 = scalar_lea.vmem %s4, %s274
      %p276 = scmp.lt.s32.totalorder %s20, 1
      %s277 = scalar_select %p276, %s20, 1
      %s278 = smul.addr %s277, 20
      %s279 = smul.addr %s278, 4
      %s280 = scalar_lea.vmem %s0, %s279
      %p281 = scmp.lt.s32.totalorder %s21, 0
      %s282 = scalar_select %p281, %s21, 0
      %s283 = smul.addr %s282, 4
      %s284 = scalar_lea.vmem %s1, %s283
      %p285 = scmp.lt.s32.totalorder %s21, 0
      %s286 = scalar_select %p285, %s21, 0
      %s287 = scalar_lea.vmem %s2, %s286
      %s288 = smul.u32 8, %s22
      %p289 = scmp.lt.s32.totalorder %s20, 1
      %s290 = scalar_select %p289, %s20, 1
      %p291 = scmp.lt.s32.totalorder %s288, 7
      %s292 = scalar_select %p291, %s288, 7
      %p293 = scmp.lt.s32.totalorder %s21, 0
      %s294 = scalar_select %p293, %s21, 0
      %s295 = sadd.s32 %s294, %s292
      %s296 = smul.addr %s290, 8
      %s297 = sadd.s32 %s295, %s296
      %s298 = smul.addr %s297, 4
      %s299 = scalar_lea.vmem %s3, %s298
      %s300 = smul.u32 8, %s22
      %s301 = smul.u32 8, %s22
      %p302 = scmp.lt.s32.totalorder %s20, 1
      %s303 = scalar_select %p302, %s20, 1
      %p304 = scmp.lt.s32.totalorder %s301, 7
      %s305 = scalar_select %p304, %s301, 7
      %p306 = scmp.lt.s32.totalorder %s21, 0
      %s307 = scalar_select %p306, %s21, 0
      %s308 = sadd.s32 %s307, %s305
      %s309 = smul.addr %s303, 8
      %s310 = sadd.s32 %s308, %s309
      %s311 = smul.addr %s310, 4
      %s312 = scalar_lea.vmem %s4, %s311
      %s313 = smul.u32 8, %s22
      %s315 = smul.u32 %s22, 8
      %s316 = smul.u32 %s315, 2
      %s317 = smul.addr %s316, 4
      %s318 = scalar_lea.vmem %s280, %s317
      %v319 = vld [vmem:[%s318] sm:$0xf]
      %v320 = vld [vmem:[%s318 + $0x8] sm:$0xf]
      %v321 = vld [vmem:[%s318 + $0x10] sm:$0xf]
      %v322 = vld [vmem:[%s318 + $0x18] sm:$0xf]
      %v323 = vld [vmem:[%s318 + $0x20] sm:$0xf]
      %v324 = vld [vmem:[%s318 + $0x28] sm:$0xf]
      %v325 = vld [vmem:[%s318 + $0x30] sm:$0xf]
      %v326 = vld [vmem:[%s318 + $0x38] sm:$0xf]
      %v335 = vunpack.c.l.b16 %v319
      %v336 = vunpack.c.l.b16 %v320
      %v337 = vunpack.c.l.b16 %v321
      %v338 = vunpack.c.l.b16 %v322
      %v339 = vunpack.c.l.b16 %v323
      %v340 = vunpack.c.l.b16 %v324
      %v341 = vunpack.c.l.b16 %v325
      %v342 = vunpack.c.l.b16 %v326
      %v343 = vpack.c.b16 %v336, %v335
      %v344 = vpack.c.b16 %v338, %v337
      %v345 = vpack.c.b16 %v340, %v339
      %v346 = vpack.c.b16 %v342, %v341
      %351 = vst [vmem:[#allocation2] sm:$0xff] %v343
      %352 = vst [vmem:[#allocation2 + $0x48] sm:$0xff] %v344
      %353 = vst [vmem:[#allocation2 + $0x90] sm:$0xff] %v345
      %354 = vst [vmem:[#allocation2 + $0xd8] sm:$0xff] %v346
      %v355 = vld [vmem:[%s318] sm:$0xf]
      %v356 = vld [vmem:[%s318 + $0x4] sm:$0x1]
      %v357 = vld [vmem:[%s318 + $0x8] sm:$0xf]
      %v358 = vld [vmem:[%s318 + $0xc] sm:$0x1]
      %v359 = vld [vmem:[%s318 + $0x10] sm:$0xf]
      %v360 = vld [vmem:[%s318 + $0x14] sm:$0x1]
      %v361 = vld [vmem:[%s318 + $0x18] sm:$0xf]
      %v362 = vld [vmem:[%s318 + $0x1c] sm:$0x1]
      %v363 = vld [vmem:[%s318 + $0x20] sm:$0xf]
      %v364 = vld [vmem:[%s318 + $0x24] sm:$0x1]
      %v365 = vld [vmem:[%s318 + $0x28] sm:$0xf]
      %v366 = vld [vmem:[%s318 + $0x2c] sm:$0x1]
      %v367 = vld [vmem:[%s318 + $0x30] sm:$0xf]
      %v368 = vld [vmem:[%s318 + $0x34] sm:$0x1]
      %v369 = vld [vmem:[%s318 + $0x38] sm:$0xf]
      %v370 = vld [vmem:[%s318 + $0x3c] sm:$0x1]
      %vm371 = vsmask.f32 3328
      %vm372 = vsmask.f32 7440
      %vm373 = vmor %vm371, %vm372
      %v375 = vshrl.u32 %v355, 16
      %v377 = vrot.slane %v375, 4
      %v378 = vshll.u32 %v355, 16
      %v380 = vrot.slane %v378, 5
      %v381 = vor.u32 %v377, %v380
      %v382 = vrot.slane %v381, 4
      %v384 = vshll.u32 %v356, 16
      %v386 = vrot.slane %v384, 5
      %v387 = vsel %vm373, %v382, %v386
      %v389 = vshrl.u32 %v357, 16
      %v391 = vrot.slane %v389, 4
      %v392 = vshll.u32 %v357, 16
      %v394 = vrot.slane %v392, 5
      %v395 = vor.u32 %v391, %v394
      %v396 = vrot.slane %v395, 4
      %v398 = vshll.u32 %v358, 16
      %v400 = vrot.slane %v398, 5
      %v401 = vsel %vm373, %v396, %v400
      %v403 = vshrl.u32 %v359, 16
      %v405 = vrot.slane %v403, 4
      %v406 = vshll.u32 %v359, 16
      %v408 = vrot.slane %v406, 5
      %v409 = vor.u32 %v405, %v408
      %v410 = vrot.slane %v409, 4
      %v412 = vshll.u32 %v360, 16
      %v414 = vrot.slane %v412, 5
      %v415 = vsel %vm373, %v410, %v414
      %v417 = vshrl.u32 %v361, 16
      %v419 = vrot.slane %v417, 4
      %v420 = vshll.u32 %v361, 16
      %v422 = vrot.slane %v420, 5
      %v423 = vor.u32 %v419, %v422
      %v424 = vrot.slane %v423, 4
      %v426 = vshll.u32 %v362, 16
      %v428 = vrot.slane %v426, 5
      %v429 = vsel %vm373, %v424, %v428
      %v431 = vshrl.u32 %v363, 16
      %v433 = vrot.slane %v431, 4
      %v434 = vshll.u32 %v363, 16
      %v436 = vrot.slane %v434, 5
      %v437 = vor.u32 %v433, %v436
      %v438 = vrot.slane %v437, 4
      %v440 = vshll.u32 %v364, 16
      %v442 = vrot.slane %v440, 5
      %v443 = vsel %vm373, %v438, %v442
      %v445 = vshrl.u32 %v365, 16
      %v447 = vrot.slane %v445, 4
      %v448 = vshll.u32 %v365, 16
      %v450 = vrot.slane %v448, 5
      %v451 = vor.u32 %v447, %v450
      %v452 = vrot.slane %v451, 4
      %v454 = vshll.u32 %v366, 16
      %v456 = vrot.slane %v454, 5
      %v457 = vsel %vm373, %v452, %v456
      %v459 = vshrl.u32 %v367, 16
      %v461 = vrot.slane %v459, 4
      %v462 = vshll.u32 %v367, 16
      %v464 = vrot.slane %v462, 5
      %v465 = vor.u32 %v461, %v464
      %v466 = vrot.slane %v465, 4
      %v468 = vshll.u32 %v368, 16
      %v470 = vrot.slane %v468, 5
      %v471 = vsel %vm373, %v466, %v470
      %v473 = vshrl.u32 %v369, 16
      %v475 = vrot.slane %v473, 4
      %v476 = vshll.u32 %v369, 16
      %v478 = vrot.slane %v476, 5
      %v479 = vor.u32 %v475, %v478
      %v480 = vrot.slane %v479, 4
      %v482 = vshll.u32 %v370, 16
      %v484 = vrot.slane %v482, 5
      %v485 = vsel %vm373, %v480, %v484
      %v486 = vunpack.c.l.b16 %v387
      %v487 = vunpack.c.l.b16 %v401
      %v488 = vunpack.c.l.b16 %v415
      %v489 = vunpack.c.l.b16 %v429
      %v490 = vunpack.c.l.b16 %v443
      %v491 = vunpack.c.l.b16 %v457
      %v492 = vunpack.c.l.b16 %v471
      %v493 = vunpack.c.l.b16 %v485
      %v494 = vpack.c.b16 %v487, %v486
      %v495 = vpack.c.b16 %v489, %v488
      %v496 = vpack.c.b16 %v491, %v490
      %v497 = vpack.c.b16 %v493, %v492
      %502 = vst [vmem:[#allocation2 + $0x8] sm:$0xff] %v494
      %503 = vst [vmem:[#allocation2 + $0x50] sm:$0xff] %v495
      %504 = vst [vmem:[#allocation2 + $0x98] sm:$0xff] %v496
      %505 = vst [vmem:[#allocation2 + $0xe0] sm:$0xff] %v497
      %v506 = vld [vmem:[%s318] sm:$0xe]
      %v507 = vld [vmem:[%s318 + $0x4] sm:$0x1]
      %v508 = vld [vmem:[%s318 + $0x8] sm:$0xe]
      %v509 = vld [vmem:[%s318 + $0xc] sm:$0x1]
      %v510 = vld [vmem:[%s318 + $0x10] sm:$0xe]
      %v511 = vld [vmem:[%s318 + $0x14] sm:$0x1]
      %v512 = vld [vmem:[%s318 + $0x18] sm:$0xe]
      %v513 = vld [vmem:[%s318 + $0x1c] sm:$0x1]
      %v514 = vld [vmem:[%s318 + $0x20] sm:$0xe]
      %v515 = vld [vmem:[%s318 + $0x24] sm:$0x1]
      %v516 = vld [vmem:[%s318 + $0x28] sm:$0xe]
      %v517 = vld [vmem:[%s318 + $0x2c] sm:$0x1]
      %v518 = vld [vmem:[%s318 + $0x30] sm:$0xe]
      %v519 = vld [vmem:[%s318 + $0x34] sm:$0x1]
      %v520 = vld [vmem:[%s318 + $0x38] sm:$0xe]
      %v521 = vld [vmem:[%s318 + $0x3c] sm:$0x1]
      %vm538 = vcmask 1042432
      %vm539 = vcmask 1046532
      %vm540 = vmor %vm538, %vm539
      %v541 = vrot.slane %v506, 5
      %v542 = vrot.slane %v541, 4
      %v543 = vrot.slane %v507, 5
      %v544 = vsel %vm540, %v542, %v543
      %v545 = vrot.slane %v508, 5
      %v546 = vrot.slane %v545, 4
      %v547 = vrot.slane %v509, 5
      %v548 = vsel %vm540, %v546, %v547
      %v549 = vrot.slane %v510, 5
      %v550 = vrot.slane %v549, 4
      %v551 = vrot.slane %v511, 5
      %v552 = vsel %vm540, %v550, %v551
      %v553 = vrot.slane %v512, 5
      %v554 = vrot.slane %v553, 4
      %v555 = vrot.slane %v513, 5
      %v556 = vsel %vm540, %v554, %v555
      %v557 = vrot.slane %v514, 5
      %v558 = vrot.slane %v557, 4
      %v559 = vrot.slane %v515, 5
      %v560 = vsel %vm540, %v558, %v559
      %v561 = vrot.slane %v516, 5
      %v562 = vrot.slane %v561, 4
      %v563 = vrot.slane %v517, 5
      %v564 = vsel %vm540, %v562, %v563
      %v565 = vrot.slane %v518, 5
      %v566 = vrot.slane %v565, 4
      %v567 = vrot.slane %v519, 5
      %v568 = vsel %vm540, %v566, %v567
      %v569 = vrot.slane %v520, 5
      %v570 = vrot.slane %v569, 4
      %v571 = vrot.slane %v521, 5
      %v572 = vsel %vm540, %v570, %v571
      %v573 = vunpack.c.l.b16 %v544
      %v574 = vunpack.c.l.b16 %v548
      %v575 = vunpack.c.l.b16 %v552
      %v576 = vunpack.c.l.b16 %v556
      %v577 = vunpack.c.l.b16 %v560
      %v578 = vunpack.c.l.b16 %v564
      %v579 = vunpack.c.l.b16 %v568
      %v580 = vunpack.c.l.b16 %v572
      %v581 = vpack.c.b16 %v574, %v573
      %v582 = vpack.c.b16 %v576, %v575
      %v583 = vpack.c.b16 %v578, %v577
      %v584 = vpack.c.b16 %v580, %v579
      %589 = vst [vmem:[#allocation2 + $0x10] sm:$0xff] %v581
      %590 = vst [vmem:[#allocation2 + $0x58] sm:$0xff] %v582
      %591 = vst [vmem:[#allocation2 + $0xa0] sm:$0xff] %v583
      %592 = vst [vmem:[#allocation2 + $0xe8] sm:$0xff] %v584
      %s593 = sadd.s32 %s315, 1
      %s594 = smul.u32 %s593, 2
      %s595 = smul.addr %s594, 4
      %s596 = scalar_lea.vmem %s280, %s595
      %v597 = vld [vmem:[%s596] sm:$0xf]
      %v598 = vld [vmem:[%s596 + $0x8] sm:$0xf]
      %v599 = vld [vmem:[%s596 + $0x10] sm:$0xf]
      %v600 = vld [vmem:[%s596 + $0x18] sm:$0xf]
      %v601 = vld [vmem:[%s596 + $0x20] sm:$0xf]
      %v602 = vld [vmem:[%s596 + $0x28] sm:$0xf]
      %v603 = vld [vmem:[%s596 + $0x30] sm:$0xf]
      %v604 = vld [vmem:[%s596 + $0x38] sm:$0xf]
      %v613 = vunpack.c.l.b16 %v597
      %v614 = vunpack.c.l.b16 %v598
      %v615 = vunpack.c.l.b16 %v599
      %v616 = vunpack.c.l.b16 %v600
      %v617 = vunpack.c.l.b16 %v601
      %v618 = vunpack.c.l.b16 %v602
      %v619 = vunpack.c.l.b16 %v603
      %v620 = vunpack.c.l.b16 %v604
      %v621 = vpack.c.b16 %v614, %v613
      %v622 = vpack.c.b16 %v616, %v615
      %v623 = vpack.c.b16 %v618, %v617
      %v624 = vpack.c.b16 %v620, %v619
      %629 = vst [vmem:[#allocation2 + $0x18] sm:$0xff] %v621
      %630 = vst [vmem:[#allocation2 + $0x60] sm:$0xff] %v622
      %631 = vst [vmem:[#allocation2 + $0xa8] sm:$0xff] %v623
      %632 = vst [vmem:[#allocation2 + $0xf0] sm:$0xff] %v624
      %v633 = vld [vmem:[%s596] sm:$0xf]
      %v634 = vld [vmem:[%s596 + $0x4] sm:$0x1]
      %v635 = vld [vmem:[%s596 + $0x8] sm:$0xf]
      %v636 = vld [vmem:[%s596 + $0xc] sm:$0x1]
      %v637 = vld [vmem:[%s596 + $0x10] sm:$0xf]
      %v638 = vld [vmem:[%s596 + $0x14] sm:$0x1]
      %v639 = vld [vmem:[%s596 + $0x18] sm:$0xf]
      %v640 = vld [vmem:[%s596 + $0x1c] sm:$0x1]
      %v641 = vld [vmem:[%s596 + $0x20] sm:$0xf]
      %v642 = vld [vmem:[%s596 + $0x24] sm:$0x1]
      %v643 = vld [vmem:[%s596 + $0x28] sm:$0xf]
      %v644 = vld [vmem:[%s596 + $0x2c] sm:$0x1]
      %v645 = vld [vmem:[%s596 + $0x30] sm:$0xf]
      %v646 = vld [vmem:[%s596 + $0x34] sm:$0x1]
      %v647 = vld [vmem:[%s596 + $0x38] sm:$0xf]
      %v648 = vld [vmem:[%s596 + $0x3c] sm:$0x1]
      %v650 = vshrl.u32 %v633, 16
      %v652 = vrot.slane %v650, 4
      %v653 = vshll.u32 %v633, 16
      %v655 = vrot.slane %v653, 5
      %v656 = vor.u32 %v652, %v655
      %v657 = vrot.slane %v656, 4
      %v659 = vshll.u32 %v634, 16
      %v661 = vrot.slane %v659, 5
      %v662 = vsel %vm373, %v657, %v661
      %v664 = vshrl.u32 %v635, 16
      %v666 = vrot.slane %v664, 4
      %v667 = vshll.u32 %v635, 16
      %v669 = vrot.slane %v667, 5
      %v670 = vor.u32 %v666, %v669
      %v671 = vrot.slane %v670, 4
      %v673 = vshll.u32 %v636, 16
      %v675 = vrot.slane %v673, 5
      %v676 = vsel %vm373, %v671, %v675
      %v678 = vshrl.u32 %v637, 16
      %v680 = vrot.slane %v678, 4
      %v681 = vshll.u32 %v637, 16
      %v683 = vrot.slane %v681, 5
      %v684 = vor.u32 %v680, %v683
      %v685 = vrot.slane %v684, 4
      %v687 = vshll.u32 %v638, 16
      %v689 = vrot.slane %v687, 5
      %v690 = vsel %vm373, %v685, %v689
      %v692 = vshrl.u32 %v639, 16
      %v694 = vrot.slane %v692, 4
      %v695 = vshll.u32 %v639, 16
      %v697 = vrot.slane %v695, 5
      %v698 = vor.u32 %v694, %v697
      %v699 = vrot.slane %v698, 4
      %v701 = vshll.u32 %v640, 16
      %v703 = vrot.slane %v701, 5
      %v704 = vsel %vm373, %v699, %v703
      %v706 = vshrl.u32 %v641, 16
      %v708 = vrot.slane %v706, 4
      %v709 = vshll.u32 %v641, 16
      %v711 = vrot.slane %v709, 5
      %v712 = vor.u32 %v708, %v711
      %v713 = vrot.slane %v712, 4
      %v715 = vshll.u32 %v642, 16
      %v717 = vrot.slane %v715, 5
      %v718 = vsel %vm373, %v713, %v717
      %v720 = vshrl.u32 %v643, 16
      %v722 = vrot.slane %v720, 4
      %v723 = vshll.u32 %v643, 16
      %v725 = vrot.slane %v723, 5
      %v726 = vor.u32 %v722, %v725
      %v727 = vrot.slane %v726, 4
      %v729 = vshll.u32 %v644, 16
      %v731 = vrot.slane %v729, 5
      %v732 = vsel %vm373, %v727, %v731
      %v734 = vshrl.u32 %v645, 16
      %v736 = vrot.slane %v734, 4
      %v737 = vshll.u32 %v645, 16
      %v739 = vrot.slane %v737, 5
      %v740 = vor.u32 %v736, %v739
      %v741 = vrot.slane %v740, 4
      %v743 = vshll.u32 %v646, 16
      %v745 = vrot.slane %v743, 5
      %v746 = vsel %vm373, %v741, %v745
      %v748 = vshrl.u32 %v647, 16
      %v750 = vrot.slane %v748, 4
      %v751 = vshll.u32 %v647, 16
      %v753 = vrot.slane %v751, 5
      %v754 = vor.u32 %v750, %v753
      %v755 = vrot.slane %v754, 4
      %v757 = vshll.u32 %v648, 16
      %v759 = vrot.slane %v757, 5
      %v760 = vsel %vm373, %v755, %v759
      %v761 = vunpack.c.l.b16 %v662
      %v762 = vunpack.c.l.b16 %v676
      %v763 = vunpack.c.l.b16 %v690
      %v764 = vunpack.c.l.b16 %v704
      %v765 = vunpack.c.l.b16 %v718
      %v766 = vunpack.c.l.b16 %v732
      %v767 = vunpack.c.l.b16 %v746
      %v768 = vunpack.c.l.b16 %v760
      %v769 = vpack.c.b16 %v762, %v761
      %v770 = vpack.c.b16 %v764, %v763
      %v771 = vpack.c.b16 %v766, %v765
      %v772 = vpack.c.b16 %v768, %v767
      %777 = vst [vmem:[#allocation2 + $0x20] sm:$0xff] %v769
      %778 = vst [vmem:[#allocation2 + $0x68] sm:$0xff] %v770
      %779 = vst [vmem:[#allocation2 + $0xb0] sm:$0xff] %v771
      %780 = vst [vmem:[#allocation2 + $0xf8] sm:$0xff] %v772
      %v781 = vld [vmem:[%s596] sm:$0xe]
      %v782 = vld [vmem:[%s596 + $0x4] sm:$0x1]
      %v783 = vld [vmem:[%s596 + $0x8] sm:$0xe]
      %v784 = vld [vmem:[%s596 + $0xc] sm:$0x1]
      %v785 = vld [vmem:[%s596 + $0x10] sm:$0xe]
      %v786 = vld [vmem:[%s596 + $0x14] sm:$0x1]
      %v787 = vld [vmem:[%s596 + $0x18] sm:$0xe]
      %v788 = vld [vmem:[%s596 + $0x1c] sm:$0x1]
      %v789 = vld [vmem:[%s596 + $0x20] sm:$0xe]
      %v790 = vld [vmem:[%s596 + $0x24] sm:$0x1]
      %v791 = vld [vmem:[%s596 + $0x28] sm:$0xe]
      %v792 = vld [vmem:[%s596 + $0x2c] sm:$0x1]
      %v793 = vld [vmem:[%s596 + $0x30] sm:$0xe]
      %v794 = vld [vmem:[%s596 + $0x34] sm:$0x1]
      %v795 = vld [vmem:[%s596 + $0x38] sm:$0xe]
      %v796 = vld [vmem:[%s596 + $0x3c] sm:$0x1]
      %v813 = vrot.slane %v781, 5
      %v814 = vrot.slane %v813, 4
      %v815 = vrot.slane %v782, 5
      %v816 = vsel %vm540, %v814, %v815
      %v817 = vrot.slane %v783, 5
      %v818 = vrot.slane %v817, 4
      %v819 = vrot.slane %v784, 5
      %v820 = vsel %vm540, %v818, %v819
      %v821 = vrot.slane %v785, 5
      %v822 = vrot.slane %v821, 4
      %v823 = vrot.slane %v786, 5
      %v824 = vsel %vm540, %v822, %v823
      %v825 = vrot.slane %v787, 5
      %v826 = vrot.slane %v825, 4
      %v827 = vrot.slane %v788, 5
      %v828 = vsel %vm540, %v826, %v827
      %v829 = vrot.slane %v789, 5
      %v830 = vrot.slane %v829, 4
      %v831 = vrot.slane %v790, 5
      %v832 = vsel %vm540, %v830, %v831
      %v833 = vrot.slane %v791, 5
      %v834 = vrot.slane %v833, 4
      %v835 = vrot.slane %v792, 5
      %v836 = vsel %vm540, %v834, %v835
      %v837 = vrot.slane %v793, 5
      %v838 = vrot.slane %v837, 4
      %v839 = vrot.slane %v794, 5
      %v840 = vsel %vm540, %v838, %v839
      %v841 = vrot.slane %v795, 5
      %v842 = vrot.slane %v841, 4
      %v843 = vrot.slane %v796, 5
      %v844 = vsel %vm540, %v842, %v843
      %v845 = vunpack.c.l.b16 %v816
      %v846 = vunpack.c.l.b16 %v820
      %v847 = vunpack.c.l.b16 %v824
      %v848 = vunpack.c.l.b16 %v828
      %v849 = vunpack.c.l.b16 %v832
      %v850 = vunpack.c.l.b16 %v836
      %v851 = vunpack.c.l.b16 %v840
      %v852 = vunpack.c.l.b16 %v844
      %v853 = vpack.c.b16 %v846, %v845
      %v854 = vpack.c.b16 %v848, %v847
      %v855 = vpack.c.b16 %v850, %v849
      %v856 = vpack.c.b16 %v852, %v851
      %861 = vst [vmem:[#allocation2 + $0x28] sm:$0xff] %v853
      %862 = vst [vmem:[#allocation2 + $0x70] sm:$0xff] %v854
      %863 = vst [vmem:[#allocation2 + $0xb8] sm:$0xff] %v855
      %864 = vst [vmem:[#allocation2 + $0x100] sm:$0xff] %v856
      %s865 = sadd.s32 %s315, 2
      %s866 = smul.u32 %s865, 2
      %s867 = smul.addr %s866, 4
      %s868 = scalar_lea.vmem %s280, %s867
      %v869 = vld [vmem:[%s868] sm:$0xf]
      %v870 = vld [vmem:[%s868 + $0x8] sm:$0xf]
      %v871 = vld [vmem:[%s868 + $0x10] sm:$0xf]
      %v872 = vld [vmem:[%s868 + $0x18] sm:$0xf]
      %v873 = vld [vmem:[%s868 + $0x20] sm:$0xf]
      %v874 = vld [vmem:[%s868 + $0x28] sm:$0xf]
      %v875 = vld [vmem:[%s868 + $0x30] sm:$0xf]
      %v876 = vld [vmem:[%s868 + $0x38] sm:$0xf]
      %v885 = vunpack.c.l.b16 %v869
      %v886 = vunpack.c.l.b16 %v870
      %v887 = vunpack.c.l.b16 %v871
      %v888 = vunpack.c.l.b16 %v872
      %v889 = vunpack.c.l.b16 %v873
      %v890 = vunpack.c.l.b16 %v874
      %v891 = vunpack.c.l.b16 %v875
      %v892 = vunpack.c.l.b16 %v876
      %v893 = vpack.c.b16 %v886, %v885
      %v894 = vpack.c.b16 %v888, %v887
      %v895 = vpack.c.b16 %v890, %v889
      %v896 = vpack.c.b16 %v892, %v891
      %901 = vst [vmem:[#allocation2 + $0x30] sm:$0xff] %v893
      %902 = vst [vmem:[#allocation2 + $0x78] sm:$0xff] %v894
      %903 = vst [vmem:[#allocation2 + $0xc0] sm:$0xff] %v895
      %904 = vst [vmem:[#allocation2 + $0x108] sm:$0xff] %v896
      %v905 = vld [vmem:[%s868] sm:$0xf]
      %v906 = vld [vmem:[%s868 + $0x4] sm:$0x1]
      %v907 = vld [vmem:[%s868 + $0x8] sm:$0xf]
      %v908 = vld [vmem:[%s868 + $0xc] sm:$0x1]
      %v909 = vld [vmem:[%s868 + $0x10] sm:$0xf]
      %v910 = vld [vmem:[%s868 + $0x14] sm:$0x1]
      %v911 = vld [vmem:[%s868 + $0x18] sm:$0xf]
      %v912 = vld [vmem:[%s868 + $0x1c] sm:$0x1]
      %v913 = vld [vmem:[%s868 + $0x20] sm:$0xf]
      %v914 = vld [vmem:[%s868 + $0x24] sm:$0x1]
      %v915 = vld [vmem:[%s868 + $0x28] sm:$0xf]
      %v916 = vld [vmem:[%s868 + $0x2c] sm:$0x1]
      %v917 = vld [vmem:[%s868 + $0x30] sm:$0xf]
      %v918 = vld [vmem:[%s868 + $0x34] sm:$0x1]
      %v919 = vld [vmem:[%s868 + $0x38] sm:$0xf]
      %v920 = vld [vmem:[%s868 + $0x3c] sm:$0x1]
      %v922 = vshrl.u32 %v905, 16
      %v924 = vrot.slane %v922, 4
      %v925 = vshll.u32 %v905, 16
      %v927 = vrot.slane %v925, 5
      %v928 = vor.u32 %v924, %v927
      %v929 = vrot.slane %v928, 4
      %v931 = vshll.u32 %v906, 16
      %v933 = vrot.slane %v931, 5
      %v934 = vsel %vm373, %v929, %v933
      %v936 = vshrl.u32 %v907, 16
      %v938 = vrot.slane %v936, 4
      %v939 = vshll.u32 %v907, 16
      %v941 = vrot.slane %v939, 5
      %v942 = vor.u32 %v938, %v941
      %v943 = vrot.slane %v942, 4
      %v945 = vshll.u32 %v908, 16
      %v947 = vrot.slane %v945, 5
      %v948 = vsel %vm373, %v943, %v947
      %v950 = vshrl.u32 %v909, 16
      %v952 = vrot.slane %v950, 4
      %v953 = vshll.u32 %v909, 16
      %v955 = vrot.slane %v953, 5
      %v956 = vor.u32 %v952, %v955
      %v957 = vrot.slane %v956, 4
      %v959 = vshll.u32 %v910, 16
      %v961 = vrot.slane %v959, 5
      %v962 = vsel %vm373, %v957, %v961
      %v964 = vshrl.u32 %v911, 16
      %v966 = vrot.slane %v964, 4
      %v967 = vshll.u32 %v911, 16
      %v969 = vrot.slane %v967, 5
      %v970 = vor.u32 %v966, %v969
      %v971 = vrot.slane %v970, 4
      %v973 = vshll.u32 %v912, 16
      %v975 = vrot.slane %v973, 5
      %v976 = vsel %vm373, %v971, %v975
      %v978 = vshrl.u32 %v913, 16
      %v980 = vrot.slane %v978, 4
      %v981 = vshll.u32 %v913, 16
      %v983 = vrot.slane %v981, 5
      %v984 = vor.u32 %v980, %v983
      %v985 = vrot.slane %v984, 4
      %v987 = vshll.u32 %v914, 16
      %v989 = vrot.slane %v987, 5
      %v990 = vsel %vm373, %v985, %v989
      %v992 = vshrl.u32 %v915, 16
      %v994 = vrot.slane %v992, 4
      %v995 = vshll.u32 %v915, 16
      %v997 = vrot.slane %v995, 5
      %v998 = vor.u32 %v994, %v997
      %v999 = vrot.slane %v998, 4
      %v1001 = vshll.u32 %v916, 16
      %v1003 = vrot.slane %v1001, 5
      %v1004 = vsel %vm373, %v999, %v1003
      %v1006 = vshrl.u32 %v917, 16
      %v1008 = vrot.slane %v1006, 4
      %v1009 = vshll.u32 %v917, 16
      %v1011 = vrot.slane %v1009, 5
      %v1012 = vor.u32 %v1008, %v1011
      %v1013 = vrot.slane %v1012, 4
      %v1015 = vshll.u32 %v918, 16
      %v1017 = vrot.slane %v1015, 5
      %v1018 = vsel %vm373, %v1013, %v1017
      %v1020 = vshrl.u32 %v919, 16
      %v1022 = vrot.slane %v1020, 4
      %v1023 = vshll.u32 %v919, 16
      %v1025 = vrot.slane %v1023, 5
      %v1026 = vor.u32 %v1022, %v1025
      %v1027 = vrot.slane %v1026, 4
      %v1029 = vshll.u32 %v920, 16
      %v1031 = vrot.slane %v1029, 5
      %v1032 = vsel %vm373, %v1027, %v1031
      %v1033 = vunpack.c.l.b16 %v934
      %v1034 = vunpack.c.l.b16 %v948
      %v1035 = vunpack.c.l.b16 %v962
      %v1036 = vunpack.c.l.b16 %v976
      %v1037 = vunpack.c.l.b16 %v990
      %v1038 = vunpack.c.l.b16 %v1004
      %v1039 = vunpack.c.l.b16 %v1018
      %v1040 = vunpack.c.l.b16 %v1032
      %v1041 = vpack.c.b16 %v1034, %v1033
      %v1042 = vpack.c.b16 %v1036, %v1035
      %v1043 = vpack.c.b16 %v1038, %v1037
      %v1044 = vpack.c.b16 %v1040, %v1039
      %1049 = vst [vmem:[#allocation2 + $0x38] sm:$0xff] %v1041
      %1050 = vst [vmem:[#allocation2 + $0x80] sm:$0xff] %v1042
      %1051 = vst [vmem:[#allocation2 + $0xc8] sm:$0xff] %v1043
      %1052 = vst [vmem:[#allocation2 + $0x110] sm:$0xff] %v1044
      %v1053 = vld [vmem:[%s868] sm:$0xe]
      %v1054 = vld [vmem:[%s868 + $0x4] sm:$0x1]
      %v1055 = vld [vmem:[%s868 + $0x8] sm:$0xe]
      %v1056 = vld [vmem:[%s868 + $0xc] sm:$0x1]
      %v1057 = vld [vmem:[%s868 + $0x10] sm:$0xe]
      %v1058 = vld [vmem:[%s868 + $0x14] sm:$0x1]
      %v1059 = vld [vmem:[%s868 + $0x18] sm:$0xe]
      %v1060 = vld [vmem:[%s868 + $0x1c] sm:$0x1]
      %v1061 = vld [vmem:[%s868 + $0x20] sm:$0xe]
      %v1062 = vld [vmem:[%s868 + $0x24] sm:$0x1]
      %v1063 = vld [vmem:[%s868 + $0x28] sm:$0xe]
      %v1064 = vld [vmem:[%s868 + $0x2c] sm:$0x1]
      %v1065 = vld [vmem:[%s868 + $0x30] sm:$0xe]
      %v1066 = vld [vmem:[%s868 + $0x34] sm:$0x1]
      %v1067 = vld [vmem:[%s868 + $0x38] sm:$0xe]
      %v1068 = vld [vmem:[%s868 + $0x3c] sm:$0x1]
      %v1085 = vrot.slane %v1053, 5
      %v1086 = vrot.slane %v1085, 4
      %v1087 = vrot.slane %v1054, 5
      %v1088 = vsel %vm540, %v1086, %v1087
      %v1089 = vrot.slane %v1055, 5
      %v1090 = vrot.slane %v1089, 4
      %v1091 = vrot.slane %v1056, 5
      %v1092 = vsel %vm540, %v1090, %v1091
      %v1093 = vrot.slane %v1057, 5
      %v1094 = vrot.slane %v1093, 4
      %v1095 = vrot.slane %v1058, 5
      %v1096 = vsel %vm540, %v1094, %v1095
      %v1097 = vrot.slane %v1059, 5
      %v1098 = vrot.slane %v1097, 4
      %v1099 = vrot.slane %v1060, 5
      %v1100 = vsel %vm540, %v1098, %v1099
      %v1101 = vrot.slane %v1061, 5
      %v1102 = vrot.slane %v1101, 4
      %v1103 = vrot.slane %v1062, 5
      %v1104 = vsel %vm540, %v1102, %v1103
      %v1105 = vrot.slane %v1063, 5
      %v1106 = vrot.slane %v1105, 4
      %v1107 = vrot.slane %v1064, 5
      %v1108 = vsel %vm540, %v1106, %v1107
      %v1109 = vrot.slane %v1065, 5
      %v1110 = vrot.slane %v1109, 4
      %v1111 = vrot.slane %v1066, 5
      %v1112 = vsel %vm540, %v1110, %v1111
      %v1113 = vrot.slane %v1067, 5
      %v1114 = vrot.slane %v1113, 4
      %v1115 = vrot.slane %v1068, 5
      %v1116 = vsel %vm540, %v1114, %v1115
      %v1117 = vunpack.c.l.b16 %v1088
      %v1118 = vunpack.c.l.b16 %v1092
      %v1119 = vunpack.c.l.b16 %v1096
      %v1120 = vunpack.c.l.b16 %v1100
      %v1121 = vunpack.c.l.b16 %v1104
      %v1122 = vunpack.c.l.b16 %v1108
      %v1123 = vunpack.c.l.b16 %v1112
      %v1124 = vunpack.c.l.b16 %v1116
      %v1125 = vpack.c.b16 %v1118, %v1117
      %v1126 = vpack.c.b16 %v1120, %v1119
      %v1127 = vpack.c.b16 %v1122, %v1121
      %v1128 = vpack.c.b16 %v1124, %v1123
      %1133 = vst [vmem:[#allocation2 + $0x40] sm:$0xff] %v1125
      %1134 = vst [vmem:[#allocation2 + $0x88] sm:$0xff] %v1126
      %1135 = vst [vmem:[#allocation2 + $0xd0] sm:$0xff] %v1127
      %1136 = vst [vmem:[#allocation2 + $0x118] sm:$0xff] %v1128
      %v1137 = vld [vmem:[#allocation2] sm:$0xff]
      %v1138 = vld [vmem:[#allocation2 + $0x8] sm:$0xff]
      %v1139 = vld [vmem:[#allocation2 + $0x10] sm:$0xff]
      %v1140 = vld [vmem:[#allocation2 + $0x18] sm:$0xff]
      %v1141 = vld [vmem:[#allocation2 + $0x20] sm:$0xff]
      %v1142 = vld [vmem:[#allocation2 + $0x28] sm:$0xff]
      %v1143 = vld [vmem:[#allocation2 + $0x30] sm:$0xff]
      %v1144 = vld [vmem:[#allocation2 + $0x38] sm:$0xff]
      %v1145 = vld [vmem:[#allocation2 + $0x40] sm:$0xff]
      %v1146 = vld [vmem:[#allocation2 + $0x48] sm:$0xff]
      %v1147 = vld [vmem:[#allocation2 + $0x50] sm:$0xff]
      %v1148 = vld [vmem:[#allocation2 + $0x58] sm:$0xff]
      %v1149 = vld [vmem:[#allocation2 + $0x60] sm:$0xff]
      %v1150 = vld [vmem:[#allocation2 + $0x68] sm:$0xff]
      %v1151 = vld [vmem:[#allocation2 + $0x70] sm:$0xff]
      %v1152 = vld [vmem:[#allocation2 + $0x78] sm:$0xff]
      %v1153 = vld [vmem:[#allocation2 + $0x80] sm:$0xff]
      %v1154 = vld [vmem:[#allocation2 + $0x88] sm:$0xff]
      %v1155 = vld [vmem:[#allocation2 + $0x90] sm:$0xff]
      %v1156 = vld [vmem:[#allocation2 + $0x98] sm:$0xff]
      %v1157 = vld [vmem:[#allocation2 + $0xa0] sm:$0xff]
      %v1158 = vld [vmem:[#allocation2 + $0xa8] sm:$0xff]
      %v1159 = vld [vmem:[#allocation2 + $0xb0] sm:$0xff]
      %v1160 = vld [vmem:[#allocation2 + $0xb8] sm:$0xff]
      %v1161 = vld [vmem:[#allocation2 + $0xc0] sm:$0xff]
      %v1162 = vld [vmem:[#allocation2 + $0xc8] sm:$0xff]
      %v1163 = vld [vmem:[#allocation2 + $0xd0] sm:$0xff]
      %v1164 = vld [vmem:[#allocation2 + $0xd8] sm:$0xff]
      %v1165 = vld [vmem:[#allocation2 + $0xe0] sm:$0xff]
      %v1166 = vld [vmem:[#allocation2 + $0xe8] sm:$0xff]
      %v1167 = vld [vmem:[#allocation2 + $0xf0] sm:$0xff]
      %v1168 = vld [vmem:[#allocation2 + $0xf8] sm:$0xff]
      %v1169 = vld [vmem:[#allocation2 + $0x100] sm:$0xff]
      %v1170 = vld [vmem:[#allocation2 + $0x108] sm:$0xff]
      %v1171 = vld [vmem:[#allocation2 + $0x110] sm:$0xff]
      %v1172 = vld [vmem:[#allocation2 + $0x118] sm:$0xff]
      %v1173 = vld [vmem:[%s284] sm:$0xf]
      %v1174 = vld [vmem:[%s284 + $0x4] sm:$0xf]
      %v1175 = vld [vmem:[%s284 + $0x8] sm:$0xf]
      %v1176 = vld [vmem:[%s284 + $0xc] sm:$0xf]
      %v1177 = vld [vmem:[%s284 + $0x10] sm:$0xf]
      %v1178 = vld [vmem:[%s284 + $0x14] sm:$0xf]
      %v1179 = vld [vmem:[%s284 + $0x18] sm:$0xf]
      %v1180 = vld [vmem:[%s284 + $0x1c] sm:$0xf]
      %v1181 = vld [vmem:[%s284 + $0x20] sm:$0xf]
      %v1182 = vld [vmem:[%s284 + $0x24] sm:$0xf]
      %v1183 = vld [vmem:[%s284 + $0x28] sm:$0xf]
      %v1184 = vld [vmem:[%s284 + $0x2c] sm:$0xf]
      %v1185 = vld [vmem:[%s284 + $0x30] sm:$0xf]
      %v1186 = vld [vmem:[%s284 + $0x34] sm:$0xf]
      %v1187 = vld [vmem:[%s284 + $0x38] sm:$0xf]
      %v1188 = vld [vmem:[%s284 + $0x3c] sm:$0xf]
      %v1189 = vld [vmem:[%s284 + $0x40] sm:$0xf]
      %v1190 = vld [vmem:[%s284 + $0x44] sm:$0xf]
      %v1191 = vld [vmem:[%s284 + $0x48] sm:$0xf]
      %v1192 = vld [vmem:[%s284 + $0x4c] sm:$0xf]
      %v1193 = vld [vmem:[%s284 + $0x50] sm:$0xf]
      %v1194 = vld [vmem:[%s284 + $0x54] sm:$0xf]
      %v1195 = vld [vmem:[%s284 + $0x58] sm:$0xf]
      %v1196 = vld [vmem:[%s284 + $0x5c] sm:$0xf]
      %v1197 = vld [vmem:[%s284 + $0x60] sm:$0xf]
      %v1198 = vld [vmem:[%s284 + $0x64] sm:$0xf]
      %v1199 = vld [vmem:[%s284 + $0x68] sm:$0xf]
      %v1200 = vld [vmem:[%s284 + $0x6c] sm:$0xf]
      %v1201 = vld [vmem:[%s284 + $0x70] sm:$0xf]
      %v1202 = vld [vmem:[%s284 + $0x74] sm:$0xf]
      %v1203 = vld [vmem:[%s284 + $0x78] sm:$0xf]
      %v1204 = vld [vmem:[%s284 + $0x7c] sm:$0xf]
      %v1205 = vld [vmem:[%s284 + $0x80] sm:$0xf]
      %v1206 = vld [vmem:[%s284 + $0x84] sm:$0xf]
      %v1207 = vld [vmem:[%s284 + $0x88] sm:$0xf]
      %v1208 = vld [vmem:[%s284 + $0x8c] sm:$0xf]
      %v1209 = vld [vmem:[%s284 + $0x90] sm:$0xf]
      %v1210 = vld [vmem:[%s284 + $0x94] sm:$0xf]
      %v1211 = vld [vmem:[%s284 + $0x98] sm:$0xf]
      %v1212 = vld [vmem:[%s284 + $0x9c] sm:$0xf]
      %v1213 = vld [vmem:[%s284 + $0xa0] sm:$0xf]
      %v1214 = vld [vmem:[%s284 + $0xa4] sm:$0xf]
      %v1215 = vld [vmem:[%s284 + $0xa8] sm:$0xf]
      %v1216 = vld [vmem:[%s284 + $0xac] sm:$0xf]
      %v1217 = vld [vmem:[%s284 + $0xb0] sm:$0xf]
      %v1218 = vld [vmem:[%s284 + $0xb4] sm:$0xf]
      %v1219 = vld [vmem:[%s284 + $0xb8] sm:$0xf]
      %v1220 = vld [vmem:[%s284 + $0xbc] sm:$0xf]
      %v1221 = vld [vmem:[%s284 + $0xc0] sm:$0xf]
      %v1222 = vld [vmem:[%s284 + $0xc4] sm:$0xf]
      %v1223 = vld [vmem:[%s284 + $0xc8] sm:$0xf]
      %v1224 = vld [vmem:[%s284 + $0xcc] sm:$0xf]
      %v1225 = vld [vmem:[%s284 + $0xd0] sm:$0xf]
      %v1226 = vld [vmem:[%s284 + $0xd4] sm:$0xf]
      %v1227 = vld [vmem:[%s284 + $0xd8] sm:$0xf]
      %v1228 = vld [vmem:[%s284 + $0xdc] sm:$0xf]
      %v1229 = vld [vmem:[%s284 + $0xe0] sm:$0xf]
      %v1230 = vld [vmem:[%s284 + $0xe4] sm:$0xf]
      %v1231 = vld [vmem:[%s284 + $0xe8] sm:$0xf]
      %v1232 = vld [vmem:[%s284 + $0xec] sm:$0xf]
      %v1233 = vld [vmem:[%s284 + $0xf0] sm:$0xf]
      %v1234 = vld [vmem:[%s284 + $0xf4] sm:$0xf]
      %v1235 = vld [vmem:[%s284 + $0xf8] sm:$0xf]
      %v1236 = vld [vmem:[%s284 + $0xfc] sm:$0xf]
      %v1237 = vld [vmem:[%s284 + $0x100] sm:$0xf]
      %v1238 = vld [vmem:[%s284 + $0x104] sm:$0xf]
      %v1239 = vld [vmem:[%s284 + $0x108] sm:$0xf]
      %v1240 = vld [vmem:[%s284 + $0x10c] sm:$0xf]
      %v1241 = vld [vmem:[%s284 + $0x110] sm:$0xf]
      %v1242 = vld [vmem:[%s284 + $0x114] sm:$0xf]
      %v1243 = vld [vmem:[%s284 + $0x118] sm:$0xf]
      %v1244 = vld [vmem:[%s284 + $0x11c] sm:$0xf]
      %v1245 = vld [vmem:[%s284 + $0x120] sm:$0xf]
      %v1246 = vld [vmem:[%s284 + $0x124] sm:$0xf]
      %v1247 = vld [vmem:[%s284 + $0x128] sm:$0xf]
      %v1248 = vld [vmem:[%s284 + $0x12c] sm:$0xf]
      %v1249 = vld [vmem:[%s284 + $0x130] sm:$0xf]
      %v1250 = vld [vmem:[%s284 + $0x134] sm:$0xf]
      %v1251 = vld [vmem:[%s284 + $0x138] sm:$0xf]
      %v1252 = vld [vmem:[%s284 + $0x13c] sm:$0xf]
      %v1253 = vld [vmem:[%s284 + $0x140] sm:$0xf]
      %v1254 = vld [vmem:[%s284 + $0x144] sm:$0xf]
      %v1255 = vld [vmem:[%s284 + $0x148] sm:$0xf]
      %v1256 = vld [vmem:[%s284 + $0x14c] sm:$0xf]
      %v1257 = vld [vmem:[%s284 + $0x150] sm:$0xf]
      %v1258 = vld [vmem:[%s284 + $0x154] sm:$0xf]
      %v1259 = vld [vmem:[%s284 + $0x158] sm:$0xf]
      %v1260 = vld [vmem:[%s284 + $0x15c] sm:$0xf]
      %v1261 = vld [vmem:[%s284 + $0x160] sm:$0xf]
      %v1262 = vld [vmem:[%s284 + $0x164] sm:$0xf]
      %v1263 = vld [vmem:[%s284 + $0x168] sm:$0xf]
      %v1264 = vld [vmem:[%s284 + $0x16c] sm:$0xf]
      %v1265 = vld [vmem:[%s284 + $0x170] sm:$0xf]
      %v1266 = vld [vmem:[%s284 + $0x174] sm:$0xf]
      %v1267 = vld [vmem:[%s284 + $0x178] sm:$0xf]
      %v1268 = vld [vmem:[%s284 + $0x17c] sm:$0xf]
      %v1269 = vld [vmem:[%s284 + $0x180] sm:$0xf]
      %v1270 = vld [vmem:[%s284 + $0x184] sm:$0xf]
      %v1271 = vld [vmem:[%s284 + $0x188] sm:$0xf]
      %v1272 = vld [vmem:[%s284 + $0x18c] sm:$0xf]
      %v1273 = vld [vmem:[%s284 + $0x190] sm:$0xf]
      %v1274 = vld [vmem:[%s284 + $0x194] sm:$0xf]
      %v1275 = vld [vmem:[%s284 + $0x198] sm:$0xf]
      %v1276 = vld [vmem:[%s284 + $0x19c] sm:$0xf]
      %v1277 = vld [vmem:[%s284 + $0x1a0] sm:$0xf]
      %v1278 = vld [vmem:[%s284 + $0x1a4] sm:$0xf]
      %v1279 = vld [vmem:[%s284 + $0x1a8] sm:$0xf]
      %v1280 = vld [vmem:[%s284 + $0x1ac] sm:$0xf]
      %v1281 = vld [vmem:[%s284 + $0x1b0] sm:$0xf]
      %v1282 = vld [vmem:[%s284 + $0x1b4] sm:$0xf]
      %v1283 = vld [vmem:[%s284 + $0x1b8] sm:$0xf]
      %v1284 = vld [vmem:[%s284 + $0x1bc] sm:$0xf]
      %v1285 = vld [vmem:[%s284 + $0x1c0] sm:$0xf]
      %v1286 = vld [vmem:[%s284 + $0x1c4] sm:$0xf]
      %v1287 = vld [vmem:[%s284 + $0x1c8] sm:$0xf]
      %v1288 = vld [vmem:[%s284 + $0x1cc] sm:$0xf]
      %v1289 = vld [vmem:[%s284 + $0x1d0] sm:$0xf]
      %v1290 = vld [vmem:[%s284 + $0x1d4] sm:$0xf]
      %v1291 = vld [vmem:[%s284 + $0x1d8] sm:$0xf]
      %v1292 = vld [vmem:[%s284 + $0x1dc] sm:$0xf]
      %v1293 = vld [vmem:[%s284 + $0x1e0] sm:$0xf]
      %v1294 = vld [vmem:[%s284 + $0x1e4] sm:$0xf]
      %v1295 = vld [vmem:[%s284 + $0x1e8] sm:$0xf]
      %v1296 = vld [vmem:[%s284 + $0x1ec] sm:$0xf]
      %v1297 = vld [vmem:[%s284 + $0x1f0] sm:$0xf]
      %v1298 = vld [vmem:[%s284 + $0x1f4] sm:$0xf]
      %v1299 = vld [vmem:[%s284 + $0x1f8] sm:$0xf]
      %v1300 = vld [vmem:[%s284 + $0x1fc] sm:$0xf]
      %v1301 = vld [vmem:[%s284 + $0x200] sm:$0xf]
      %v1302 = vld [vmem:[%s284 + $0x204] sm:$0xf]
      %v1303 = vld [vmem:[%s284 + $0x208] sm:$0xf]
      %v1304 = vld [vmem:[%s284 + $0x20c] sm:$0xf]
      %v1305 = vld [vmem:[%s284 + $0x210] sm:$0xf]
      %v1306 = vld [vmem:[%s284 + $0x214] sm:$0xf]
      %v1307 = vld [vmem:[%s284 + $0x218] sm:$0xf]
      %v1308 = vld [vmem:[%s284 + $0x21c] sm:$0xf]
      %v1309 = vld [vmem:[%s284 + $0x220] sm:$0xf]
      %v1310 = vld [vmem:[%s284 + $0x224] sm:$0xf]
      %v1311 = vld [vmem:[%s284 + $0x228] sm:$0xf]
      %v1312 = vld [vmem:[%s284 + $0x22c] sm:$0xf]
      %v1313 = vld [vmem:[%s284 + $0x230] sm:$0xf]
      %v1314 = vld [vmem:[%s284 + $0x234] sm:$0xf]
      %v1315 = vld [vmem:[%s284 + $0x238] sm:$0xf]
      %v1316 = vld [vmem:[%s284 + $0x23c] sm:$0xf]
      %v1317 = vld [vmem:[%s287] sm:$0x1]
      %v1319 = vlaneseq
      %v1320 = vshrl.u32 %v1319, 7
      %v1321 = vsub.s32 0, %v1320
      %v1322 = vrot.slane %v1317, %v1321
      %v1468 = vunpack.c.l.b16 %v1173
      %v1469 = vunpack.c.l.b16 %v1174
      %v1470 = vunpack.c.l.b16 %v1175
      %v1471 = vunpack.c.l.b16 %v1176
      %v1472 = vunpack.c.l.b16 %v1177
      %v1473 = vunpack.c.l.b16 %v1178
      %v1474 = vunpack.c.l.b16 %v1179
      %v1475 = vunpack.c.l.b16 %v1180
      %v1476 = vunpack.c.l.b16 %v1181
      %v1477 = vunpack.c.l.b16 %v1182
      %v1478 = vunpack.c.l.b16 %v1183
      %v1479 = vunpack.c.l.b16 %v1184
      %v1480 = vunpack.c.l.b16 %v1185
      %v1481 = vunpack.c.l.b16 %v1186
      %v1482 = vunpack.c.l.b16 %v1187
      %v1483 = vunpack.c.l.b16 %v1188
      %v1484 = vunpack.c.l.b16 %v1189
      %v1485 = vunpack.c.l.b16 %v1190
      %v1486 = vunpack.c.l.b16 %v1191
      %v1487 = vunpack.c.l.b16 %v1192
      %v1488 = vunpack.c.l.b16 %v1193
      %v1489 = vunpack.c.l.b16 %v1194
      %v1490 = vunpack.c.l.b16 %v1195
      %v1491 = vunpack.c.l.b16 %v1196
      %v1492 = vunpack.c.l.b16 %v1197
      %v1493 = vunpack.c.l.b16 %v1198
      %v1494 = vunpack.c.l.b16 %v1199
      %v1495 = vunpack.c.l.b16 %v1200
      %v1496 = vunpack.c.l.b16 %v1201
      %v1497 = vunpack.c.l.b16 %v1202
      %v1498 = vunpack.c.l.b16 %v1203
      %v1499 = vunpack.c.l.b16 %v1204
      %v1500 = vunpack.c.l.b16 %v1205
      %v1501 = vunpack.c.l.b16 %v1206
      %v1502 = vunpack.c.l.b16 %v1207
      %v1503 = vunpack.c.l.b16 %v1208
      %v1504 = vunpack.c.l.b16 %v1209
      %v1505 = vunpack.c.l.b16 %v1210
      %v1506 = vunpack.c.l.b16 %v1211
      %v1507 = vunpack.c.l.b16 %v1212
      %v1508 = vunpack.c.l.b16 %v1213
      %v1509 = vunpack.c.l.b16 %v1214
      %v1510 = vunpack.c.l.b16 %v1215
      %v1511 = vunpack.c.l.b16 %v1216
      %v1512 = vunpack.c.l.b16 %v1217
      %v1513 = vunpack.c.l.b16 %v1218
      %v1514 = vunpack.c.l.b16 %v1219
      %v1515 = vunpack.c.l.b16 %v1220
      %v1516 = vunpack.c.l.b16 %v1221
      %v1517 = vunpack.c.l.b16 %v1222
      %v1518 = vunpack.c.l.b16 %v1223
      %v1519 = vunpack.c.l.b16 %v1224
      %v1520 = vunpack.c.l.b16 %v1225
      %v1521 = vunpack.c.l.b16 %v1226
      %v1522 = vunpack.c.l.b16 %v1227
      %v1523 = vunpack.c.l.b16 %v1228
      %v1524 = vunpack.c.l.b16 %v1229
      %v1525 = vunpack.c.l.b16 %v1230
      %v1526 = vunpack.c.l.b16 %v1231
      %v1527 = vunpack.c.l.b16 %v1232
      %v1528 = vunpack.c.l.b16 %v1233
      %v1529 = vunpack.c.l.b16 %v1234
      %v1530 = vunpack.c.l.b16 %v1235
      %v1531 = vunpack.c.l.b16 %v1236
      %v1532 = vunpack.c.l.b16 %v1237
      %v1533 = vunpack.c.l.b16 %v1238
      %v1534 = vunpack.c.l.b16 %v1239
      %v1535 = vunpack.c.l.b16 %v1240
      %v1536 = vunpack.c.l.b16 %v1241
      %v1537 = vunpack.c.l.b16 %v1242
      %v1538 = vunpack.c.l.b16 %v1243
      %v1539 = vunpack.c.l.b16 %v1244
      %v1540 = vunpack.c.l.b16 %v1245
      %v1541 = vunpack.c.l.b16 %v1246
      %v1542 = vunpack.c.l.b16 %v1247
      %v1543 = vunpack.c.l.b16 %v1248
      %v1544 = vunpack.c.l.b16 %v1249
      %v1545 = vunpack.c.l.b16 %v1250
      %v1546 = vunpack.c.l.b16 %v1251
      %v1547 = vunpack.c.l.b16 %v1252
      %v1548 = vunpack.c.l.b16 %v1253
      %v1549 = vunpack.c.l.b16 %v1254
      %v1550 = vunpack.c.l.b16 %v1255
      %v1551 = vunpack.c.l.b16 %v1256
      %v1552 = vunpack.c.l.b16 %v1257
      %v1553 = vunpack.c.l.b16 %v1258
      %v1554 = vunpack.c.l.b16 %v1259
      %v1555 = vunpack.c.l.b16 %v1260
      %v1556 = vunpack.c.l.b16 %v1261
      %v1557 = vunpack.c.l.b16 %v1262
      %v1558 = vunpack.c.l.b16 %v1263
      %v1559 = vunpack.c.l.b16 %v1264
      %v1560 = vunpack.c.l.b16 %v1265
      %v1561 = vunpack.c.l.b16 %v1266
      %v1562 = vunpack.c.l.b16 %v1267
      %v1563 = vunpack.c.l.b16 %v1268
      %v1564 = vunpack.c.l.b16 %v1269
      %v1565 = vunpack.c.l.b16 %v1270
      %v1566 = vunpack.c.l.b16 %v1271
      %v1567 = vunpack.c.l.b16 %v1272
      %v1568 = vunpack.c.l.b16 %v1273
      %v1569 = vunpack.c.l.b16 %v1274
      %v1570 = vunpack.c.l.b16 %v1275
      %v1571 = vunpack.c.l.b16 %v1276
      %v1572 = vunpack.c.l.b16 %v1277
      %v1573 = vunpack.c.l.b16 %v1278
      %v1574 = vunpack.c.l.b16 %v1279
      %v1575 = vunpack.c.l.b16 %v1280
      %v1576 = vunpack.c.l.b16 %v1281
      %v1577 = vunpack.c.l.b16 %v1282
      %v1578 = vunpack.c.l.b16 %v1283
      %v1579 = vunpack.c.l.b16 %v1284
      %v1580 = vunpack.c.l.b16 %v1285
      %v1581 = vunpack.c.l.b16 %v1286
      %v1582 = vunpack.c.l.b16 %v1287
      %v1583 = vunpack.c.l.b16 %v1288
      %v1584 = vunpack.c.l.b16 %v1289
      %v1585 = vunpack.c.l.b16 %v1290
      %v1586 = vunpack.c.l.b16 %v1291
      %v1587 = vunpack.c.l.b16 %v1292
      %v1588 = vunpack.c.l.b16 %v1293
      %v1589 = vunpack.c.l.b16 %v1294
      %v1590 = vunpack.c.l.b16 %v1295
      %v1591 = vunpack.c.l.b16 %v1296
      %v1592 = vunpack.c.l.b16 %v1297
      %v1593 = vunpack.c.l.b16 %v1298
      %v1594 = vunpack.c.l.b16 %v1299
      %v1595 = vunpack.c.l.b16 %v1300
      %v1596 = vunpack.c.l.b16 %v1301
      %v1597 = vunpack.c.l.b16 %v1302
      %v1598 = vunpack.c.l.b16 %v1303
      %v1599 = vunpack.c.l.b16 %v1304
      %v1600 = vunpack.c.l.b16 %v1305
      %v1601 = vunpack.c.l.b16 %v1306
      %v1602 = vunpack.c.l.b16 %v1307
      %v1603 = vunpack.c.l.b16 %v1308
      %v1604 = vunpack.c.l.b16 %v1309
      %v1605 = vunpack.c.l.b16 %v1310
      %v1606 = vunpack.c.l.b16 %v1311
      %v1607 = vunpack.c.l.b16 %v1312
      %v1608 = vunpack.c.l.b16 %v1313
      %v1609 = vunpack.c.l.b16 %v1314
      %v1610 = vunpack.c.l.b16 %v1315
      %v1611 = vunpack.c.l.b16 %v1316
      %v1612 = vpack.c.b16 %v1469, %v1468
      %v1613 = vpack.c.b16 %v1471, %v1470
      %v1614 = vpack.c.b16 %v1473, %v1472
      %v1615 = vpack.c.b16 %v1475, %v1474
      %v1616 = vpack.c.b16 %v1477, %v1476
      %v1617 = vpack.c.b16 %v1479, %v1478
      %v1618 = vpack.c.b16 %v1481, %v1480
      %v1619 = vpack.c.b16 %v1483, %v1482
      %v1620 = vpack.c.b16 %v1485, %v1484
      %v1621 = vpack.c.b16 %v1487, %v1486
      %v1622 = vpack.c.b16 %v1489, %v1488
      %v1623 = vpack.c.b16 %v1491, %v1490
      %v1624 = vpack.c.b16 %v1493, %v1492
      %v1625 = vpack.c.b16 %v1495, %v1494
      %v1626 = vpack.c.b16 %v1497, %v1496
      %v1627 = vpack.c.b16 %v1499, %v1498
      %v1628 = vpack.c.b16 %v1501, %v1500
      %v1629 = vpack.c.b16 %v1503, %v1502
      %v1630 = vpack.c.b16 %v1505, %v1504
      %v1631 = vpack.c.b16 %v1507, %v1506
      %v1632 = vpack.c.b16 %v1509, %v1508
      %v1633 = vpack.c.b16 %v1511, %v1510
      %v1634 = vpack.c.b16 %v1513, %v1512
      %v1635 = vpack.c.b16 %v1515, %v1514
      %v1636 = vpack.c.b16 %v1517, %v1516
      %v1637 = vpack.c.b16 %v1519, %v1518
      %v1638 = vpack.c.b16 %v1521, %v1520
      %v1639 = vpack.c.b16 %v1523, %v1522
      %v1640 = vpack.c.b16 %v1525, %v1524
      %v1641 = vpack.c.b16 %v1527, %v1526
      %v1642 = vpack.c.b16 %v1529, %v1528
      %v1643 = vpack.c.b16 %v1531, %v1530
      %v1644 = vpack.c.b16 %v1533, %v1532
      %v1645 = vpack.c.b16 %v1535, %v1534
      %v1646 = vpack.c.b16 %v1537, %v1536
      %v1647 = vpack.c.b16 %v1539, %v1538
      %v1648 = vpack.c.b16 %v1541, %v1540
      %v1649 = vpack.c.b16 %v1543, %v1542
      %v1650 = vpack.c.b16 %v1545, %v1544
      %v1651 = vpack.c.b16 %v1547, %v1546
      %v1652 = vpack.c.b16 %v1549, %v1548
      %v1653 = vpack.c.b16 %v1551, %v1550
      %v1654 = vpack.c.b16 %v1553, %v1552
      %v1655 = vpack.c.b16 %v1555, %v1554
      %v1656 = vpack.c.b16 %v1557, %v1556
      %v1657 = vpack.c.b16 %v1559, %v1558
      %v1658 = vpack.c.b16 %v1561, %v1560
      %v1659 = vpack.c.b16 %v1563, %v1562
      %v1660 = vpack.c.b16 %v1565, %v1564
      %v1661 = vpack.c.b16 %v1567, %v1566
      %v1662 = vpack.c.b16 %v1569, %v1568
      %v1663 = vpack.c.b16 %v1571, %v1570
      %v1664 = vpack.c.b16 %v1573, %v1572
      %v1665 = vpack.c.b16 %v1575, %v1574
      %v1666 = vpack.c.b16 %v1577, %v1576
      %v1667 = vpack.c.b16 %v1579, %v1578
      %v1668 = vpack.c.b16 %v1581, %v1580
      %v1669 = vpack.c.b16 %v1583, %v1582
      %v1670 = vpack.c.b16 %v1585, %v1584
      %v1671 = vpack.c.b16 %v1587, %v1586
      %v1672 = vpack.c.b16 %v1589, %v1588
      %v1673 = vpack.c.b16 %v1591, %v1590
      %v1674 = vpack.c.b16 %v1593, %v1592
      %v1675 = vpack.c.b16 %v1595, %v1594
      %v1676 = vpack.c.b16 %v1597, %v1596
      %v1677 = vpack.c.b16 %v1599, %v1598
      %v1678 = vpack.c.b16 %v1601, %v1600
      %v1679 = vpack.c.b16 %v1603, %v1602
      %v1680 = vpack.c.b16 %v1605, %v1604
      %v1681 = vpack.c.b16 %v1607, %v1606
      %v1682 = vpack.c.b16 %v1609, %v1608
      %v1683 = vpack.c.b16 %v1611, %v1610
      %1756 = vmatprep.subr.bf16.mxu0 0
      %1757 = vmatpush1.bf16.msra.mxu0 %v1612
      %1758 = vmatprep.subr.bf16.mxu0 0
      %1759 = vmatpush1.bf16.msra.mxu0 %v1613
      %1760 = vmatprep.subr.bf16.mxu0 0
      %1761 = vmatpush1.bf16.msra.mxu0 %v1614
      %1762 = vmatprep.subr.bf16.mxu0 0
      %1763 = vmatpush1.bf16.msra.mxu0 %v1615
      %1764 = vmatprep.subr.bf16.mxu0 0
      %1765 = vmatpush1.bf16.msra.mxu0 %v1616
      %1766 = vmatprep.subr.bf16.mxu0 0
      %1767 = vmatpush1.bf16.msra.mxu0 %v1617
      %1768 = vmatprep.subr.bf16.mxu0 0
      %1769 = vmatpush1.bf16.msra.mxu0 %v1618
      %1770 = vmatprep.subr.bf16.mxu0 0
      %1771 = vmatpush1.bf16.msra.mxu0 %v1619
      %1772 = vmatprep.subr.bf16.mxu0 0
      %1773 = vmatpush1.bf16.msra.mxu0 %v1620
      %1774 = vmatprep.subr.bf16.mxu0 0
      %1775 = vmatpush1.bf16.msra.mxu0 %v1621
      %1776 = vmatprep.subr.bf16.mxu0 0
      %1777 = vmatpush1.bf16.msra.mxu0 %v1622
      %1778 = vmatprep.subr.bf16.mxu0 0
      %1779 = vmatpush1.bf16.msra.mxu0 %v1623
      %1780 = vmatprep.subr.bf16.mxu0 0
      %1781 = vmatpush1.bf16.msra.mxu0 %v1624
      %1782 = vmatprep.subr.bf16.mxu0 0
      %1783 = vmatpush1.bf16.msra.mxu0 %v1625
      %1784 = vmatprep.subr.bf16.mxu0 0
      %1785 = vmatpush1.bf16.msra.mxu0 %v1626
      %1786 = vmatprep.subr.bf16.mxu0 0
      %1787 = vmatpush1.bf16.msra.mxu0 %v1627
      %1788 = vmatprep.mubr.bf16.mxu0 %v1138
      %1789 = vmatmul.mubr.bf16.gmra.mrb[0].mxu0 %v1137
      %v1790 = vpop.f32.mrb[0].mxu0
      %v1791 = vadd.f32 %v1322, %v1790
      %v1792 = vpop.f32.mrb[0].mxu0
      %v1793 = vpop.f32.mrb[0].mxu0
      %v1794 = vadd.f32 %v1322, %v1793
      %v1795 = vpop.f32.mrb[0].mxu0
      %1796 = vmatprep.mubr.bf16.mxu0 %v1147
      %1797 = vmatmul.mubr.bf16.gmra.mrb[0].mxu0 %v1146
      %v1798 = vpop.f32.mrb[0].mxu0
      %v1799 = vadd.f32 %v1322, %v1798
      %v1800 = vpop.f32.mrb[0].mxu0
      %v1801 = vpop.f32.mrb[0].mxu0
      %v1802 = vadd.f32 %v1322, %v1801
      %v1803 = vpop.f32.mrb[0].mxu0
      %1804 = vmatprep.mubr.bf16.mxu0 %v1156
      %1805 = vmatmul.mubr.bf16.gmra.mrb[0].mxu0 %v1155
      %v1806 = vpop.f32.mrb[0].mxu0
      %v1807 = vadd.f32 %v1322, %v1806
      %v1808 = vpop.f32.mrb[0].mxu0
      %v1809 = vpop.f32.mrb[0].mxu0
      %v1810 = vadd.f32 %v1322, %v1809
      %v1811 = vpop.f32.mrb[0].mxu0
      %1812 = vmatprep.mubr.bf16.mxu0 %v1165
      %1813 = vmatmul.mubr.bf16.gmra.mrb[0].mxu0 %v1164
      %v1814 = vpop.f32.mrb[0].mxu0
      %v1815 = vadd.f32 %v1322, %v1814
      %v1816 = vpop.f32.mrb[0].mxu0
      %v1817 = vpop.f32.mrb[0].mxu0
      %v1818 = vadd.f32 %v1322, %v1817
      %v1819 = vpop.f32.mrb[0].mxu0
      %1820 = vdwg.mxu0
      %1821 = vmatprep.subr.bf16.mxu0 0
      %1822 = vmatpush1.bf16.msra.mxu0 %v1628
      %1823 = vmatprep.subr.bf16.mxu0 0
      %1824 = vmatpush1.bf16.msra.mxu0 %v1629
      %1825 = vmatprep.subr.bf16.mxu0 0
      %1826 = vmatpush1.bf16.msra.mxu0 %v1630
      %1827 = vmatprep.subr.bf16.mxu0 0
      %1828 = vmatpush1.bf16.msra.mxu0 %v1631
      %1829 = vmatprep.subr.bf16.mxu0 0
      %1830 = vmatpush1.bf16.msra.mxu0 %v1632
      %1831 = vmatprep.subr.bf16.mxu0 0
      %1832 = vmatpush1.bf16.msra.mxu0 %v1633
      %1833 = vmatprep.subr.bf16.mxu0 0
      %1834 = vmatpush1.bf16.msra.mxu0 %v1634
      %1835 = vmatprep.subr.bf16.mxu0 0
      %1836 = vmatpush1.bf16.msra.mxu0 %v1635
      %1837 = vmatprep.subr.bf16.mxu0 0
      %1838 = vmatpush1.bf16.msra.mxu0 %v1636
      %1839 = vmatprep.subr.bf16.mxu0 0
      %1840 = vmatpush1.bf16.msra.mxu0 %v1637
      %1841 = vmatprep.subr.bf16.mxu0 0
      %1842 = vmatpush1.bf16.msra.mxu0 %v1638
      %1843 = vmatprep.subr.bf16.mxu0 0
      %1844 = vmatpush1.bf16.msra.mxu0 %v1639
      %1845 = vmatprep.subr.bf16.mxu0 0
      %1846 = vmatpush1.bf16.msra.mxu0 %v1640
      %1847 = vmatprep.subr.bf16.mxu0 0
      %1848 = vmatpush1.bf16.msra.mxu0 %v1641
      %1849 = vmatprep.subr.bf16.mxu0 0
      %1850 = vmatpush1.bf16.msra.mxu0 %v1642
      %1851 = vmatprep.subr.bf16.mxu0 0
      %1852 = vmatpush1.bf16.msra.mxu0 %v1643
      %1853 = vmatprep.mubr.bf16.mxu0 %v1140
      %1854 = vmatmul.mubr.bf16.gmra.mrb[0].mxu0 %v1139
      %v1855 = vpop.f32.mrb[0].mxu0
      %v1856 = vadd.f32 %v1791, %v1855
      %v1857 = vpop.f32.mrb[0].mxu0
      %v1858 = vpop.f32.mrb[0].mxu0
      %v1859 = vadd.f32 %v1794, %v1858
      %v1860 = vpop.f32.mrb[0].mxu0
      %1861 = vmatprep.mubr.bf16.mxu0 %v1149
      %1862 = vmatmul.mubr.bf16.gmra.mrb[0].mxu0 %v1148
      %v1863 = vpop.f32.mrb[0].mxu0
      %v1864 = vadd.f32 %v1799, %v1863
      %v1865 = vpop.f32.mrb[0].mxu0
      %v1866 = vpop.f32.mrb[0].mxu0
      %v1867 = vadd.f32 %v1802, %v1866
      %v1868 = vpop.f32.mrb[0].mxu0
      %1869 = vmatprep.mubr.bf16.mxu0 %v1158
      %1870 = vmatmul.mubr.bf16.gmra.mrb[0].mxu0 %v1157
      %v1871 = vpop.f32.mrb[0].mxu0
      %v1872 = vadd.f32 %v1807, %v1871
      %v1873 = vpop.f32.mrb[0].mxu0
      %v1874 = vpop.f32.mrb[0].mxu0
      %v1875 = vadd.f32 %v1810, %v1874
      %v1876 = vpop.f32.mrb[0].mxu0
      %1877 = vmatprep.mubr.bf16.mxu0 %v1167
      %1878 = vmatmul.mubr.bf16.gmra.mrb[0].mxu0 %v1166
      %v1879 = vpop.f32.mrb[0].mxu0
      %v1880 = vadd.f32 %v1815, %v1879
      %v1881 = vpop.f32.mrb[0].mxu0
      %v1882 = vpop.f32.mrb[0].mxu0
      %v1883 = vadd.f32 %v1818, %v1882
      %v1884 = vpop.f32.mrb[0].mxu0
      %1885 = vdwg.mxu0
      %1886 = vmatprep.subr.bf16.mxu0 0
      %1887 = vmatpush1.bf16.msra.mxu0 %v1644
      %1888 = vmatprep.subr.bf16.mxu0 0
      %1889 = vmatpush1.bf16.msra.mxu0 %v1645
      %1890 = vmatprep.subr.bf16.mxu0 0
      %1891 = vmatpush1.bf16.msra.mxu0 %v1646
      %1892 = vmatprep.subr.bf16.mxu0 0
      %1893 = vmatpush1.bf16.msra.mxu0 %v1647
      %1894 = vmatprep.subr.bf16.mxu0 0
      %1895 = vmatpush1.bf16.msra.mxu0 %v1648
      %1896 = vmatprep.subr.bf16.mxu0 0
      %1897 = vmatpush1.bf16.msra.mxu0 %v1649
      %1898 = vmatprep.subr.bf16.mxu0 0
      %1899 = vmatpush1.bf16.msra.mxu0 %v1650
      %1900 = vmatprep.subr.bf16.mxu0 0
      %1901 = vmatpush1.bf16.msra.mxu0 %v1651
      %1902 = vmatprep.subr.bf16.mxu0 0
      %1903 = vmatpush1.bf16.msra.mxu0 %v1652
      %1904 = vmatprep.subr.bf16.mxu0 0
      %1905 = vmatpush1.bf16.msra.mxu0 %v1653
      %1906 = vmatprep.subr.bf16.mxu0 0
      %1907 = vmatpush1.bf16.msra.mxu0 %v1654
      %1908 = vmatprep.subr.bf16.mxu0 0
      %1909 = vmatpush1.bf16.msra.mxu0 %v1655
      %1910 = vmatprep.subr.bf16.mxu0 0
      %1911 = vmatpush1.bf16.msra.mxu0 %v1656
      %1912 = vmatprep.subr.bf16.mxu0 0
      %1913 = vmatpush1.bf16.msra.mxu0 %v1657
      %1914 = vmatprep.subr.bf16.mxu0 0
      %1915 = vmatpush1.bf16.msra.mxu0 %v1658
      %1916 = vmatprep.subr.bf16.mxu0 0
      %1917 = vmatpush1.bf16.msra.mxu0 %v1659
      %1918 = vmatprep.mubr.bf16.mxu0 %v1142
      %1919 = vmatmul.mubr.bf16.gmra.mrb[0].mxu0 %v1141
      %v1920 = vpop.f32.mrb[0].mxu0
      %v1921 = vadd.f32 %v1856, %v1920
      %v1922 = vpop.f32.mrb[0].mxu0
      %v1923 = vpop.f32.mrb[0].mxu0
      %v1924 = vadd.f32 %v1859, %v1923
      %v1925 = vpop.f32.mrb[0].mxu0
      %1926 = vmatprep.mubr.bf16.mxu0 %v1151
      %1927 = vmatmul.mubr.bf16.gmra.mrb[0].mxu0 %v1150
      %v1928 = vpop.f32.mrb[0].mxu0
      %v1929 = vadd.f32 %v1864, %v1928
      %v1930 = vpop.f32.mrb[0].mxu0
      %v1931 = vpop.f32.mrb[0].mxu0
      %v1932 = vadd.f32 %v1867, %v1931
      %v1933 = vpop.f32.mrb[0].mxu0
      %1934 = vmatprep.mubr.bf16.mxu0 %v1160
      %1935 = vmatmul.mubr.bf16.gmra.mrb[0].mxu0 %v1159
      %v1936 = vpop.f32.mrb[0].mxu0
      %v1937 = vadd.f32 %v1872, %v1936
      %v1938 = vpop.f32.mrb[0].mxu0
      %v1939 = vpop.f32.mrb[0].mxu0
      %v1940 = vadd.f32 %v1875, %v1939
      %v1941 = vpop.f32.mrb[0].mxu0
      %1942 = vmatprep.mubr.bf16.mxu0 %v1169
      %1943 = vmatmul.mubr.bf16.gmra.mrb[0].mxu0 %v1168
      %v1944 = vpop.f32.mrb[0].mxu0
      %v1945 = vadd.f32 %v1880, %v1944
      %v1946 = vpop.f32.mrb[0].mxu0
      %v1947 = vpop.f32.mrb[0].mxu0
      %v1948 = vadd.f32 %v1883, %v1947
      %v1949 = vpop.f32.mrb[0].mxu0
      %1950 = vdwg.mxu0
      %1951 = vmatprep.subr.bf16.mxu0 0
      %1952 = vmatpush1.bf16.msra.mxu0 %v1660
      %1953 = vmatprep.subr.bf16.mxu0 0
      %1954 = vmatpush1.bf16.msra.mxu0 %v1661
      %1955 = vmatprep.subr.bf16.mxu0 0
      %1956 = vmatpush1.bf16.msra.mxu0 %v1662
      %1957 = vmatprep.subr.bf16.mxu0 0
      %1958 = vmatpush1.bf16.msra.mxu0 %v1663
      %1959 = vmatprep.subr.bf16.mxu0 0
      %1960 = vmatpush1.bf16.msra.mxu0 %v1664
      %1961 = vmatprep.subr.bf16.mxu0 0
      %1962 = vmatpush1.bf16.msra.mxu0 %v1665
      %1963 = vmatprep.subr.bf16.mxu0 0
      %1964 = vmatpush1.bf16.msra.mxu0 %v1666
      %1965 = vmatprep.subr.bf16.mxu0 0
      %1966 = vmatpush1.bf16.msra.mxu0 %v1667
      %1967 = vmatprep.subr.bf16.mxu0 0
      %1968 = vmatpush1.bf16.msra.mxu0 %v1668
      %1969 = vmatprep.subr.bf16.mxu0 0
      %1970 = vmatpush1.bf16.msra.mxu0 %v1669
      %1971 = vmatprep.subr.bf16.mxu0 0
      %1972 = vmatpush1.bf16.msra.mxu0 %v1670
      %1973 = vmatprep.subr.bf16.mxu0 0
      %1974 = vmatpush1.bf16.msra.mxu0 %v1671
      %1975 = vmatprep.subr.bf16.mxu0 0
      %1976 = vmatpush1.bf16.msra.mxu0 %v1672
      %1977 = vmatprep.subr.bf16.mxu0 0
      %1978 = vmatpush1.bf16.msra.mxu0 %v1673
      %1979 = vmatprep.subr.bf16.mxu0 0
      %1980 = vmatpush1.bf16.msra.mxu0 %v1674
      %1981 = vmatprep.subr.bf16.mxu0 0
      %1982 = vmatpush1.bf16.msra.mxu0 %v1675
      %1983 = vmatprep.mubr.bf16.mxu0 %v1144
      %1984 = vmatmul.mubr.bf16.gmra.mrb[0].mxu0 %v1143
      %v1985 = vpop.f32.mrb[0].mxu0
      %v1986 = vadd.f32 %v1921, %v1985
      %v1987 = vpop.f32.mrb[0].mxu0
      %v1988 = vpop.f32.mrb[0].mxu0
      %v1989 = vadd.f32 %v1924, %v1988
      %v1990 = vpop.f32.mrb[0].mxu0
      %1991 = vmatprep.mubr.bf16.mxu0 %v1153
      %1992 = vmatmul.mubr.bf16.gmra.mrb[0].mxu0 %v1152
      %v1993 = vpop.f32.mrb[0].mxu0
      %v1994 = vadd.f32 %v1929, %v1993
      %v1995 = vpop.f32.mrb[0].mxu0
      %v1996 = vpop.f32.mrb[0].mxu0
      %v1997 = vadd.f32 %v1932, %v1996
      %v1998 = vpop.f32.mrb[0].mxu0
      %1999 = vmatprep.mubr.bf16.mxu0 %v1162
      %2000 = vmatmul.mubr.bf16.gmra.mrb[0].mxu0 %v1161
      %v2001 = vpop.f32.mrb[0].mxu0
      %v2002 = vadd.f32 %v1937, %v2001
      %v2003 = vpop.f32.mrb[0].mxu0
      %v2004 = vpop.f32.mrb[0].mxu0
      %v2005 = vadd.f32 %v1940, %v2004
      %v2006 = vpop.f32.mrb[0].mxu0
      %2007 = vmatprep.mubr.bf16.mxu0 %v1171
      %2008 = vmatmul.mubr.bf16.gmra.mrb[0].mxu0 %v1170
      %v2009 = vpop.f32.mrb[0].mxu0
      %v2010 = vadd.f32 %v1945, %v2009
      %v2011 = vpop.f32.mrb[0].mxu0
      %v2012 = vpop.f32.mrb[0].mxu0
      %v2013 = vadd.f32 %v1948, %v2012
      %v2014 = vpop.f32.mrb[0].mxu0
      %2015 = vdwg.mxu0
      %2016 = vmatprep.subr.bf16.mxu0 0
      %2017 = vmatpush1.bf16.msra.mxu0 %v1676
      %2018 = vmatprep.subr.bf16.mxu0 0
      %2019 = vmatpush1.bf16.msra.mxu0 %v1677
      %2020 = vmatprep.subr.bf16.mxu0 0
      %2021 = vmatpush1.bf16.msra.mxu0 %v1678
      %2022 = vmatprep.subr.bf16.mxu0 0
      %2023 = vmatpush1.bf16.msra.mxu0 %v1679
      %2024 = vmatprep.subr.bf16.mxu0 0
      %2025 = vmatpush1.bf16.msra.mxu0 %v1680
      %2026 = vmatprep.subr.bf16.mxu0 0
      %2027 = vmatpush1.bf16.msra.mxu0 %v1681
      %2028 = vmatprep.subr.bf16.mxu0 0
      %2029 = vmatpush1.bf16.msra.mxu0 %v1682
      %2030 = vmatprep.subr.bf16.mxu0 0
      %2031 = vmatpush1.bf16.msra.mxu0 %v1683
      %2032 = vmatprep.subr.bf16.mxu0 0
      %2033 = vmatpush1.bf16.msra.mxu0 0
      %2034 = vmatprep.subr.bf16.mxu0 0
      %2035 = vmatpush1.bf16.msra.mxu0 0
      %2036 = vmatprep.subr.bf16.mxu0 0
      %2037 = vmatpush1.bf16.msra.mxu0 0
      %2038 = vmatprep.subr.bf16.mxu0 0
      %2039 = vmatpush1.bf16.msra.mxu0 0
      %2040 = vmatprep.subr.bf16.mxu0 0
      %2041 = vmatpush1.bf16.msra.mxu0 0
      %2042 = vmatprep.subr.bf16.mxu0 0
      %2043 = vmatpush1.bf16.msra.mxu0 0
      %2044 = vmatprep.subr.bf16.mxu0 0
      %2045 = vmatpush1.bf16.msra.mxu0 0
      %2046 = vmatprep.subr.bf16.mxu0 0
      %2047 = vmatpush1.bf16.msra.mxu0 0
      %2048 = vmatprep.mubr.bf16.mxu0 0
      %2049 = vmatmul.mubr.bf16.gmra.mrb[0].mxu0 %v1145
      %v2050 = vpop.f32.mrb[0].mxu0
      %v2051 = vadd.f32 %v1986, %v2050
      %v2052 = vpop.f32.mrb[0].mxu0
      %v2053 = vpop.f32.mrb[0].mxu0
      %v2054 = vadd.f32 %v1989, %v2053
      %v2055 = vpop.f32.mrb[0].mxu0
      %2056 = vmatprep.mubr.bf16.mxu0 0
      %2057 = vmatmul.mubr.bf16.gmra.mrb[0].mxu0 %v1154
      %v2058 = vpop.f32.mrb[0].mxu0
      %v2059 = vadd.f32 %v1994, %v2058
      %v2060 = vpop.f32.mrb[0].mxu0
      %v2061 = vpop.f32.mrb[0].mxu0
      %v2062 = vadd.f32 %v1997, %v2061
      %v2063 = vpop.f32.mrb[0].mxu0
      %2064 = vmatprep.mubr.bf16.mxu0 0
      %2065 = vmatmul.mubr.bf16.gmra.mrb[0].mxu0 %v1163
      %v2066 = vpop.f32.mrb[0].mxu0
      %v2067 = vadd.f32 %v2002, %v2066
      %v2068 = vpop.f32.mrb[0].mxu0
      %v2069 = vpop.f32.mrb[0].mxu0
      %v2070 = vadd.f32 %v2005, %v2069
      %v2071 = vpop.f32.mrb[0].mxu0
      %2072 = vmatprep.mubr.bf16.mxu0 0
      %2073 = vmatmul.mubr.bf16.gmra.mrb[0].mxu0 %v1172
      %v2074 = vpop.f32.mrb[0].mxu0
      %v2075 = vadd.f32 %v2010, %v2074
      %v2076 = vpop.f32.mrb[0].mxu0
      %v2077 = vpop.f32.mrb[0].mxu0
      %v2078 = vadd.f32 %v2013, %v2077
      %v2079 = vpop.f32.mrb[0].mxu0
      %2080 = vdwg.mxu0
      %v2081 = vld [vmem:[%s299] sm:$0xf]
      %v2082 = vld [vmem:[%s299 + $0x4] sm:$0xf]
      %v2083 = vld [vmem:[%s299 + $0x8] sm:$0xf]
      %v2084 = vld [vmem:[%s299 + $0xc] sm:$0xf]
      %v2085 = vld [vmem:[%s299 + $0x10] sm:$0xf]
      %v2086 = vld [vmem:[%s299 + $0x14] sm:$0xf]
      %v2087 = vld [vmem:[%s299 + $0x18] sm:$0xf]
      %v2088 = vld [vmem:[%s299 + $0x1c] sm:$0xf]
      %v2089 = vunpack.c.l.bf16 %v2081
      %v2090 = vunpack.c.l.bf16 %v2082
      %v2091 = vunpack.c.l.bf16 %v2083
      %v2092 = vunpack.c.l.bf16 %v2084
      %v2093 = vunpack.c.l.bf16 %v2085
      %v2094 = vunpack.c.l.bf16 %v2086
      %v2095 = vunpack.c.l.bf16 %v2087
      %v2096 = vunpack.c.l.bf16 %v2088
      %v2097 = vadd.f32 %v2051, %v2089
      %v2098 = vadd.f32 %v2054, %v2090
      %v2099 = vadd.f32 %v2059, %v2091
      %v2100 = vadd.f32 %v2062, %v2092
      %v2101 = vadd.f32 %v2067, %v2093
      %v2102 = vadd.f32 %v2070, %v2094
      %v2103 = vadd.f32 %v2075, %v2095
      %v2104 = vadd.f32 %v2078, %v2096
      %v2105 = vmax.f32 %v2097, 0.0
      %v2106 = vmax.f32 %v2098, 0.0
      %v2107 = vmax.f32 %v2099, 0.0
      %v2108 = vmax.f32 %v2100, 0.0
      %v2109 = vmax.f32 %v2101, 0.0
      %v2110 = vmax.f32 %v2102, 0.0
      %v2111 = vmax.f32 %v2103, 0.0
      %v2112 = vmax.f32 %v2104, 0.0
      %v2113 = vpack.c.bf16 %v2105, %v2105
      %v2114 = vpack.c.bf16 %v2106, %v2106
      %v2115 = vpack.c.bf16 %v2107, %v2107
      %v2116 = vpack.c.bf16 %v2108, %v2108
      %v2117 = vpack.c.bf16 %v2109, %v2109
      %v2118 = vpack.c.bf16 %v2110, %v2110
      %v2119 = vpack.c.bf16 %v2111, %v2111
      %v2120 = vpack.c.bf16 %v2112, %v2112
      %2121 = vst [vmem:[%s312] sm:$0xf] %v2113
      %2122 = vst [vmem:[%s312 + $0x4] sm:$0xf] %v2114
      %2123 = vst [vmem:[%s312 + $0x8] sm:$0xf] %v2115
      %2124 = vst [vmem:[%s312 + $0xc] sm:$0xf] %v2116
      %2125 = vst [vmem:[%s312 + $0x10] sm:$0xf] %v2117
      %2126 = vst [vmem:[%s312 + $0x14] sm:$0xf] %v2118
      %2127 = vst [vmem:[%s312 + $0x18] sm:$0xf] %v2119
      %2128 = vst [vmem:[%s312 + $0x1c] sm:$0xf] %v2120
      %s2129 = smul.u32 8, %s22
      %p2130 = scmp.lt.s32.totalorder %s20, 1
      %s2131 = scalar_select %p2130, %s20, 1
      %p2132 = scmp.lt.s32.totalorder %s2129, 7
      %s2133 = scalar_select %p2132, %s2129, 7
      %p2134 = scmp.lt.s32.totalorder %s21, 0
      %s2135 = scalar_select %p2134, %s21, 0
      %s2136 = sadd.s32 %s2135, %s2133
      %s2137 = smul.addr %s2131, 8
      %s2138 = sadd.s32 %s2136, %s2137
      %s2139 = smul.addr %s2138, 4
      %s2140 = scalar_lea.vmem %s4, %s2139
      // Predicated region
      $region37: #{basic_block_forward.5} parent=35 // pred_check
        %p2141 = pneg %p164
      $region38: #{basic_block_forward.5} parent=35 // pred_check_branch
        %2143 = sbr.rel (%p2141) target = $region40
      $region39: #{basic_block_forward.5} parent=35 // pred_region
        %s2144 = smul.u32 8, %s22
      $region40: #{basic_block_forward.5} parent=35 // pred_fallthru
        _
    $region36: #{basic_block_forward.5} parent=5 // pred_fallthru
      _
    %p2145 = scmp.le.s32.totalorder 2, %s10
    // Predicated region
    $region41: #{basic_block_forward.5} parent=5 // pred_check
      %p2146 = pneg %p2145
    $region42: #{basic_block_forward.5} parent=5 // pred_check_branch
      %2148 = sbr.rel (%p2146) target = $region44
    $region43: #{basic_block_forward.5} parent=5 // pred_region
      %s2149 = ssub.s32 %s10, 2
      // Predicated region
      $region45: #{basic_block_forward.5} parent=43 // pred_check
        %p2150 = pneg %p170
      $region46: #{basic_block_forward.5} parent=43 // pred_check_branch
        %2152 = sbr.rel (%p2150) target = $region48
      $region47: #{basic_block_forward.5} parent=43 // pred_region
        %s2153 = smul.u32 8, %s25
        %p2154 = scmp.lt.s32.totalorder %s23, 1
        %s2155 = scalar_select %p2154, %s23, 1
        %p2156 = scmp.lt.s32.totalorder %s2153, 7
        %s2157 = scalar_select %p2156, %s2153, 7
        %p2158 = scmp.lt.s32.totalorder %s24, 0
        %s2159 = scalar_select %p2158, %s24, 0
        %s2160 = sadd.s32 %s2159, %s2157
        %s2161 = smul.addr %s2155, 8
        %s2162 = sadd.s32 %s2160, %s2161
        %s2163 = smul.addr %s2162, 4
        %s2164 = scalar_lea.vmem %s4, %s2163
      $region48: #{basic_block_forward.5} parent=43 // pred_fallthru
        _
    $region44: #{basic_block_forward.5} parent=5 // pred_fallthru
      _
  $region6: #{basic_block_forward.5} parent=0 // loop_footer
    %s14 = sadd.s32 1, %s10
  $region7: #{basic_block_forward.5} parent=0 // loop_footer_branch
    %9 = sbr.rel target = $region3
  $region8: #{basic_block_forward.5} parent=0 // loop_exit
    _

</llo_original>
